<compile_context>
chip_gen: v6e
topology: v6e:2x2x1
jax: 0.10.0
libtpu: 0.0.40
codegen_flags: <defaults>
</compile_context>

<pallas_src>
import functools
import math

import jax
import jax.numpy as jnp
from jax.experimental import pallas as pl
from jax.experimental.pallas import tpu as pltpu


def _pick_vmem_limit():
    """Generation-aware scoped-VMEM limit: ~(capacity - 16 MiB), capped at 96 MiB
    (v5e/v6e: 128 MiB physical, v7x: 64 MiB). Conservative 32 MiB fallback."""
    try:
        info = pltpu.get_tpu_info()
        cap = int(getattr(info, "vmem_capacity_bytes", 0) or 0)
        if cap > 0:
            return int(min(max(cap - (16 << 20), 16 << 20), 96 << 20))
    except Exception:
        pass
    return 32 << 20


_VMEM_LIMIT = _pick_vmem_limit()
_COMPILER_PARAMS = pltpu.CompilerParams(
    dimension_semantics=("parallel",), vmem_limit_bytes=_VMEM_LIMIT)


def _gelu_tanh(x):
    # TODO(synk): PyTorch nn.GELU defaults to exact erf; Mosaic has no erf
    # primitive, so the tanh approximation is used (EUP tanh, ~1e-3 rel. dev.).
    c = math.sqrt(2.0 / math.pi)
    return 0.5 * x * (1.0 + jnp.tanh(c * (x + 0.044715 * (x * x * x))))


# ----------------------------------------------------------------------------
# Embedding kernel (fused): y[:, :L]  = x @ W_e^T + b_e + pe
#                           y[:, L]   = cls_token
#                           y[:, L+1:]= 0 (sublane-alignment padding)
# Grid iterates over batch elements; weight/pe/cls blocks have constant index
# maps so they are DMA'd once and stay resident in VMEM.
# ----------------------------------------------------------------------------
def _embed_kernel(x_ref, wt_ref, b_ref, pe_ref, cls_ref, o_ref):
    _, L, _ = x_ref.shape
    _, s_pad, D = o_ref.shape
    emb = jnp.dot(x_ref[0], wt_ref[...], preferred_element_type=jnp.float32)
    emb = emb + b_ref[...] + pe_ref[...]                       # (L, D) f32
    if s_pad > L + 1:                                          # static branch
        o_ref[...] = jnp.zeros(o_ref.shape, o_ref.dtype)
    o_ref[:, 0:L, :] = emb.reshape(1, L, D).astype(o_ref.dtype)
    o_ref[:, L:L + 1, :] = cls_ref[...].reshape(1, 1, D).astype(o_ref.dtype)


def embed_pallas(x_bf, wt, b, pe, cls_tok, s_pad, out_dtype):
    B, L, V = x_bf.shape
    D = wt.shape[1]
    cost = pl.CostEstimate(
        flops=int(2 * B * L * V * D),
        transcendentals=0,
        bytes_accessed=int(x_bf.size * 2 + wt.size * 2
                           + (b.size + pe.size + cls_tok.size) * 4
                           + B * s_pad * D * 2),
    )
    return pl.pallas_call(
        _embed_kernel,
        out_shape=jax.ShapeDtypeStruct((B, s_pad, D), out_dtype),
        grid=(B,),
        in_specs=[
            pl.BlockSpec((1, L, V), lambda i: (i, 0, 0)),   # per-batch activations
            pl.BlockSpec((V, D), lambda i: (0, 0)),         # embedding weight (resident)
            pl.BlockSpec((1, D), lambda i: (0, 0)),         # embedding bias
            pl.BlockSpec((L, D), lambda i: (0, 0)),         # positional encoding slice
            pl.BlockSpec((1, D), lambda i: (0, 0)),         # cls token
        ],
        out_specs=pl.BlockSpec((1, s_pad, D), lambda i: (i, 0, 0)),
        compiler_params=_COMPILER_PARAMS,
        cost_estimate=cost,
    )(x_bf, wt, b, pe, cls_tok)


# ----------------------------------------------------------------------------
# Encoder block kernel: MHA + LayerNorm + GELU FFN + LayerNorm for one batch
# element (grid over batch). All matmuls are bf16-in / f32-accumulate on the MXU;
# softmax / LayerNorm / GELU / residual math stays in f32 vregs (v5e-safe).
# ----------------------------------------------------------------------------
def _encoder_kernel(x_ref, wqkv_ref, bqkv_ref, wo_ref, bo_ref,
                    g1_ref, beta1_ref, w1_ref, b1_ref, w2_ref, b2_ref,
                    g2_ref, beta2_ref, o_ref, *, num_heads, seq_len):
    _, S, D = x_ref.shape            # S = padded sequence length (multiple of 8)
    H = num_heads
    hd = D // H
    scale = 1.0 / math.sqrt(hd)

    x_bf = x_ref[0]                                            # (S, D) bf16

    # --- Fused Q/K/V projection: ONE (S,D)@(D,3D) matmul -----------------------
    qkv = jnp.dot(x_bf, wqkv_ref[...], preferred_element_type=jnp.float32)
    qkv = qkv + bqkv_ref[...]
    qkv_bf = qkv.astype(jnp.bfloat16)

    # --- Head split once -> (H, S, hd); scores/context as head-batched einsums --
    def heads(off):
        return jnp.stack(
            [qkv_bf[:, off + h * hd: off + (h + 1) * hd] for h in range(H)], axis=0)

    qh, kh, vh = heads(0), heads(D), heads(2 * D)

    s = jnp.einsum('hqd,hkd->hqk', qh, kh,
                   preferred_element_type=jnp.float32) * scale             # (H, S, S)
    if S > seq_len:                      # mask alignment-padding key columns only
        kpos = jax.lax.broadcasted_iota(jnp.int32, (H, S, S), 2)
        s = jnp.where(kpos < seq_len, s, jnp.float32(-1e30))
    s = s - jnp.max(s, axis=-1, keepdims=True)
    p = jnp.exp(s)
    p = p * pl.reciprocal(jnp.sum(p, axis=-1, keepdims=True), approx=True)
    ctx = jnp.einsum('hqk,hkd->hqd', p.astype(jnp.bfloat16), vh,
                     preferred_element_type=jnp.float32)                   # (H, S, hd)
    ctx2 = jnp.concatenate([ctx[h] for h in range(H)], axis=-1)            # (S, D)

    attn = jnp.dot(ctx2.astype(jnp.bfloat16), wo_ref[...],
                   preferred_element_type=jnp.float32) + bo_ref[...]       # (S, D)

    def layernorm(z, gamma, beta):
        mu = jnp.mean(z, axis=-1, keepdims=True)
        var = jnp.mean((z - mu) ** 2, axis=-1, keepdims=True)
        return (z - mu) * jax.lax.rsqrt(var + 1e-5) * gamma + beta

    h1 = layernorm(x_bf.astype(jnp.float32) + attn, g1_ref[...], beta1_ref[...])

    # --- Feed-forward: Linear -> GELU(tanh, EUP) -> Linear ----------------------
    ff = jnp.dot(h1.astype(jnp.bfloat16), w1_ref[...],
                 preferred_element_type=jnp.float32) + b1_ref[...]         # (S, F)
    ff = _gelu_tanh(ff)
    ff = jnp.dot(ff.astype(jnp.bfloat16), w2_ref[...],
                 preferred_element_type=jnp.float32) + b2_ref[...]         # (S, D)

    h2 = layernorm(h1 + ff, g2_ref[...], beta2_ref[...])
    o_ref[0] = h2.astype(o_ref.dtype)


def encoder_block_pallas(x, p, num_heads, seq_len):
    B, s_pad, D = x.shape
    F = p["w1T"].shape[1]
    H = num_heads
    S = s_pad
    cost = pl.CostEstimate(
        flops=int(B * (8 * S * D * D + 4 * S * S * D + 4 * S * D * F)),
        transcendentals=int(B * (H * S * S + S * F + H * S + 2 * S)),
        bytes_accessed=int(2 * B * S * D * 2 + (4 * D * D + 2 * D * F) * 2
                           + (9 * D + F) * 4),
    )

    def cspec(shape):
        zeros = (0,) * len(shape)
        return pl.BlockSpec(shape, lambda i, _z=zeros: _z)

    kernel = functools.partial(_encoder_kernel, num_heads=num_heads, seq_len=seq_len)
    # NOTE: weights/biases have constant index maps so they are DMA'd once and
    # stay VMEM-resident across the batch grid (each grid step is compute-heavy,
    # so the ~0.35us/step overhead is negligible and the parallel grid feeds both
    # v7x TensorCores). At production sizes (D>=1024, F>=4096) these constant
    # blocks should additionally be single-buffered (pipeline_mode=pl.Buffered(1))
    # and the FFN tiled over F-chunks to fit v7x's 64 MiB VMEM; at these model
    # sizes everything fits comfortably.
    return pl.pallas_call(
        kernel,
        out_shape=jax.ShapeDtypeStruct((B, s_pad, D), x.dtype),
        grid=(B,),
        in_specs=[
            pl.BlockSpec((1, s_pad, D), lambda i: (i, 0, 0)),   # activations
            cspec((D, 3 * D)), cspec((1, 3 * D)),               # fused QKV proj
            cspec((D, D)), cspec((1, D)),                       # output proj
            cspec((1, D)), cspec((1, D)),                       # layernorm1
            cspec((D, F)), cspec((1, F)),                       # ffn linear1
            cspec((F, D)), cspec((1, D)),                       # ffn linear2
            cspec((1, D)), cspec((1, D)),                       # layernorm2
        ],
        out_specs=pl.BlockSpec((1, s_pad, D), lambda i: (i, 0, 0)),
        input_output_aliases={0: 0},     # new activations written in place
        compiler_params=_COMPILER_PARAMS,
        cost_estimate=cost,
    )(x, p["wqkvT"], p["bqkv"], p["woT"], p["bo"], p["g1"], p["bt1"],
      p["w1T"], p["b1"], p["w2T"], p["b2"], p["g2"], p["bt2"])


# ----------------------------------------------------------------------------
# Model glue: positional encoding, torch-equivalent init, kernel-ready layout.
# ----------------------------------------------------------------------------
def positional_encoding(max_len, embed_dim):
    pos = jnp.arange(max_len, dtype=jnp.float32)[:, None]
    i_s = jnp.arange(0, embed_dim, 2, dtype=jnp.float32)
    angles = pos / jnp.power(10000.0, i_s / embed_dim)
    pe = jnp.zeros((max_len, embed_dim), jnp.float32)
    pe = pe.at[:, 0::2].set(jnp.sin(angles))
    pe = pe.at[:, 1::2].set(jnp.cos(angles))
    return pe


def _xavier_uniform(key, out_f, in_f):
    bound = math.sqrt(6.0 / (in_f + out_f))
    return jax.random.uniform(key, (out_f, in_f), jnp.float32, -bound, bound)


def _default_linear(key, out_f, in_f):
    kw, kb = jax.random.split(key)
    bound = 1.0 / math.sqrt(in_f)
    w = jax.random.uniform(kw, (out_f, in_f), jnp.float32, -bound, bound)
    b = jax.random.uniform(kb, (out_f,), jnp.float32, -bound, bound)
    return w, b


def init_params(key, input_dim, embed_dim, num_classes, num_heads,
                feedforward_dim, num_layers, max_len):
    keys = iter(jax.random.split(key, 4 + 8 * num_layers))
    params = {"num_heads": num_heads}
    params["cls_token"] = jax.random.normal(next(keys), (embed_dim,), jnp.float32)
    ew, eb = _default_linear(next(keys), embed_dim, input_dim)
    params["embed"] = {"w": ew, "b": eb}
    params["pe"] = positional_encoding(max_len, embed_dim)

    blocks = []
    for _ in range(num_layers):
        blk = {
            # MultiheadAttention: xavier-uniform weights, zero biases
            "wq": _xavier_uniform(next(keys), embed_dim, embed_dim),
            "bq": jnp.zeros((embed_dim,), jnp.float32),
            "wk": _xavier_uniform(next(keys), embed_dim, embed_dim),
            "bk": jnp.zeros((embed_dim,), jnp.float32),
            "wv": _xavier_uniform(next(keys), embed_dim, embed_dim),
            "bv": jnp.zeros((embed_dim,), jnp.float32),
            "wo": _xavier_uniform(next(keys), embed_dim, embed_dim),
            "bo": jnp.zeros((embed_dim,), jnp.float32),
            # LayerNorms: gamma=1, beta=0 (PyTorch default)
            "g1": jnp.ones((embed_dim,), jnp.float32),
            "bt1": jnp.zeros((embed_dim,), jnp.float32),
            "g2": jnp.ones((embed_dim,), jnp.float32),
            "bt2": jnp.zeros((embed_dim,), jnp.float32),
        }
        w1, b1 = _default_linear(next(keys), feedforward_dim, embed_dim)
        w2, b2 = _default_linear(next(keys), embed_dim, feedforward_dim)
        blk.update({"w1": w1, "b1": b1, "w2": w2, "b2": b2})
        blocks.append(blk)
    params["blocks"] = blocks

    cw, cb = _default_linear(next(keys), num_classes, embed_dim)
    params["cls"] = {"w": cw, "b": cb}
    return params


def prepare_params(params, compute_dtype=jnp.bfloat16):
    """Torch-layout f32 master params -> kernel-ready layout: matrices transposed
    once to (in, out) bf16 (MXU path), Q/K/V fused into (D, 3D); biases / LN
    params / classifier stay f32 (VPU / XLA math)."""
    cd = compute_dtype

    def mat(w):                      # torch (out, in) -> (in, out), compute dtype
        return jnp.asarray(w, jnp.float32).T.astype(cd)

    def row(v):                      # (N,) -> (1, N) f32
        return jnp.asarray(v, jnp.float32).reshape(1, -1)

    kp = {
        "num_heads": params["num_heads"],
        "cls_token": jnp.asarray(params["cls_token"], jnp.float32).reshape(1, -1),
        "pe": jnp.asarray(params["pe"], jnp.float32),
        "embed": {"wT": mat(params["embed"]["w"]), "b": row(params["embed"]["b"])},
        "cls": {"w": jnp.asarray(params["cls"]["w"], jnp.float32),
                "b": jnp.asarray(params["cls"]["b"], jnp.float32)},
        "blocks": [],
    }
    for blk in params["blocks"]:
        kp["blocks"].append({
            "wqkvT": jnp.concatenate([mat(blk["wq"]), mat(blk["wk"]), mat(blk["wv"])],
                                     axis=1),
            "bqkv": jnp.concatenate([row(blk["bq"]), row(blk["bk"]), row(blk["bv"])],
                                    axis=1),
            "woT": mat(blk["wo"]), "bo": row(blk["bo"]),
            "g1": row(blk["g1"]), "bt1": row(blk["bt1"]),
            "w1T": mat(blk["w1"]), "b1": row(blk["b1"]),
            "w2T": mat(blk["w2"]), "b2": row(blk["b2"]),
            "g2": row(blk["g2"]), "bt2": row(blk["bt2"]),
        })
    return kp


def transformer_forward(x, kp):
    """x: (B, L, |V|) float32 -> logits (B, |C|) float32."""
    B, L, V = x.shape
    D = kp["embed"]["wT"].shape[1]
    cd = kp["embed"]["wT"].dtype
    seq_len = L + 1                          # CLS appended at the END (reference)
    s_pad = ((seq_len + 7) // 8) * 8         # sublane-aligned; padded keys masked

    pe = kp["pe"][:L]                        # (L, D) f32
    h = embed_pallas(x.astype(cd), kp["embed"]["wT"], kp["embed"]["b"],
                     pe, kp["cls_token"], s_pad, cd)          # (B, s_pad, D)

    for blk in kp["blocks"]:
        h = encoder_block_pallas(h, blk, kp["num_heads"], seq_len)

    cls_vec = h[:, seq_len - 1, :].astype(jnp.float32)        # CLS position (index L)
    # Tiny (B, num_classes) classifier stays in plain XLA: a 4-lane-wide pallas
    # output would force masked partial stores and be pure launch overhead.
    logits = cls_vec @ kp["cls"]["w"].T + kp["cls"]["b"]
    return logits


if __name__ == "__main__":
    # Small shapes consistent with the module's forward: x is (B, L, |V|)
    B, L, V = 2, 8, 16
    D, H, F, NL, C = 32, 4, 64, 2, 4

    key = jax.random.PRNGKey(0)
    pkey, xkey = jax.random.split(key)
    params = init_params(pkey, input_dim=V, embed_dim=D, num_classes=C,
                         num_heads=H, feedforward_dim=F, num_layers=NL, max_len=64)
    kparams = prepare_params(params)
    x = jax.random.normal(xkey, (B, L, V), jnp.float32)

    fwd = jax.jit(lambda inp: transformer_forward(inp, kparams))
    out = fwd(x)
    jax.block_until_ready(out)
    assert out.shape == (B, C) and out.dtype == jnp.float32
    print("KERNEL_OK")
</pallas_src>

<mosaic_0001>
module attributes {stable_mosaic.version = 11 : i64} {
  func.func @_embed_kernel(%arg0: i32, %arg1: memref<1x8x16xbf16, #tpu.memory_space<vmem>>, %arg2: memref<16x32xbf16, #tpu.memory_space<vmem>>, %arg3: memref<1x32xf32, #tpu.memory_space<vmem>>, %arg4: memref<8x32xf32, #tpu.memory_space<vmem>>, %arg5: memref<1x32xf32, #tpu.memory_space<vmem>>, %arg6: memref<1x16x32xbf16, #tpu.memory_space<vmem>>) attributes {dimension_semantics = [#tpu.dimension_semantics<parallel>], iteration_bounds = array<i64: 2>, scalar_prefetch = 0 : i64, scratch_operands = 0 : i64, tpu.core_type = #tpu.core_type<tc>, window_params = [{transform_indices = @transform_0, window_bounds = array<i64: 1, 8, 16>}, {pipeline_mode = #tpu.pipeline_mode<synchronous>, transform_indices = @transform_1, window_bounds = array<i64: 16, 32>}, {pipeline_mode = #tpu.pipeline_mode<synchronous>, transform_indices = @transform_2, window_bounds = array<i64: 1, 32>}, {pipeline_mode = #tpu.pipeline_mode<synchronous>, transform_indices = @transform_3, window_bounds = array<i64: 8, 32>}, {pipeline_mode = #tpu.pipeline_mode<synchronous>, transform_indices = @transform_4, window_bounds = array<i64: 1, 32>}, {transform_indices = @transform_5, window_bounds = array<i64: 1, 16, 32>}]} {
    %c0 = arith.constant 0 : index
    %c0_0 = arith.constant 0 : index
    %c0_1 = arith.constant 0 : index
    %0 = vector.load %arg1[%c0, %c0_0, %c0_1] : memref<1x8x16xbf16, #tpu.memory_space<vmem>>, vector<1x8x16xbf16>
    %1 = vector.shape_cast %0 : vector<1x8x16xbf16> to vector<8x16xbf16>
    %c0_2 = arith.constant 0 : index
    %c0_3 = arith.constant 0 : index
    %2 = vector.load %arg2[%c0_2, %c0_3] : memref<16x32xbf16, #tpu.memory_space<vmem>>, vector<16x32xbf16>
    %cst = arith.constant dense<0.000000e+00> : vector<8x32xf32>
    %3 = tpu.matmul %1, %2, %cst {dimension_numbers = #tpu.dot_dimension_numbers<[1], [0], [0], [1], [0, 0, 1, 1], [], []>} : vector<8x16xbf16>, vector<16x32xbf16>, vector<8x32xf32> -> vector<8x32xf32>
    %c0_4 = arith.constant 0 : index
    %c0_5 = arith.constant 0 : index
    %4 = vector.load %arg3[%c0_4, %c0_5] : memref<1x32xf32, #tpu.memory_space<vmem>>, vector<1x32xf32>
    %5 = vector.broadcast %4 : vector<1x32xf32> to vector<8x32xf32>
    %6 = arith.addf %3, %5 : vector<8x32xf32>
    %c0_6 = arith.constant 0 : index
    %c0_7 = arith.constant 0 : index
    %7 = vector.load %arg4[%c0_6, %c0_7] : memref<8x32xf32, #tpu.memory_space<vmem>>, vector<8x32xf32>
    %8 = arith.addf %6, %7 : vector<8x32xf32>
    %cst_8 = arith.constant 0.000000e+00 : bf16
    %9 = vector.broadcast %cst_8 : bf16 to vector<1x16x32xbf16>
    %c0_9 = arith.constant 0 : index
    %c0_10 = arith.constant 0 : index
    %c0_11 = arith.constant 0 : index
    %10 = vector.load %arg6[%c0_9, %c0_10, %c0_11] : memref<1x16x32xbf16, #tpu.memory_space<vmem>>, vector<1x16x32xbf16>
    tpu.vector_store %arg6[%c0_9, %c0_10, %c0_11], %9 {strides = array<i32>} : memref<1x16x32xbf16, #tpu.memory_space<vmem>>, vector<1x16x32xbf16>,
    %11 = vector.shape_cast %8 : vector<8x32xf32> to vector<1x8x32xf32>
    %12 = arith.truncf %11 : vector<1x8x32xf32> to vector<1x8x32xbf16>
    %c0_12 = arith.constant 0 : index
    %c0_13 = arith.constant 0 : index
    %c0_14 = arith.constant 0 : index
    %13 = vector.load %arg6[%c0_12, %c0_13, %c0_14] : memref<1x16x32xbf16, #tpu.memory_space<vmem>>, vector<1x8x32xbf16>
    tpu.vector_store %arg6[%c0_12, %c0_13, %c0_14], %12 {strides = array<i32>} : memref<1x16x32xbf16, #tpu.memory_space<vmem>>, vector<1x8x32xbf16>,
    %c0_15 = arith.constant 0 : index
    %c0_16 = arith.constant 0 : index
    %14 = vector.load %arg5[%c0_15, %c0_16] : memref<1x32xf32, #tpu.memory_space<vmem>>, vector<1x32xf32>
    %15 = vector.shape_cast %14 : vector<1x32xf32> to vector<1x1x32xf32>
    %16 = arith.truncf %15 : vector<1x1x32xf32> to vector<1x1x32xbf16>
    %c0_17 = arith.constant 0 : index
    %c8 = arith.constant 8 : index
    %c0_18 = arith.constant 0 : index
    %17 = vector.load %arg6[%c0_17, %c8, %c0_18] : memref<1x16x32xbf16, #tpu.memory_space<vmem>>, vector<1x1x32xbf16>
    tpu.vector_store %arg6[%c0_17, %c8, %c0_18], %16 {strides = array<i32>} : memref<1x16x32xbf16, #tpu.memory_space<vmem>>, vector<1x1x32xbf16>,
    return
  }
  func.func @transform_0(%arg0: i32) -> (i32, i32, i32) {
    %c0_i32 = arith.constant 0 : i32
    %c0_i32_0 = arith.constant 0 : i32
    %c0_i32_1 = arith.constant 0 : i32
    return %arg0, %c0_i32, %c0_i32_0 : i32, i32, i32
  }
  func.func @transform_1(%arg0: i32) -> (i32, i32) {
    %c0_i32 = arith.constant 0 : i32
    %c0_i32_0 = arith.constant 0 : i32
    %c0_i32_1 = arith.constant 0 : i32
    return %c0_i32, %c0_i32_0 : i32, i32
  }
  func.func @transform_2(%arg0: i32) -> (i32, i32) {
    %c0_i32 = arith.constant 0 : i32
    %c0_i32_0 = arith.constant 0 : i32
    %c0_i32_1 = arith.constant 0 : i32
    return %c0_i32, %c0_i32_0 : i32, i32
  }
  func.func @transform_3(%arg0: i32) -> (i32, i32) {
    %c0_i32 = arith.constant 0 : i32
    %c0_i32_0 = arith.constant 0 : i32
    %c0_i32_1 = arith.constant 0 : i32
    return %c0_i32, %c0_i32_0 : i32, i32
  }
  func.func @transform_4(%arg0: i32) -> (i32, i32) {
    %c0_i32 = arith.constant 0 : i32
    %c0_i32_0 = arith.constant 0 : i32
    %c0_i32_1 = arith.constant 0 : i32
    return %c0_i32, %c0_i32_0 : i32, i32
  }
  func.func @transform_5(%arg0: i32) -> (i32, i32, i32) {
    %c0_i32 = arith.constant 0 : i32
    %c0_i32_0 = arith.constant 0 : i32
    %c0_i32_1 = arith.constant 0 : i32
    return %arg0, %c0_i32, %c0_i32_0 : i32, i32, i32
  }
}

module attributes {stable_mosaic.version = 11 : i64} {
  func.func @_encoder_kernel(%arg0: i32, %arg1: memref<1x16x32xbf16, #tpu.memory_space<vmem>>, %arg2: memref<32x96xbf16, #tpu.memory_space<vmem>>, %arg3: memref<1x96xf32, #tpu.memory_space<vmem>>, %arg4: memref<32x32xbf16, #tpu.memory_space<vmem>>, %arg5: memref<1x32xf32, #tpu.memory_space<vmem>>, %arg6: memref<1x32xf32, #tpu.memory_space<vmem>>, %arg7: memref<1x32xf32, #tpu.memory_space<vmem>>, %arg8: memref<32x64xbf16, #tpu.memory_space<vmem>>, %arg9: memref<1x64xf32, #tpu.memory_space<vmem>>, %arg10: memref<64x32xbf16, #tpu.memory_space<vmem>>, %arg11: memref<1x32xf32, #tpu.memory_space<vmem>>, %arg12: memref<1x32xf32, #tpu.memory_space<vmem>>, %arg13: memref<1x32xf32, #tpu.memory_space<vmem>>, %arg14: memref<1x16x32xbf16, #tpu.memory_space<vmem>>) attributes {dimension_semantics = [#tpu.dimension_semantics<parallel>], iteration_bounds = array<i64: 2>, scalar_prefetch = 0 : i64, scratch_operands = 0 : i64, tpu.core_type = #tpu.core_type<tc>, window_params = [{transform_indices = @transform_0, window_bounds = array<i64: 1, 16, 32>}, {pipeline_mode = #tpu.pipeline_mode<synchronous>, transform_indices = @transform_1, window_bounds = array<i64: 32, 96>}, {pipeline_mode = #tpu.pipeline_mode<synchronous>, transform_indices = @transform_2, window_bounds = array<i64: 1, 96>}, {pipeline_mode = #tpu.pipeline_mode<synchronous>, transform_indices = @transform_3, window_bounds = array<i64: 32, 32>}, {pipeline_mode = #tpu.pipeline_mode<synchronous>, transform_indices = @transform_4, window_bounds = array<i64: 1, 32>}, {pipeline_mode = #tpu.pipeline_mode<synchronous>, transform_indices = @transform_5, window_bounds = array<i64: 1, 32>}, {pipeline_mode = #tpu.pipeline_mode<synchronous>, transform_indices = @transform_6, window_bounds = array<i64: 1, 32>}, {pipeline_mode = #tpu.pipeline_mode<synchronous>, transform_indices = @transform_7, window_bounds = array<i64: 32, 64>}, {pipeline_mode = #tpu.pipeline_mode<synchronous>, transform_indices = @transform_8, window_bounds = array<i64: 1, 64>}, {pipeline_mode = #tpu.pipeline_mode<synchronous>, transform_indices = @transform_9, window_bounds = array<i64: 64, 32>}, {pipeline_mode = #tpu.pipeline_mode<synchronous>, transform_indices = @transform_10, window_bounds = array<i64: 1, 32>}, {pipeline_mode = #tpu.pipeline_mode<synchronous>, transform_indices = @transform_11, window_bounds = array<i64: 1, 32>}, {pipeline_mode = #tpu.pipeline_mode<synchronous>, transform_indices = @transform_12, window_bounds = array<i64: 1, 32>}, {transform_indices = @transform_13, window_bounds = array<i64: 1, 16, 32>}]} {
    %c0 = arith.constant 0 : index
    %c0_0 = arith.constant 0 : index
    %c0_1 = arith.constant 0 : index
    %0 = vector.load %arg1[%c0, %c0_0, %c0_1] : memref<1x16x32xbf16, #tpu.memory_space<vmem>>, vector<1x16x32xbf16>
    %1 = vector.shape_cast %0 : vector<1x16x32xbf16> to vector<16x32xbf16>
    %c0_2 = arith.constant 0 : index
    %c0_3 = arith.constant 0 : index
    %2 = vector.load %arg2[%c0_2, %c0_3] : memref<32x96xbf16, #tpu.memory_space<vmem>>, vector<32x96xbf16>
    %cst = arith.constant dense<0.000000e+00> : vector<16x96xf32>
    %3 = tpu.matmul %1, %2, %cst {dimension_numbers = #tpu.dot_dimension_numbers<[1], [0], [0], [1], [0, 0, 1, 1], [], []>} : vector<16x32xbf16>, vector<32x96xbf16>, vector<16x96xf32> -> vector<16x96xf32>
    %c0_4 = arith.constant 0 : index
    %c0_5 = arith.constant 0 : index
    %4 = vector.load %arg3[%c0_4, %c0_5] : memref<1x96xf32, #tpu.memory_space<vmem>>, vector<1x96xf32>
    %5 = vector.broadcast %4 : vector<1x96xf32> to vector<16x96xf32>
    %6 = arith.addf %3, %5 : vector<16x96xf32>
    %7 = arith.truncf %6 : vector<16x96xf32> to vector<16x96xbf16>
    %8 = vector.extract_strided_slice %7 {offsets = [0, 0], sizes = [16, 8], strides = [1, 1]} : vector<16x96xbf16> to vector<16x8xbf16>
    %9 = vector.extract_strided_slice %7 {offsets = [0, 8], sizes = [16, 8], strides = [1, 1]} : vector<16x96xbf16> to vector<16x8xbf16>
    %10 = vector.extract_strided_slice %7 {offsets = [0, 16], sizes = [16, 8], strides = [1, 1]} : vector<16x96xbf16> to vector<16x8xbf16>
    %11 = vector.extract_strided_slice %7 {offsets = [0, 24], sizes = [16, 8], strides = [1, 1]} : vector<16x96xbf16> to vector<16x8xbf16>
    %12 = vector.shape_cast %8 : vector<16x8xbf16> to vector<1x16x8xbf16>
    %13 = vector.shape_cast %9 : vector<16x8xbf16> to vector<1x16x8xbf16>
    %14 = vector.shape_cast %10 : vector<16x8xbf16> to vector<1x16x8xbf16>
    %15 = vector.shape_cast %11 : vector<16x8xbf16> to vector<1x16x8xbf16>
    %16 = tpu.concatenate %12, %13, %14, %15 in 0 : vector<1x16x8xbf16>, vector<1x16x8xbf16>, vector<1x16x8xbf16>, vector<1x16x8xbf16> -> vector<4x16x8xbf16>
    %17 = vector.extract_strided_slice %7 {offsets = [0, 32], sizes = [16, 8], strides = [1, 1]} : vector<16x96xbf16> to vector<16x8xbf16>
    %18 = vector.extract_strided_slice %7 {offsets = [0, 40], sizes = [16, 8], strides = [1, 1]} : vector<16x96xbf16> to vector<16x8xbf16>
    %19 = vector.extract_strided_slice %7 {offsets = [0, 48], sizes = [16, 8], strides = [1, 1]} : vector<16x96xbf16> to vector<16x8xbf16>
    %20 = vector.extract_strided_slice %7 {offsets = [0, 56], sizes = [16, 8], strides = [1, 1]} : vector<16x96xbf16> to vector<16x8xbf16>
    %21 = vector.shape_cast %17 : vector<16x8xbf16> to vector<1x16x8xbf16>
    %22 = vector.shape_cast %18 : vector<16x8xbf16> to vector<1x16x8xbf16>
    %23 = vector.shape_cast %19 : vector<16x8xbf16> to vector<1x16x8xbf16>
    %24 = vector.shape_cast %20 : vector<16x8xbf16> to vector<1x16x8xbf16>
    %25 = tpu.concatenate %21, %22, %23, %24 in 0 : vector<1x16x8xbf16>, vector<1x16x8xbf16>, vector<1x16x8xbf16>, vector<1x16x8xbf16> -> vector<4x16x8xbf16>
    %26 = vector.extract_strided_slice %7 {offsets = [0, 64], sizes = [16, 8], strides = [1, 1]} : vector<16x96xbf16> to vector<16x8xbf16>
    %27 = vector.extract_strided_slice %7 {offsets = [0, 72], sizes = [16, 8], strides = [1, 1]} : vector<16x96xbf16> to vector<16x8xbf16>
    %28 = vector.extract_strided_slice %7 {offsets = [0, 80], sizes = [16, 8], strides = [1, 1]} : vector<16x96xbf16> to vector<16x8xbf16>
    %29 = vector.extract_strided_slice %7 {offsets = [0, 88], sizes = [16, 8], strides = [1, 1]} : vector<16x96xbf16> to vector<16x8xbf16>
    %30 = vector.shape_cast %26 : vector<16x8xbf16> to vector<1x16x8xbf16>
    %31 = vector.shape_cast %27 : vector<16x8xbf16> to vector<1x16x8xbf16>
    %32 = vector.shape_cast %28 : vector<16x8xbf16> to vector<1x16x8xbf16>
    %33 = vector.shape_cast %29 : vector<16x8xbf16> to vector<1x16x8xbf16>
    %34 = tpu.concatenate %30, %31, %32, %33 in 0 : vector<1x16x8xbf16>, vector<1x16x8xbf16>, vector<1x16x8xbf16>, vector<1x16x8xbf16> -> vector<4x16x8xbf16>
    "tpu.trace_start"() <{level = 10 : i32, message = "hqd,hkd->hqk"}> : () -> ()
    %cst_6 = arith.constant dense<0.000000e+00> : vector<4x16x16xf32>
    %35 = tpu.matmul %16, %25, %cst_6 {dimension_numbers = #tpu.dot_dimension_numbers<[2], [2], [1], [1], [0, 0, 0, 1, 1, 1], [0], [0]>} : vector<4x16x8xbf16>, vector<4x16x8xbf16>, vector<4x16x16xf32> -> vector<4x16x16xf32>
    "tpu.trace_stop"() : () -> ()
    %cst_7 = arith.constant 0.353553385 : f32
    %36 = vector.broadcast %cst_7 : f32 to vector<4x16x16xf32>
    %37 = arith.mulf %35, %36 : vector<4x16x16xf32>
    %38 = tpu.iota {dimensions = array<i32: 2>} : vector<4x16x16xi32>
    %c9_i32 = arith.constant 9 : i32
    %39 = vector.broadcast %c9_i32 : i32 to vector<4x16x16xi32>
    %40 = arith.cmpi slt, %38, %39 : vector<4x16x16xi32>
    %cst_8 = arith.constant -1.000000e+30 : f32
    %41 = vector.broadcast %cst_8 : f32 to vector<4x16x16xf32>
    %42 = arith.select %40, %37, %41 : vector<4x16x16xi1>, vector<4x16x16xf32>
    %cst_9 = arith.constant dense<0xFF800000> : vector<4x16xf32>
    %43 = vector.multi_reduction <maximumf>, %42, %cst_9 [2] : vector<4x16x16xf32> to vector<4x16xf32>
    %44 = vector.shape_cast %43 : vector<4x16xf32> to vector<4x16x1xf32>
    %45 = vector.broadcast %44 : vector<4x16x1xf32> to vector<4x16x16xf32>
    %46 = arith.subf %42, %45 : vector<4x16x16xf32>
    %47 = math.exp %46 : vector<4x16x16xf32>
    %cst_10 = arith.constant dense<0.000000e+00> : vector<4x16xf32>
    %48 = vector.multi_reduction <add>, %47, %cst_10 [2] : vector<4x16x16xf32> to vector<4x16xf32>
    %49 = vector.shape_cast %48 : vector<4x16xf32> to vector<4x16x1xf32>
    %50 = tpu.reciprocal %49 {approx = true} : vector<4x16x1xf32> -> vector<4x16x1xf32>
    %51 = vector.broadcast %50 : vector<4x16x1xf32> to vector<4x16x16xf32>
    %52 = arith.mulf %47, %51 : vector<4x16x16xf32>
    %53 = arith.truncf %52 : vector<4x16x16xf32> to vector<4x16x16xbf16>
    "tpu.trace_start"() <{level = 10 : i32, message = "hqk,hkd->hqd"}> : () -> ()
    %cst_11 = arith.constant dense<0.000000e+00> : vector<4x16x8xf32>
    %54 = tpu.matmul %53, %34, %cst_11 {dimension_numbers = #tpu.dot_dimension_numbers<[2], [1], [1], [2], [0, 0, 0, 1, 1, 2], [0], [0]>} : vector<4x16x16xbf16>, vector<4x16x8xbf16>, vector<4x16x8xf32> -> vector<4x16x8xf32>
    "tpu.trace_stop"() : () -> ()
    %55 = vector.extract_strided_slice %54 {offsets = [0, 0, 0], sizes = [1, 16, 8], strides = [1, 1, 1]} : vector<4x16x8xf32> to vector<1x16x8xf32>
    %56 = vector.shape_cast %55 : vector<1x16x8xf32> to vector<16x8xf32>
    %57 = vector.extract_strided_slice %54 {offsets = [1, 0, 0], sizes = [1, 16, 8], strides = [1, 1, 1]} : vector<4x16x8xf32> to vector<1x16x8xf32>
    %58 = vector.shape_cast %57 : vector<1x16x8xf32> to vector<16x8xf32>
    %59 = vector.extract_strided_slice %54 {offsets = [2, 0, 0], sizes = [1, 16, 8], strides = [1, 1, 1]} : vector<4x16x8xf32> to vector<1x16x8xf32>
    %60 = vector.shape_cast %59 : vector<1x16x8xf32> to vector<16x8xf32>
    %61 = vector.extract_strided_slice %54 {offsets = [3, 0, 0], sizes = [1, 16, 8], strides = [1, 1, 1]} : vector<4x16x8xf32> to vector<1x16x8xf32>
    %62 = vector.shape_cast %61 : vector<1x16x8xf32> to vector<16x8xf32>
    %63 = tpu.concatenate %56, %58, %60, %62 in 1 : vector<16x8xf32>, vector<16x8xf32>, vector<16x8xf32>, vector<16x8xf32> -> vector<16x32xf32>
    %64 = arith.truncf %63 : vector<16x32xf32> to vector<16x32xbf16>
    %c0_12 = arith.constant 0 : index
    %c0_13 = arith.constant 0 : index
    %65 = vector.load %arg4[%c0_12, %c0_13] : memref<32x32xbf16, #tpu.memory_space<vmem>>, vector<32x32xbf16>
    %cst_14 = arith.constant dense<0.000000e+00> : vector<16x32xf32>
    %66 = tpu.matmul %64, %65, %cst_14 {dimension_numbers = #tpu.dot_dimension_numbers<[1], [0], [0], [1], [0, 0, 1, 1], [], []>} : vector<16x32xbf16>, vector<32x32xbf16>, vector<16x32xf32> -> vector<16x32xf32>
    %c0_15 = arith.constant 0 : index
    %c0_16 = arith.constant 0 : index
    %67 = vector.load %arg5[%c0_15, %c0_16] : memref<1x32xf32, #tpu.memory_space<vmem>>, vector<1x32xf32>
    %68 = vector.broadcast %67 : vector<1x32xf32> to vector<16x32xf32>
    %69 = arith.addf %66, %68 : vector<16x32xf32>
    %70 = arith.extf %1 : vector<16x32xbf16> to vector<16x32xf32>
    %71 = arith.addf %70, %69 : vector<16x32xf32>
    %c0_17 = arith.constant 0 : index
    %c0_18 = arith.constant 0 : index
    %72 = vector.load %arg6[%c0_17, %c0_18] : memref<1x32xf32, #tpu.memory_space<vmem>>, vector<1x32xf32>
    %c0_19 = arith.constant 0 : index
    %c0_20 = arith.constant 0 : index
    %73 = vector.load %arg7[%c0_19, %c0_20] : memref<1x32xf32, #tpu.memory_space<vmem>>, vector<1x32xf32>
    %cst_21 = arith.constant dense<0.000000e+00> : vector<16xf32>
    %74 = vector.multi_reduction <add>, %71, %cst_21 [1] : vector<16x32xf32> to vector<16xf32>
    %75 = vector.shape_cast %74 : vector<16xf32> to vector<16x1xf32>
    %cst_22 = arith.constant 3.200000e+01 : f32
    %76 = vector.broadcast %cst_22 : f32 to vector<16x1xf32>
    %77 = arith.divf %75, %76 : vector<16x1xf32>
    %78 = vector.broadcast %77 : vector<16x1xf32> to vector<16x32xf32>
    %79 = arith.subf %71, %78 : vector<16x32xf32>
    %80 = arith.mulf %79, %79 : vector<16x32xf32>
    %cst_23 = arith.constant dense<0.000000e+00> : vector<16xf32>
    %81 = vector.multi_reduction <add>, %80, %cst_23 [1] : vector<16x32xf32> to vector<16xf32>
    %82 = vector.shape_cast %81 : vector<16xf32> to vector<16x1xf32>
    %cst_24 = arith.constant 3.200000e+01 : f32
    %83 = vector.broadcast %cst_24 : f32 to vector<16x1xf32>
    %84 = arith.divf %82, %83 : vector<16x1xf32>
    %85 = vector.broadcast %77 : vector<16x1xf32> to vector<16x32xf32>
    %86 = arith.subf %71, %85 : vector<16x32xf32>
    %cst_25 = arith.constant 9.99999974E-6 : f32
    %87 = vector.broadcast %cst_25 : f32 to vector<16x1xf32>
    %88 = arith.addf %84, %87 : vector<16x1xf32>
    %89 = math.rsqrt %88 : vector<16x1xf32>
    %90 = vector.broadcast %89 : vector<16x1xf32> to vector<16x32xf32>
    %91 = arith.mulf %86, %90 : vector<16x32xf32>
    %92 = vector.broadcast %72 : vector<1x32xf32> to vector<16x32xf32>
    %93 = arith.mulf %91, %92 : vector<16x32xf32>
    %94 = vector.broadcast %73 : vector<1x32xf32> to vector<16x32xf32>
    %95 = arith.addf %93, %94 : vector<16x32xf32>
    %96 = arith.truncf %95 : vector<16x32xf32> to vector<16x32xbf16>
    %c0_26 = arith.constant 0 : index
    %c0_27 = arith.constant 0 : index
    %97 = vector.load %arg8[%c0_26, %c0_27] : memref<32x64xbf16, #tpu.memory_space<vmem>>, vector<32x64xbf16>
    %cst_28 = arith.constant dense<0.000000e+00> : vector<16x64xf32>
    %98 = tpu.matmul %96, %97, %cst_28 {dimension_numbers = #tpu.dot_dimension_numbers<[1], [0], [0], [1], [0, 0, 1, 1], [], []>} : vector<16x32xbf16>, vector<32x64xbf16>, vector<16x64xf32> -> vector<16x64xf32>
    %c0_29 = arith.constant 0 : index
    %c0_30 = arith.constant 0 : index
    %99 = vector.load %arg9[%c0_29, %c0_30] : memref<1x64xf32, #tpu.memory_space<vmem>>, vector<1x64xf32>
    %100 = vector.broadcast %99 : vector<1x64xf32> to vector<16x64xf32>
    %101 = arith.addf %98, %100 : vector<16x64xf32>
    %cst_31 = arith.constant 5.000000e-01 : f32
    %102 = vector.broadcast %cst_31 : f32 to vector<16x64xf32>
    %103 = arith.mulf %102, %101 : vector<16x64xf32>
    %104 = arith.mulf %101, %101 : vector<16x64xf32>
    %105 = arith.mulf %104, %101 : vector<16x64xf32>
    %cst_32 = arith.constant 4.471500e-02 : f32
    %106 = vector.broadcast %cst_32 : f32 to vector<16x64xf32>
    %107 = arith.mulf %106, %105 : vector<16x64xf32>
    %108 = arith.addf %101, %107 : vector<16x64xf32>
    %cst_33 = arith.constant 0.797884583 : f32
    %109 = vector.broadcast %cst_33 : f32 to vector<16x64xf32>
    %110 = arith.mulf %109, %108 : vector<16x64xf32>
    %111 = math.tanh %110 : vector<16x64xf32>
    %cst_34 = arith.constant 1.000000e+00 : f32
    %112 = vector.broadcast %cst_34 : f32 to vector<16x64xf32>
    %113 = arith.addf %112, %111 : vector<16x64xf32>
    %114 = arith.mulf %103, %113 : vector<16x64xf32>
    %115 = arith.truncf %114 : vector<16x64xf32> to vector<16x64xbf16>
    %c0_35 = arith.constant 0 : index
    %c0_36 = arith.constant 0 : index
    %116 = vector.load %arg10[%c0_35, %c0_36] : memref<64x32xbf16, #tpu.memory_space<vmem>>, vector<64x32xbf16>
    %cst_37 = arith.constant dense<0.000000e+00> : vector<16x32xf32>
    %117 = tpu.matmul %115, %116, %cst_37 {dimension_numbers = #tpu.dot_dimension_numbers<[1], [0], [0], [1], [0, 0, 1, 1], [], []>} : vector<16x64xbf16>, vector<64x32xbf16>, vector<16x32xf32> -> vector<16x32xf32>
    %c0_38 = arith.constant 0 : index
    %c0_39 = arith.constant 0 : index
    %118 = vector.load %arg11[%c0_38, %c0_39] : memref<1x32xf32, #tpu.memory_space<vmem>>, vector<1x32xf32>
    %119 = vector.broadcast %118 : vector<1x32xf32> to vector<16x32xf32>
    %120 = arith.addf %117, %119 : vector<16x32xf32>
    %121 = arith.addf %95, %120 : vector<16x32xf32>
    %c0_40 = arith.constant 0 : index
    %c0_41 = arith.constant 0 : index
    %122 = vector.load %arg12[%c0_40, %c0_41] : memref<1x32xf32, #tpu.memory_space<vmem>>, vector<1x32xf32>
    %c0_42 = arith.constant 0 : index
    %c0_43 = arith.constant 0 : index
    %123 = vector.load %arg13[%c0_42, %c0_43] : memref<1x32xf32, #tpu.memory_space<vmem>>, vector<1x32xf32>
    %cst_44 = arith.constant dense<0.000000e+00> : vector<16xf32>
    %124 = vector.multi_reduction <add>, %121, %cst_44 [1] : vector<16x32xf32> to vector<16xf32>
    %125 = vector.shape_cast %124 : vector<16xf32> to vector<16x1xf32>
    %cst_45 = arith.constant 3.200000e+01 : f32
    %126 = vector.broadcast %cst_45 : f32 to vector<16x1xf32>
    %127 = arith.divf %125, %126 : vector<16x1xf32>
    %128 = vector.broadcast %127 : vector<16x1xf32> to vector<16x32xf32>
    %129 = arith.subf %121, %128 : vector<16x32xf32>
    %130 = arith.mulf %129, %129 : vector<16x32xf32>
    %cst_46 = arith.constant dense<0.000000e+00> : vector<16xf32>
    %131 = vector.multi_reduction <add>, %130, %cst_46 [1] : vector<16x32xf32> to vector<16xf32>
    %132 = vector.shape_cast %131 : vector<16xf32> to vector<16x1xf32>
    %cst_47 = arith.constant 3.200000e+01 : f32
    %133 = vector.broadcast %cst_47 : f32 to vector<16x1xf32>
    %134 = arith.divf %132, %133 : vector<16x1xf32>
    %135 = vector.broadcast %127 : vector<16x1xf32> to vector<16x32xf32>
    %136 = arith.subf %121, %135 : vector<16x32xf32>
    %cst_48 = arith.constant 9.99999974E-6 : f32
    %137 = vector.broadcast %cst_48 : f32 to vector<16x1xf32>
    %138 = arith.addf %134, %137 : vector<16x1xf32>
    %139 = math.rsqrt %138 : vector<16x1xf32>
    %140 = vector.broadcast %139 : vector<16x1xf32> to vector<16x32xf32>
    %141 = arith.mulf %136, %140 : vector<16x32xf32>
    %142 = vector.broadcast %122 : vector<1x32xf32> to vector<16x32xf32>
    %143 = arith.mulf %141, %142 : vector<16x32xf32>
    %144 = vector.broadcast %123 : vector<1x32xf32> to vector<16x32xf32>
    %145 = arith.addf %143, %144 : vector<16x32xf32>
    %146 = arith.truncf %145 : vector<16x32xf32> to vector<16x32xbf16>
    %c0_49 = arith.constant 0 : index
    %c0_50 = arith.constant 0 : index
    %c0_51 = arith.constant 0 : index
    %147 = vector.load %arg14[%c0_49, %c0_50, %c0_51] : memref<1x16x32xbf16, #tpu.memory_space<vmem>>, vector<1x16x32xbf16>
    %148 = vector.shape_cast %147 : vector<1x16x32xbf16> to vector<16x32xbf16>
    %149 = vector.shape_cast %146 : vector<16x32xbf16> to vector<1x16x32xbf16>
    tpu.vector_store %arg14[%c0_49, %c0_50, %c0_51], %149 {strides = array<i32>} : memref<1x16x32xbf16, #tpu.memory_space<vmem>>, vector<1x16x32xbf16>,
    return
  }
  func.func @transform_0(%arg0: i32) -> (i32, i32, i32) {
    %c0_i32 = arith.constant 0 : i32
    %c0_i32_0 = arith.constant 0 : i32
    %c0_i32_1 = arith.constant 0 : i32
    return %arg0, %c0_i32, %c0_i32_0 : i32, i32, i32
  }
  func.func @transform_1(%arg0: i32) -> (i32, i32) {
    %c0_i32 = arith.constant 0 : i32
    %c0_i32_0 = arith.constant 0 : i32
    %c0_i32_1 = arith.constant 0 : i32
    return %c0_i32, %c0_i32_0 : i32, i32
  }
  func.func @transform_2(%arg0: i32) -> (i32, i32) {
    %c0_i32 = arith.constant 0 : i32
    %c0_i32_0 = arith.constant 0 : i32
    %c0_i32_1 = arith.constant 0 : i32
    return %c0_i32, %c0_i32_0 : i32, i32
  }
  func.func @transform_3(%arg0: i32) -> (i32, i32) {
    %c0_i32 = arith.constant 0 : i32
    %c0_i32_0 = arith.constant 0 : i32
    %c0_i32_1 = arith.constant 0 : i32
    return %c0_i32, %c0_i32_0 : i32, i32
  }
  func.func @transform_4(%arg0: i32) -> (i32, i32) {
    %c0_i32 = arith.constant 0 : i32
    %c0_i32_0 = arith.constant 0 : i32
    %c0_i32_1 = arith.constant 0 : i32
    return %c0_i32, %c0_i32_0 : i32, i32
  }
  func.func @transform_5(%arg0: i32) -> (i32, i32) {
    %c0_i32 = arith.constant 0 : i32
    %c0_i32_0 = arith.constant 0 : i32
    %c0_i32_1 = arith.constant 0 : i32
    return %c0_i32, %c0_i32_0 : i32, i32
  }
  func.func @transform_6(%arg0: i32) -> (i32, i32) {
    %c0_i32 = arith.constant 0 : i32
    %c0_i32_0 = arith.constant 0 : i32
    %c0_i32_1 = arith.constant 0 : i32
    return %c0_i32, %c0_i32_0 : i32, i32
  }
  func.func @transform_7(%arg0: i32) -> (i32, i32) {
    %c0_i32 = arith.constant 0 : i32
    %c0_i32_0 = arith.constant 0 : i32
    %c0_i32_1 = arith.constant 0 : i32
    return %c0_i32, %c0_i32_0 : i32, i32
  }
  func.func @transform_8(%arg0: i32) -> (i32, i32) {
    %c0_i32 = arith.constant 0 : i32
    %c0_i32_0 = arith.constant 0 : i32
    %c0_i32_1 = arith.constant 0 : i32
    return %c0_i32, %c0_i32_0 : i32, i32
  }
  func.func @transform_9(%arg0: i32) -> (i32, i32) {
    %c0_i32 = arith.constant 0 : i32
    %c0_i32_0 = arith.constant 0 : i32
    %c0_i32_1 = arith.constant 0 : i32
    return %c0_i32, %c0_i32_0 : i32, i32
  }
  func.func @transform_10(%arg0: i32) -> (i32, i32) {
    %c0_i32 = arith.constant 0 : i32
    %c0_i32_0 = arith.constant 0 : i32
    %c0_i32_1 = arith.constant 0 : i32
    return %c0_i32, %c0_i32_0 : i32, i32
  }
  func.func @transform_11(%arg0: i32) -> (i32, i32) {
    %c0_i32 = arith.constant 0 : i32
    %c0_i32_0 = arith.constant 0 : i32
    %c0_i32_1 = arith.constant 0 : i32
    return %c0_i32, %c0_i32_0 : i32, i32
  }
  func.func @transform_12(%arg0: i32) -> (i32, i32) {
    %c0_i32 = arith.constant 0 : i32
    %c0_i32_0 = arith.constant 0 : i32
    %c0_i32_1 = arith.constant 0 : i32
    return %c0_i32, %c0_i32_0 : i32, i32
  }
  func.func @transform_13(%arg0: i32) -> (i32, i32, i32) {
    %c0_i32 = arith.constant 0 : i32
    %c0_i32_0 = arith.constant 0 : i32
    %c0_i32_1 = arith.constant 0 : i32
    return %arg0, %c0_i32, %c0_i32_0 : i32, i32, i32
  }
}

module attributes {stable_mosaic.version = 11 : i64} {
  func.func @_encoder_kernel(%arg0: i32, %arg1: memref<1x16x32xbf16, #tpu.memory_space<vmem>>, %arg2: memref<32x96xbf16, #tpu.memory_space<vmem>>, %arg3: memref<1x96xf32, #tpu.memory_space<vmem>>, %arg4: memref<32x32xbf16, #tpu.memory_space<vmem>>, %arg5: memref<1x32xf32, #tpu.memory_space<vmem>>, %arg6: memref<1x32xf32, #tpu.memory_space<vmem>>, %arg7: memref<1x32xf32, #tpu.memory_space<vmem>>, %arg8: memref<32x64xbf16, #tpu.memory_space<vmem>>, %arg9: memref<1x64xf32, #tpu.memory_space<vmem>>, %arg10: memref<64x32xbf16, #tpu.memory_space<vmem>>, %arg11: memref<1x32xf32, #tpu.memory_space<vmem>>, %arg12: memref<1x32xf32, #tpu.memory_space<vmem>>, %arg13: memref<1x32xf32, #tpu.memory_space<vmem>>, %arg14: memref<1x16x32xbf16, #tpu.memory_space<vmem>>) attributes {dimension_semantics = [#tpu.dimension_semantics<parallel>], iteration_bounds = array<i64: 2>, scalar_prefetch = 0 : i64, scratch_operands = 0 : i64, tpu.core_type = #tpu.core_type<tc>, window_params = [{transform_indices = @transform_0, window_bounds = array<i64: 1, 16, 32>}, {pipeline_mode = #tpu.pipeline_mode<synchronous>, transform_indices = @transform_1, window_bounds = array<i64: 32, 96>}, {pipeline_mode = #tpu.pipeline_mode<synchronous>, transform_indices = @transform_2, window_bounds = array<i64: 1, 96>}, {pipeline_mode = #tpu.pipeline_mode<synchronous>, transform_indices = @transform_3, window_bounds = array<i64: 32, 32>}, {pipeline_mode = #tpu.pipeline_mode<synchronous>, transform_indices = @transform_4, window_bounds = array<i64: 1, 32>}, {pipeline_mode = #tpu.pipeline_mode<synchronous>, transform_indices = @transform_5, window_bounds = array<i64: 1, 32>}, {pipeline_mode = #tpu.pipeline_mode<synchronous>, transform_indices = @transform_6, window_bounds = array<i64: 1, 32>}, {pipeline_mode = #tpu.pipeline_mode<synchronous>, transform_indices = @transform_7, window_bounds = array<i64: 32, 64>}, {pipeline_mode = #tpu.pipeline_mode<synchronous>, transform_indices = @transform_8, window_bounds = array<i64: 1, 64>}, {pipeline_mode = #tpu.pipeline_mode<synchronous>, transform_indices = @transform_9, window_bounds = array<i64: 64, 32>}, {pipeline_mode = #tpu.pipeline_mode<synchronous>, transform_indices = @transform_10, window_bounds = array<i64: 1, 32>}, {pipeline_mode = #tpu.pipeline_mode<synchronous>, transform_indices = @transform_11, window_bounds = array<i64: 1, 32>}, {pipeline_mode = #tpu.pipeline_mode<synchronous>, transform_indices = @transform_12, window_bounds = array<i64: 1, 32>}, {transform_indices = @transform_13, window_bounds = array<i64: 1, 16, 32>}]} {
    %c0 = arith.constant 0 : index
    %c0_0 = arith.constant 0 : index
    %c0_1 = arith.constant 0 : index
    %0 = vector.load %arg1[%c0, %c0_0, %c0_1] : memref<1x16x32xbf16, #tpu.memory_space<vmem>>, vector<1x16x32xbf16>
    %1 = vector.shape_cast %0 : vector<1x16x32xbf16> to vector<16x32xbf16>
    %c0_2 = arith.constant 0 : index
    %c0_3 = arith.constant 0 : index
    %2 = vector.load %arg2[%c0_2, %c0_3] : memref<32x96xbf16, #tpu.memory_space<vmem>>, vector<32x96xbf16>
    %cst = arith.constant dense<0.000000e+00> : vector<16x96xf32>
    %3 = tpu.matmul %1, %2, %cst {dimension_numbers = #tpu.dot_dimension_numbers<[1], [0], [0], [1], [0, 0, 1, 1], [], []>} : vector<16x32xbf16>, vector<32x96xbf16>, vector<16x96xf32> -> vector<16x96xf32>
    %c0_4 = arith.constant 0 : index
    %c0_5 = arith.constant 0 : index
    %4 = vector.load %arg3[%c0_4, %c0_5] : memref<1x96xf32, #tpu.memory_space<vmem>>, vector<1x96xf32>
    %5 = vector.broadcast %4 : vector<1x96xf32> to vector<16x96xf32>
    %6 = arith.addf %3, %5 : vector<16x96xf32>
    %7 = arith.truncf %6 : vector<16x96xf32> to vector<16x96xbf16>
    %8 = vector.extract_strided_slice %7 {offsets = [0, 0], sizes = [16, 8], strides = [1, 1]} : vector<16x96xbf16> to vector<16x8xbf16>
    %9 = vector.extract_strided_slice %7 {offsets = [0, 8], sizes = [16, 8], strides = [1, 1]} : vector<16x96xbf16> to vector<16x8xbf16>
    %10 = vector.extract_strided_slice %7 {offsets = [0, 16], sizes = [16, 8], strides = [1, 1]} : vector<16x96xbf16> to vector<16x8xbf16>
    %11 = vector.extract_strided_slice %7 {offsets = [0, 24], sizes = [16, 8], strides = [1, 1]} : vector<16x96xbf16> to vector<16x8xbf16>
    %12 = vector.shape_cast %8 : vector<16x8xbf16> to vector<1x16x8xbf16>
    %13 = vector.shape_cast %9 : vector<16x8xbf16> to vector<1x16x8xbf16>
    %14 = vector.shape_cast %10 : vector<16x8xbf16> to vector<1x16x8xbf16>
    %15 = vector.shape_cast %11 : vector<16x8xbf16> to vector<1x16x8xbf16>
    %16 = tpu.concatenate %12, %13, %14, %15 in 0 : vector<1x16x8xbf16>, vector<1x16x8xbf16>, vector<1x16x8xbf16>, vector<1x16x8xbf16> -> vector<4x16x8xbf16>
    %17 = vector.extract_strided_slice %7 {offsets = [0, 32], sizes = [16, 8], strides = [1, 1]} : vector<16x96xbf16> to vector<16x8xbf16>
    %18 = vector.extract_strided_slice %7 {offsets = [0, 40], sizes = [16, 8], strides = [1, 1]} : vector<16x96xbf16> to vector<16x8xbf16>
    %19 = vector.extract_strided_slice %7 {offsets = [0, 48], sizes = [16, 8], strides = [1, 1]} : vector<16x96xbf16> to vector<16x8xbf16>
    %20 = vector.extract_strided_slice %7 {offsets = [0, 56], sizes = [16, 8], strides = [1, 1]} : vector<16x96xbf16> to vector<16x8xbf16>
    %21 = vector.shape_cast %17 : vector<16x8xbf16> to vector<1x16x8xbf16>
    %22 = vector.shape_cast %18 : vector<16x8xbf16> to vector<1x16x8xbf16>
    %23 = vector.shape_cast %19 : vector<16x8xbf16> to vector<1x16x8xbf16>
    %24 = vector.shape_cast %20 : vector<16x8xbf16> to vector<1x16x8xbf16>
    %25 = tpu.concatenate %21, %22, %23, %24 in 0 : vector<1x16x8xbf16>, vector<1x16x8xbf16>, vector<1x16x8xbf16>, vector<1x16x8xbf16> -> vector<4x16x8xbf16>
    %26 = vector.extract_strided_slice %7 {offsets = [0, 64], sizes = [16, 8], strides = [1, 1]} : vector<16x96xbf16> to vector<16x8xbf16>
    %27 = vector.extract_strided_slice %7 {offsets = [0, 72], sizes = [16, 8], strides = [1, 1]} : vector<16x96xbf16> to vector<16x8xbf16>
    %28 = vector.extract_strided_slice %7 {offsets = [0, 80], sizes = [16, 8], strides = [1, 1]} : vector<16x96xbf16> to vector<16x8xbf16>
    %29 = vector.extract_strided_slice %7 {offsets = [0, 88], sizes = [16, 8], strides = [1, 1]} : vector<16x96xbf16> to vector<16x8xbf16>
    %30 = vector.shape_cast %26 : vector<16x8xbf16> to vector<1x16x8xbf16>
    %31 = vector.shape_cast %27 : vector<16x8xbf16> to vector<1x16x8xbf16>
    %32 = vector.shape_cast %28 : vector<16x8xbf16> to vector<1x16x8xbf16>
    %33 = vector.shape_cast %29 : vector<16x8xbf16> to vector<1x16x8xbf16>
    %34 = tpu.concatenate %30, %31, %32, %33 in 0 : vector<1x16x8xbf16>, vector<1x16x8xbf16>, vector<1x16x8xbf16>, vector<1x16x8xbf16> -> vector<4x16x8xbf16>
    "tpu.trace_start"() <{level = 10 : i32, message = "hqd,hkd->hqk"}> : () -> ()
    %cst_6 = arith.constant dense<0.000000e+00> : vector<4x16x16xf32>
    %35 = tpu.matmul %16, %25, %cst_6 {dimension_numbers = #tpu.dot_dimension_numbers<[2], [2], [1], [1], [0, 0, 0, 1, 1, 1], [0], [0]>} : vector<4x16x8xbf16>, vector<4x16x8xbf16>, vector<4x16x16xf32> -> vector<4x16x16xf32>
    "tpu.trace_stop"() : () -> ()
    %cst_7 = arith.constant 0.353553385 : f32
    %36 = vector.broadcast %cst_7 : f32 to vector<4x16x16xf32>
    %37 = arith.mulf %35, %36 : vector<4x16x16xf32>
    %38 = tpu.iota {dimensions = array<i32: 2>} : vector<4x16x16xi32>
    %c9_i32 = arith.constant 9 : i32
    %39 = vector.broadcast %c9_i32 : i32 to vector<4x16x16xi32>
    %40 = arith.cmpi slt, %38, %39 : vector<4x16x16xi32>
    %cst_8 = arith.constant -1.000000e+30 : f32
    %41 = vector.broadcast %cst_8 : f32 to vector<4x16x16xf32>
    %42 = arith.select %40, %37, %41 : vector<4x16x16xi1>, vector<4x16x16xf32>
    %cst_9 = arith.constant dense<0xFF800000> : vector<4x16xf32>
    %43 = vector.multi_reduction <maximumf>, %42, %cst_9 [2] : vector<4x16x16xf32> to vector<4x16xf32>
    %44 = vector.shape_cast %43 : vector<4x16xf32> to vector<4x16x1xf32>
    %45 = vector.broadcast %44 : vector<4x16x1xf32> to vector<4x16x16xf32>
    %46 = arith.subf %42, %45 : vector<4x16x16xf32>
    %47 = math.exp %46 : vector<4x16x16xf32>
    %cst_10 = arith.constant dense<0.000000e+00> : vector<4x16xf32>
    %48 = vector.multi_reduction <add>, %47, %cst_10 [2] : vector<4x16x16xf32> to vector<4x16xf32>
    %49 = vector.shape_cast %48 : vector<4x16xf32> to vector<4x16x1xf32>
    %50 = tpu.reciprocal %49 {approx = true} : vector<4x16x1xf32> -> vector<4x16x1xf32>
    %51 = vector.broadcast %50 : vector<4x16x1xf32> to vector<4x16x16xf32>
    %52 = arith.mulf %47, %51 : vector<4x16x16xf32>
    %53 = arith.truncf %52 : vector<4x16x16xf32> to vector<4x16x16xbf16>
    "tpu.trace_start"() <{level = 10 : i32, message = "hqk,hkd->hqd"}> : () -> ()
    %cst_11 = arith.constant dense<0.000000e+00> : vector<4x16x8xf32>
    %54 = tpu.matmul %53, %34, %cst_11 {dimension_numbers = #tpu.dot_dimension_numbers<[2], [1], [1], [2], [0, 0, 0, 1, 1, 2], [0], [0]>} : vector<4x16x16xbf16>, vector<4x16x8xbf16>, vector<4x16x8xf32> -> vector<4x16x8xf32>
    "tpu.trace_stop"() : () -> ()
    %55 = vector.extract_strided_slice %54 {offsets = [0, 0, 0], sizes = [1, 16, 8], strides = [1, 1, 1]} : vector<4x16x8xf32> to vector<1x16x8xf32>
    %56 = vector.shape_cast %55 : vector<1x16x8xf32> to vector<16x8xf32>
    %57 = vector.extract_strided_slice %54 {offsets = [1, 0, 0], sizes = [1, 16, 8], strides = [1, 1, 1]} : vector<4x16x8xf32> to vector<1x16x8xf32>
    %58 = vector.shape_cast %57 : vector<1x16x8xf32> to vector<16x8xf32>
    %59 = vector.extract_strided_slice %54 {offsets = [2, 0, 0], sizes = [1, 16, 8], strides = [1, 1, 1]} : vector<4x16x8xf32> to vector<1x16x8xf32>
    %60 = vector.shape_cast %59 : vector<1x16x8xf32> to vector<16x8xf32>
    %61 = vector.extract_strided_slice %54 {offsets = [3, 0, 0], sizes = [1, 16, 8], strides = [1, 1, 1]} : vector<4x16x8xf32> to vector<1x16x8xf32>
    %62 = vector.shape_cast %61 : vector<1x16x8xf32> to vector<16x8xf32>
    %63 = tpu.concatenate %56, %58, %60, %62 in 1 : vector<16x8xf32>, vector<16x8xf32>, vector<16x8xf32>, vector<16x8xf32> -> vector<16x32xf32>
    %64 = arith.truncf %63 : vector<16x32xf32> to vector<16x32xbf16>
    %c0_12 = arith.constant 0 : index
    %c0_13 = arith.constant 0 : index
    %65 = vector.load %arg4[%c0_12, %c0_13] : memref<32x32xbf16, #tpu.memory_space<vmem>>, vector<32x32xbf16>
    %cst_14 = arith.constant dense<0.000000e+00> : vector<16x32xf32>
    %66 = tpu.matmul %64, %65, %cst_14 {dimension_numbers = #tpu.dot_dimension_numbers<[1], [0], [0], [1], [0, 0, 1, 1], [], []>} : vector<16x32xbf16>, vector<32x32xbf16>, vector<16x32xf32> -> vector<16x32xf32>
    %c0_15 = arith.constant 0 : index
    %c0_16 = arith.constant 0 : index
    %67 = vector.load %arg5[%c0_15, %c0_16] : memref<1x32xf32, #tpu.memory_space<vmem>>, vector<1x32xf32>
    %68 = vector.broadcast %67 : vector<1x32xf32> to vector<16x32xf32>
    %69 = arith.addf %66, %68 : vector<16x32xf32>
    %70 = arith.extf %1 : vector<16x32xbf16> to vector<16x32xf32>
    %71 = arith.addf %70, %69 : vector<16x32xf32>
    %c0_17 = arith.constant 0 : index
    %c0_18 = arith.constant 0 : index
    %72 = vector.load %arg6[%c0_17, %c0_18] : memref<1x32xf32, #tpu.memory_space<vmem>>, vector<1x32xf32>
    %c0_19 = arith.constant 0 : index
    %c0_20 = arith.constant 0 : index
    %73 = vector.load %arg7[%c0_19, %c0_20] : memref<1x32xf32, #tpu.memory_space<vmem>>, vector<1x32xf32>
    %cst_21 = arith.constant dense<0.000000e+00> : vector<16xf32>
    %74 = vector.multi_reduction <add>, %71, %cst_21 [1] : vector<16x32xf32> to vector<16xf32>
    %75 = vector.shape_cast %74 : vector<16xf32> to vector<16x1xf32>
    %cst_22 = arith.constant 3.200000e+01 : f32
    %76 = vector.broadcast %cst_22 : f32 to vector<16x1xf32>
    %77 = arith.divf %75, %76 : vector<16x1xf32>
    %78 = vector.broadcast %77 : vector<16x1xf32> to vector<16x32xf32>
    %79 = arith.subf %71, %78 : vector<16x32xf32>
    %80 = arith.mulf %79, %79 : vector<16x32xf32>
    %cst_23 = arith.constant dense<0.000000e+00> : vector<16xf32>
    %81 = vector.multi_reduction <add>, %80, %cst_23 [1] : vector<16x32xf32> to vector<16xf32>
    %82 = vector.shape_cast %81 : vector<16xf32> to vector<16x1xf32>
    %cst_24 = arith.constant 3.200000e+01 : f32
    %83 = vector.broadcast %cst_24 : f32 to vector<16x1xf32>
    %84 = arith.divf %82, %83 : vector<16x1xf32>
    %85 = vector.broadcast %77 : vector<16x1xf32> to vector<16x32xf32>
    %86 = arith.subf %71, %85 : vector<16x32xf32>
    %cst_25 = arith.constant 9.99999974E-6 : f32
    %87 = vector.broadcast %cst_25 : f32 to vector<16x1xf32>
    %88 = arith.addf %84, %87 : vector<16x1xf32>
    %89 = math.rsqrt %88 : vector<16x1xf32>
    %90 = vector.broadcast %89 : vector<16x1xf32> to vector<16x32xf32>
    %91 = arith.mulf %86, %90 : vector<16x32xf32>
    %92 = vector.broadcast %72 : vector<1x32xf32> to vector<16x32xf32>
    %93 = arith.mulf %91, %92 : vector<16x32xf32>
    %94 = vector.broadcast %73 : vector<1x32xf32> to vector<16x32xf32>
    %95 = arith.addf %93, %94 : vector<16x32xf32>
    %96 = arith.truncf %95 : vector<16x32xf32> to vector<16x32xbf16>
    %c0_26 = arith.constant 0 : index
    %c0_27 = arith.constant 0 : index
    %97 = vector.load %arg8[%c0_26, %c0_27] : memref<32x64xbf16, #tpu.memory_space<vmem>>, vector<32x64xbf16>
    %cst_28 = arith.constant dense<0.000000e+00> : vector<16x64xf32>
    %98 = tpu.matmul %96, %97, %cst_28 {dimension_numbers = #tpu.dot_dimension_numbers<[1], [0], [0], [1], [0, 0, 1, 1], [], []>} : vector<16x32xbf16>, vector<32x64xbf16>, vector<16x64xf32> -> vector<16x64xf32>
    %c0_29 = arith.constant 0 : index
    %c0_30 = arith.constant 0 : index
    %99 = vector.load %arg9[%c0_29, %c0_30] : memref<1x64xf32, #tpu.memory_space<vmem>>, vector<1x64xf32>
    %100 = vector.broadcast %99 : vector<1x64xf32> to vector<16x64xf32>
    %101 = arith.addf %98, %100 : vector<16x64xf32>
    %cst_31 = arith.constant 5.000000e-01 : f32
    %102 = vector.broadcast %cst_31 : f32 to vector<16x64xf32>
    %103 = arith.mulf %102, %101 : vector<16x64xf32>
    %104 = arith.mulf %101, %101 : vector<16x64xf32>
    %105 = arith.mulf %104, %101 : vector<16x64xf32>
    %cst_32 = arith.constant 4.471500e-02 : f32
    %106 = vector.broadcast %cst_32 : f32 to vector<16x64xf32>
    %107 = arith.mulf %106, %105 : vector<16x64xf32>
    %108 = arith.addf %101, %107 : vector<16x64xf32>
    %cst_33 = arith.constant 0.797884583 : f32
    %109 = vector.broadcast %cst_33 : f32 to vector<16x64xf32>
    %110 = arith.mulf %109, %108 : vector<16x64xf32>
    %111 = math.tanh %110 : vector<16x64xf32>
    %cst_34 = arith.constant 1.000000e+00 : f32
    %112 = vector.broadcast %cst_34 : f32 to vector<16x64xf32>
    %113 = arith.addf %112, %111 : vector<16x64xf32>
    %114 = arith.mulf %103, %113 : vector<16x64xf32>
    %115 = arith.truncf %114 : vector<16x64xf32> to vector<16x64xbf16>
    %c0_35 = arith.constant 0 : index
    %c0_36 = arith.constant 0 : index
    %116 = vector.load %arg10[%c0_35, %c0_36] : memref<64x32xbf16, #tpu.memory_space<vmem>>, vector<64x32xbf16>
    %cst_37 = arith.constant dense<0.000000e+00> : vector<16x32xf32>
    %117 = tpu.matmul %115, %116, %cst_37 {dimension_numbers = #tpu.dot_dimension_numbers<[1], [0], [0], [1], [0, 0, 1, 1], [], []>} : vector<16x64xbf16>, vector<64x32xbf16>, vector<16x32xf32> -> vector<16x32xf32>
    %c0_38 = arith.constant 0 : index
    %c0_39 = arith.constant 0 : index
    %118 = vector.load %arg11[%c0_38, %c0_39] : memref<1x32xf32, #tpu.memory_space<vmem>>, vector<1x32xf32>
    %119 = vector.broadcast %118 : vector<1x32xf32> to vector<16x32xf32>
    %120 = arith.addf %117, %119 : vector<16x32xf32>
    %121 = arith.addf %95, %120 : vector<16x32xf32>
    %c0_40 = arith.constant 0 : index
    %c0_41 = arith.constant 0 : index
    %122 = vector.load %arg12[%c0_40, %c0_41] : memref<1x32xf32, #tpu.memory_space<vmem>>, vector<1x32xf32>
    %c0_42 = arith.constant 0 : index
    %c0_43 = arith.constant 0 : index
    %123 = vector.load %arg13[%c0_42, %c0_43] : memref<1x32xf32, #tpu.memory_space<vmem>>, vector<1x32xf32>
    %cst_44 = arith.constant dense<0.000000e+00> : vector<16xf32>
    %124 = vector.multi_reduction <add>, %121, %cst_44 [1] : vector<16x32xf32> to vector<16xf32>
    %125 = vector.shape_cast %124 : vector<16xf32> to vector<16x1xf32>
    %cst_45 = arith.constant 3.200000e+01 : f32
    %126 = vector.broadcast %cst_45 : f32 to vector<16x1xf32>
    %127 = arith.divf %125, %126 : vector<16x1xf32>
    %128 = vector.broadcast %127 : vector<16x1xf32> to vector<16x32xf32>
    %129 = arith.subf %121, %128 : vector<16x32xf32>
    %130 = arith.mulf %129, %129 : vector<16x32xf32>
    %cst_46 = arith.constant dense<0.000000e+00> : vector<16xf32>
    %131 = vector.multi_reduction <add>, %130, %cst_46 [1] : vector<16x32xf32> to vector<16xf32>
    %132 = vector.shape_cast %131 : vector<16xf32> to vector<16x1xf32>
    %cst_47 = arith.constant 3.200000e+01 : f32
    %133 = vector.broadcast %cst_47 : f32 to vector<16x1xf32>
    %134 = arith.divf %132, %133 : vector<16x1xf32>
    %135 = vector.broadcast %127 : vector<16x1xf32> to vector<16x32xf32>
    %136 = arith.subf %121, %135 : vector<16x32xf32>
    %cst_48 = arith.constant 9.99999974E-6 : f32
    %137 = vector.broadcast %cst_48 : f32 to vector<16x1xf32>
    %138 = arith.addf %134, %137 : vector<16x1xf32>
    %139 = math.rsqrt %138 : vector<16x1xf32>
    %140 = vector.broadcast %139 : vector<16x1xf32> to vector<16x32xf32>
    %141 = arith.mulf %136, %140 : vector<16x32xf32>
    %142 = vector.broadcast %122 : vector<1x32xf32> to vector<16x32xf32>
    %143 = arith.mulf %141, %142 : vector<16x32xf32>
    %144 = vector.broadcast %123 : vector<1x32xf32> to vector<16x32xf32>
    %145 = arith.addf %143, %144 : vector<16x32xf32>
    %146 = arith.truncf %145 : vector<16x32xf32> to vector<16x32xbf16>
    %c0_49 = arith.constant 0 : index
    %c0_50 = arith.constant 0 : index
    %c0_51 = arith.constant 0 : index
    %147 = vector.load %arg14[%c0_49, %c0_50, %c0_51] : memref<1x16x32xbf16, #tpu.memory_space<vmem>>, vector<1x16x32xbf16>
    %148 = vector.shape_cast %147 : vector<1x16x32xbf16> to vector<16x32xbf16>
    %149 = vector.shape_cast %146 : vector<16x32xbf16> to vector<1x16x32xbf16>
    tpu.vector_store %arg14[%c0_49, %c0_50, %c0_51], %149 {strides = array<i32>} : memref<1x16x32xbf16, #tpu.memory_space<vmem>>, vector<1x16x32xbf16>,
    return
  }
  func.func @transform_0(%arg0: i32) -> (i32, i32, i32) {
    %c0_i32 = arith.constant 0 : i32
    %c0_i32_0 = arith.constant 0 : i32
    %c0_i32_1 = arith.constant 0 : i32
    return %arg0, %c0_i32, %c0_i32_0 : i32, i32, i32
  }
  func.func @transform_1(%arg0: i32) -> (i32, i32) {
    %c0_i32 = arith.constant 0 : i32
    %c0_i32_0 = arith.constant 0 : i32
    %c0_i32_1 = arith.constant 0 : i32
    return %c0_i32, %c0_i32_0 : i32, i32
  }
  func.func @transform_2(%arg0: i32) -> (i32, i32) {
    %c0_i32 = arith.constant 0 : i32
    %c0_i32_0 = arith.constant 0 : i32
    %c0_i32_1 = arith.constant 0 : i32
    return %c0_i32, %c0_i32_0 : i32, i32
  }
  func.func @transform_3(%arg0: i32) -> (i32, i32) {
    %c0_i32 = arith.constant 0 : i32
    %c0_i32_0 = arith.constant 0 : i32
    %c0_i32_1 = arith.constant 0 : i32
    return %c0_i32, %c0_i32_0 : i32, i32
  }
  func.func @transform_4(%arg0: i32) -> (i32, i32) {
    %c0_i32 = arith.constant 0 : i32
    %c0_i32_0 = arith.constant 0 : i32
    %c0_i32_1 = arith.constant 0 : i32
    return %c0_i32, %c0_i32_0 : i32, i32
  }
  func.func @transform_5(%arg0: i32) -> (i32, i32) {
    %c0_i32 = arith.constant 0 : i32
    %c0_i32_0 = arith.constant 0 : i32
    %c0_i32_1 = arith.constant 0 : i32
    return %c0_i32, %c0_i32_0 : i32, i32
  }
  func.func @transform_6(%arg0: i32) -> (i32, i32) {
    %c0_i32 = arith.constant 0 : i32
    %c0_i32_0 = arith.constant 0 : i32
    %c0_i32_1 = arith.constant 0 : i32
    return %c0_i32, %c0_i32_0 : i32, i32
  }
  func.func @transform_7(%arg0: i32) -> (i32, i32) {
    %c0_i32 = arith.constant 0 : i32
    %c0_i32_0 = arith.constant 0 : i32
    %c0_i32_1 = arith.constant 0 : i32
    return %c0_i32, %c0_i32_0 : i32, i32
  }
  func.func @transform_8(%arg0: i32) -> (i32, i32) {
    %c0_i32 = arith.constant 0 : i32
    %c0_i32_0 = arith.constant 0 : i32
    %c0_i32_1 = arith.constant 0 : i32
    return %c0_i32, %c0_i32_0 : i32, i32
  }
  func.func @transform_9(%arg0: i32) -> (i32, i32) {
    %c0_i32 = arith.constant 0 : i32
    %c0_i32_0 = arith.constant 0 : i32
    %c0_i32_1 = arith.constant 0 : i32
    return %c0_i32, %c0_i32_0 : i32, i32
  }
  func.func @transform_10(%arg0: i32) -> (i32, i32) {
    %c0_i32 = arith.constant 0 : i32
    %c0_i32_0 = arith.constant 0 : i32
    %c0_i32_1 = arith.constant 0 : i32
    return %c0_i32, %c0_i32_0 : i32, i32
  }
  func.func @transform_11(%arg0: i32) -> (i32, i32) {
    %c0_i32 = arith.constant 0 : i32
    %c0_i32_0 = arith.constant 0 : i32
    %c0_i32_1 = arith.constant 0 : i32
    return %c0_i32, %c0_i32_0 : i32, i32
  }
  func.func @transform_12(%arg0: i32) -> (i32, i32) {
    %c0_i32 = arith.constant 0 : i32
    %c0_i32_0 = arith.constant 0 : i32
    %c0_i32_1 = arith.constant 0 : i32
    return %c0_i32, %c0_i32_0 : i32, i32
  }
  func.func @transform_13(%arg0: i32) -> (i32, i32, i32) {
    %c0_i32 = arith.constant 0 : i32
    %c0_i32_0 = arith.constant 0 : i32
    %c0_i32_1 = arith.constant 0 : i32
    return %arg0, %c0_i32, %c0_i32_0 : i32, i32, i32
  }
}

</mosaic_0001>

<llo_original>
// kernel: _lambda_.3
$region0: #{_lambda_.3}
  #allocation0 [shape = 'u32[]', space=smem, size = 0x4, offset = 0x4, fixed_abs, tag = 'smem constant byte address 0x4 - core index']
  #allocation1 [shape = 'u32[144,128]{1,0:T(1,128)}', space=vmem, size = 0x12000, scoped, tag = 'internal scratch']
  %s0 = inlined_call_operand.vmem [shape: bf16[2,8,16], index: 0, kind: input, shape index: {}]
  %s1 = inlined_call_operand.vmem [shape: bf16[16,32], index: 1, kind: input, shape index: {}]
  %s2 = inlined_call_operand.vmem [shape: f32[1,32], index: 2, kind: input, shape index: {}]
  %s3 = inlined_call_operand.vmem [shape: f32[8,32], index: 3, kind: input, shape index: {}]
  %s4 = inlined_call_operand.vmem [shape: f32[1,32], index: 4, kind: input, shape index: {}]
  %s5 = inlined_call_operand.vmem [shape: bf16[2,16,32], index: 5, kind: output, shape index: {}]
  %s6 = sld [smem:[#allocation0]]
  $region53: #{_lambda_.3} parent=0
    _
  %s8 = ssub.s32 1, %s6
  %s9 = scalar_select 0, %s8, %s6
  loop: start=0, step=1, limit=4
  $region2: #{_lambda_.3} parent=0 // loop_pre_header
    _
  $region3: #{_lambda_.3} parent=0 // loop_header
    %s11 = sphi 0, %s15
    %p12 = scmp.ge.s32.totalorder %s11, 4
    %s21 = sphi 0, %s23
    %s24 = sphi 0, %s21
    %s25 = sphi 0, %s24
    %s41 = sphi 0, %s25
    %s45 = sphi 0, %s45
    %s47 = sphi 0, %s45
    %s48 = sphi 0, %s47
    %s62 = sphi 0, %s48
    %s66 = sphi 0, %s66
    %s68 = sphi 0, %s66
    %s69 = sphi 0, %s68
    %s83 = sphi 0, %s69
    %s87 = sphi 0, %s87
    %s89 = sphi 0, %s87
    %s90 = sphi 0, %s89
    %s104 = sphi 0, %s90
    %s108 = sphi 0, %s108
    %s110 = sphi 0, %s108
    %s111 = sphi 0, %s110
    %s125 = sphi 0, %s111
    %s131 = sphi 0, %s133
    %s134 = sphi 0, %s131
    %s135 = sphi 0, %s134
    %s151 = sphi 0, %s135
  $region4: #{_lambda_.3} parent=0 // loop_header_branch
    %14 = sbr.rel (%p12) target = $region8
  $region5: #{_lambda_.3} parent=0 // loop_body
    %s16 = ssub.s32 %s11, 1
    %s17 = ssub.s32 %s11, 2
    %s18 = sadd.s32 %s11, 1
    %s19 = ssub.s32 %s11, %s18
    %p20 = scmp.eq.s32.totalorder %s19, 0
    %s22 = sadd.s32 %s21, 1
    %s23 = scalar_select %p20, %s21, %s22
    %p26 = pneg %p20
    %p27 = scmp.eq.s32.totalorder %s11, 1
    %p28 = por %p26, %p27
    %p29 = scmp.ne.s32.totalorder %s21, %s24
    %p30 = scmp.eq.s32.totalorder %s11, 0
    %p31 = por %p29, %p30
    %p32 = scmp.ne.s32.totalorder %s21, %s24
    %p33 = scmp.eq.s32.totalorder %s16, 1
    %p34 = por %p32, %p33
    %p35 = scmp.ne.s32.totalorder %s24, %s25
    %p36 = scmp.eq.s32.totalorder %s16, 0
    %p37 = por %p35, %p36
    %p38 = scmp.ne.s32.totalorder %s24, %s25
    %p39 = scmp.eq.s32.totalorder %s17, 1
    %p40 = por %p38, %p39
    %p42 = scmp.ne.s32.totalorder %s25, %s41
    %p43 = scmp.eq.s32.totalorder %s17, 0
    %p44 = por %p42, %p43
    %s46 = sadd.s32 %s45, 1
    %p49 = scmp.eq.s32.totalorder %s11, 1
    %p50 = scmp.ne.s32.totalorder %s45, %s47
    %p51 = scmp.eq.s32.totalorder %s11, 0
    %p52 = por %p50, %p51
    %p53 = scmp.ne.s32.totalorder %s45, %s47
    %p54 = scmp.eq.s32.totalorder %s16, 1
    %p55 = por %p53, %p54
    %p56 = scmp.ne.s32.totalorder %s47, %s48
    %p57 = scmp.eq.s32.totalorder %s16, 0
    %p58 = por %p56, %p57
    %p59 = scmp.ne.s32.totalorder %s47, %s48
    %p60 = scmp.eq.s32.totalorder %s17, 1
    %p61 = por %p59, %p60
    %p63 = scmp.ne.s32.totalorder %s48, %s62
    %p64 = scmp.eq.s32.totalorder %s17, 0
    %p65 = por %p63, %p64
    %s67 = sadd.s32 %s66, 1
    %p70 = scmp.eq.s32.totalorder %s11, 1
    %p71 = scmp.ne.s32.totalorder %s66, %s68
    %p72 = scmp.eq.s32.totalorder %s11, 0
    %p73 = por %p71, %p72
    %p74 = scmp.ne.s32.totalorder %s66, %s68
    %p75 = scmp.eq.s32.totalorder %s16, 1
    %p76 = por %p74, %p75
    %p77 = scmp.ne.s32.totalorder %s68, %s69
    %p78 = scmp.eq.s32.totalorder %s16, 0
    %p79 = por %p77, %p78
    %p80 = scmp.ne.s32.totalorder %s68, %s69
    %p81 = scmp.eq.s32.totalorder %s17, 1
    %p82 = por %p80, %p81
    %p84 = scmp.ne.s32.totalorder %s69, %s83
    %p85 = scmp.eq.s32.totalorder %s17, 0
    %p86 = por %p84, %p85
    %s88 = sadd.s32 %s87, 1
    %p91 = scmp.eq.s32.totalorder %s11, 1
    %p92 = scmp.ne.s32.totalorder %s87, %s89
    %p93 = scmp.eq.s32.totalorder %s11, 0
    %p94 = por %p92, %p93
    %p95 = scmp.ne.s32.totalorder %s87, %s89
    %p96 = scmp.eq.s32.totalorder %s16, 1
    %p97 = por %p95, %p96
    %p98 = scmp.ne.s32.totalorder %s89, %s90
    %p99 = scmp.eq.s32.totalorder %s16, 0
    %p100 = por %p98, %p99
    %p101 = scmp.ne.s32.totalorder %s89, %s90
    %p102 = scmp.eq.s32.totalorder %s17, 1
    %p103 = por %p101, %p102
    %p105 = scmp.ne.s32.totalorder %s90, %s104
    %p106 = scmp.eq.s32.totalorder %s17, 0
    %p107 = por %p105, %p106
    %s109 = sadd.s32 %s108, 1
    %p112 = scmp.eq.s32.totalorder %s11, 1
    %p113 = scmp.ne.s32.totalorder %s108, %s110
    %p114 = scmp.eq.s32.totalorder %s11, 0
    %p115 = por %p113, %p114
    %p116 = scmp.ne.s32.totalorder %s108, %s110
    %p117 = scmp.eq.s32.totalorder %s16, 1
    %p118 = por %p116, %p117
    %p119 = scmp.ne.s32.totalorder %s110, %s111
    %p120 = scmp.eq.s32.totalorder %s16, 0
    %p121 = por %p119, %p120
    %p122 = scmp.ne.s32.totalorder %s110, %s111
    %p123 = scmp.eq.s32.totalorder %s17, 1
    %p124 = por %p122, %p123
    %p126 = scmp.ne.s32.totalorder %s111, %s125
    %p127 = scmp.eq.s32.totalorder %s17, 0
    %p128 = por %p126, %p127
    %s129 = ssub.s32 %s11, %s18
    %p130 = scmp.eq.s32.totalorder %s129, 0
    %s132 = sadd.s32 %s131, 1
    %s133 = scalar_select %p130, %s131, %s132
    %p136 = pneg %p130
    %p137 = scmp.eq.s32.totalorder %s11, 1
    %p138 = por %p136, %p137
    %p139 = scmp.ne.s32.totalorder %s131, %s134
    %p140 = scmp.eq.s32.totalorder %s11, 0
    %p141 = por %p139, %p140
    %p142 = scmp.ne.s32.totalorder %s131, %s134
    %p143 = scmp.eq.s32.totalorder %s16, 1
    %p144 = por %p142, %p143
    %p145 = scmp.ne.s32.totalorder %s134, %s135
    %p146 = scmp.eq.s32.totalorder %s16, 0
    %p147 = por %p145, %p146
    %p148 = scmp.ne.s32.totalorder %s134, %s135
    %p149 = scmp.eq.s32.totalorder %s17, 1
    %p150 = por %p148, %p149
    %p152 = scmp.ne.s32.totalorder %s135, %s151
    %p153 = scmp.eq.s32.totalorder %s17, 0
    %p154 = por %p152, %p153
    %p155 = scmp.le.s32.totalorder 1, %s11
    %p156 = scmp.lt.s32.totalorder %s11, 3
    %p157 = pnand %p155, %p156
    %p158 = pneg %p157
    // Predicated region
    $region9: #{_lambda_.3} parent=5 // pred_check
      _
    $region10: #{_lambda_.3} parent=5 // pred_check_branch
      %160 = sbr.rel (%p157) target = $region12
    $region11: #{_lambda_.3} parent=5 // pred_region
      %s161 = ssub.s32 %s11, 1
      // Predicated region
      $region13: #{_lambda_.3} parent=11 // pred_check
        %p162 = pneg %p58
      $region14: #{_lambda_.3} parent=11 // pred_check_branch
        %164 = sbr.rel (%p162) target = $region16
      $region15: #{_lambda_.3} parent=11 // pred_region
        _
      $region16: #{_lambda_.3} parent=11 // pred_fallthru
        _
      // Predicated region
      $region17: #{_lambda_.3} parent=11 // pred_check
        %p165 = pneg %p79
      $region18: #{_lambda_.3} parent=11 // pred_check_branch
        %167 = sbr.rel (%p165) target = $region20
      $region19: #{_lambda_.3} parent=11 // pred_region
        _
      $region20: #{_lambda_.3} parent=11 // pred_fallthru
        _
      // Predicated region
      $region21: #{_lambda_.3} parent=11 // pred_check
        %p168 = pneg %p100
      $region22: #{_lambda_.3} parent=11 // pred_check_branch
        %170 = sbr.rel (%p168) target = $region24
      $region23: #{_lambda_.3} parent=11 // pred_region
        _
      $region24: #{_lambda_.3} parent=11 // pred_fallthru
        _
      // Predicated region
      $region25: #{_lambda_.3} parent=11 // pred_check
        %p171 = pneg %p121
      $region26: #{_lambda_.3} parent=11 // pred_check_branch
        %173 = sbr.rel (%p171) target = $region28
      $region27: #{_lambda_.3} parent=11 // pred_region
        _
      $region28: #{_lambda_.3} parent=11 // pred_fallthru
        _
    $region12: #{_lambda_.3} parent=5 // pred_fallthru
      _
    %p174 = scmp.lt.s32.totalorder %s11, 2
    // Predicated region
    $region29: #{_lambda_.3} parent=5 // pred_check
      %p175 = pneg %p174
    $region30: #{_lambda_.3} parent=5 // pred_check_branch
      %177 = sbr.rel (%p175) target = $region32
    $region31: #{_lambda_.3} parent=5 // pred_region
      // Predicated region
      $region33: #{_lambda_.3} parent=31 // pred_check
        %p178 = pneg %p31
      $region34: #{_lambda_.3} parent=31 // pred_check_branch
        %180 = sbr.rel (%p178) target = $region36
      $region35: #{_lambda_.3} parent=31 // pred_region
        %p181 = scmp.lt.s32.totalorder %s11, 1
        %s182 = scalar_select %p181, %s11, 1
        %s183 = smul.addr %s182, 4
        %s184 = scalar_lea.vmem %s0, %s183
      $region36: #{_lambda_.3} parent=31 // pred_fallthru
        _
    $region32: #{_lambda_.3} parent=5 // pred_fallthru
      _
    %p185 = scmp.le.s32.totalorder 1, %s11
    %p186 = scmp.lt.s32.totalorder %s11, 3
    %p187 = pnand %p185, %p186
    %p188 = pneg %p187
    // Predicated region
    $region37: #{_lambda_.3} parent=5 // pred_check
      _
    $region38: #{_lambda_.3} parent=5 // pred_check_branch
      %190 = sbr.rel (%p187) target = $region40
    $region39: #{_lambda_.3} parent=5 // pred_region
      %s191 = ssub.s32 %s11, 1
      %p192 = scmp.lt.s32.totalorder %s16, 1
      %s193 = scalar_select %p192, %s16, 1
      %s194 = smul.addr %s193, 4
      %s195 = scalar_lea.vmem %s0, %s194
      %p196 = pneg %p37
      %p197 = pneg %p34
      %p198 = pneg %p58
      %p199 = pneg %p55
      %p200 = pneg %p79
      %p201 = pneg %p76
      %p202 = pneg %p100
      %p203 = pneg %p97
      %p204 = pneg %p121
      %p205 = pneg %p118
      %p206 = pneg %p147
      %p207 = pneg %p144
      %p208 = scmp.lt.s32.totalorder %s16, 1
      %s209 = scalar_select %p208, %s16, 1
      %s210 = smul.addr %s209, 2
      %s211 = smul.addr %s210, 4
      %s212 = scalar_lea.vmem %s5, %s211
      %p213 = scmp.lt.s32.totalorder %s16, 1
      %s214 = scalar_select %p213, %s16, 1
      %s215 = smul.addr %s214, 4
      %s216 = scalar_lea.vmem %s0, %s215
      %p217 = scmp.lt.s32.totalorder %s16, 1
      %s218 = scalar_select %p217, %s16, 1
      %s219 = smul.addr %s218, 2
      %s220 = smul.addr %s219, 4
      %s221 = scalar_lea.vmem %s5, %s220
      %v223 = vld [vmem:[%s216] sm:$0xf]
      %v224 = vld [vmem:[%s1] sm:$0xf]
      %v225 = vld [vmem:[%s1 + $0x4] sm:$0xf]
      %v226 = vld [vmem:[%s2] sm:$0x1]
      %v228 = vlaneseq
      %v229 = vshrl.u32 %v228, 7
      %v230 = vsub.s32 0, %v229
      %v231 = vrot.slane %v226, %v230
      %v235 = vunpack.c.l.b16 %v224
      %v236 = vunpack.c.l.b16 %v225
      %v237 = vpack.c.b16 %v236, %v235
      %vm239 = vcmask 130048
      %v241 = vsel %vm239, %v223, 0
      %243 = vmatprep.subr.bf16.mxu0 0
      %244 = vmatpush1.bf16.msra.mxu0 0
      %245 = vmatprep.subr.bf16.mxu0 0
      %246 = vmatpush1.bf16.msra.mxu0 0
      %247 = vmatprep.subr.bf16.mxu0 0
      %248 = vmatpush1.bf16.msra.mxu0 0
      %249 = vmatprep.subr.bf16.mxu0 0
      %250 = vmatpush1.bf16.msra.mxu0 0
      %251 = vmatprep.subr.bf16.mxu0 0
      %252 = vmatpush1.bf16.msra.mxu0 0
      %253 = vmatprep.subr.bf16.mxu0 0
      %254 = vmatpush1.bf16.msra.mxu0 0
      %255 = vmatprep.subr.bf16.mxu0 0
      %256 = vmatpush1.bf16.msra.mxu0 0
      %257 = vmatprep.subr.bf16.mxu0 0
      %258 = vmatpush1.bf16.msra.mxu0 %v237
      %259 = vmatprep.subr.bf16.mxu0 0
      %260 = vmatpush2.bf16.msra.mxu0 0
      %261 = vmatprep.subr.bf16.mxu0 0
      %262 = vmatpush2.bf16.msra.mxu0 0
      %263 = vmatprep.subr.bf16.mxu0 0
      %264 = vmatpush2.bf16.msra.mxu0 0
      %265 = vmatprep.subr.bf16.mxu0 0
      %266 = vmatpush2.bf16.msra.mxu0 0
      %267 = vmatprep.subr.bf16.mxu0 0
      %268 = vmatpush2.bf16.msra.mxu0 0
      %269 = vmatprep.subr.bf16.mxu0 0
      %270 = vmatpush2.bf16.msra.mxu0 0
      %271 = vmatprep.subr.bf16.mxu0 0
      %272 = vmatpush2.bf16.msra.mxu0 0
      %273 = vmatprep.subr.bf16.mxu0 0
      %274 = vmatpush2.bf16.msra.mxu0 0
      %275 = vmatprep.mubr.bf16.mxu0 0
      %276 = vmatmul.mubr.bf16.gmra.mxu0 %v241
      %v277 = vpop.f32.mrf.mxu0
      %v278 = vadd.f32 %v231, %v277
      %v279 = vpop.f32.mrf.mxu0
      %v280 = vpop.f32.mrf.mxu0
      %v281 = vpop.f32.mrf.mxu0
      %282 = vdwg.mxu0
      %v283 = vld [vmem:[%s3] sm:$0xff]
      %v284 = vadd.f32 %v278, %v283
      %vm285 = vcmask 257024
      %286 = vst.msk [vmem:[%s221] sm:$0xf] %vm285, 0
      %287 = vst.msk [vmem:[%s221 + $0x4] sm:$0xf] %vm285, 0
      %v288 = vpack.c.bf16 %v284, %v284
      %289 = vst.msk [vmem:[%s221] sm:$0xf] %vm285, %v288
      %v290 = vld [vmem:[%s4] sm:$0x1]
      %v291 = vpack.c.bf16 %v290, %v290
      %vm292 = vcmask 253952
      %vm293 = vsmask.f32 256
      %vm294 = vmand %vm292, %vm293
      %v295 = vld [vmem:[%s221 + $0x4] sm:$0x1]
      %v296 = vsel %vm294, %v291, %v295
      %297 = vst [vmem:[%s221 + $0x4] sm:$0x1] %v296
      %p298 = scmp.lt.s32.totalorder %s16, 1
      %s299 = scalar_select %p298, %s16, 1
      %s300 = smul.addr %s299, 2
      %s301 = smul.addr %s300, 4
      %s302 = scalar_lea.vmem %s5, %s301
      // Predicated region
      $region41: #{_lambda_.3} parent=39 // pred_check
        %p303 = pneg %p144
      $region42: #{_lambda_.3} parent=39 // pred_check_branch
        %305 = sbr.rel (%p303) target = $region44
      $region43: #{_lambda_.3} parent=39 // pred_region
        _
      $region44: #{_lambda_.3} parent=39 // pred_fallthru
        _
    $region40: #{_lambda_.3} parent=5 // pred_fallthru
      _
    %p306 = scmp.le.s32.totalorder 2, %s11
    // Predicated region
    $region45: #{_lambda_.3} parent=5 // pred_check
      %p307 = pneg %p306
    $region46: #{_lambda_.3} parent=5 // pred_check_branch
      %309 = sbr.rel (%p307) target = $region48
    $region47: #{_lambda_.3} parent=5 // pred_region
      %s310 = ssub.s32 %s11, 2
      // Predicated region
      $region49: #{_lambda_.3} parent=47 // pred_check
        %p311 = pneg %p150
      $region50: #{_lambda_.3} parent=47 // pred_check_branch
        %313 = sbr.rel (%p311) target = $region52
      $region51: #{_lambda_.3} parent=47 // pred_region
        %p314 = scmp.lt.s32.totalorder %s17, 1
        %s315 = scalar_select %p314, %s17, 1
        %s316 = smul.addr %s315, 2
        %s317 = smul.addr %s316, 4
        %s318 = scalar_lea.vmem %s5, %s317
      $region52: #{_lambda_.3} parent=47 // pred_fallthru
        _
    $region48: #{_lambda_.3} parent=5 // pred_fallthru
      _
  $region6: #{_lambda_.3} parent=0 // loop_footer
    %s15 = sadd.s32 1, %s11
  $region7: #{_lambda_.3} parent=0 // loop_footer_branch
    %10 = sbr.rel target = $region3
  $region8: #{_lambda_.3} parent=0 // loop_exit
    _

// kernel: _lambda_.5
$region0: #{_lambda_.5}
  #allocation0 [shape = 'u32[]', space=smem, size = 0x4, offset = 0x4, fixed_abs, tag = 'smem constant byte address 0x4 - core index']
  #allocation1 [shape = 'u32[144,128]{1,0:T(1,128)}', space=vmem, size = 0x12000, scoped, tag = 'internal scratch']
  %s0 = inlined_call_operand.vmem [shape: bf16[2,16,32], index: 0, kind: input, shape index: {}, may-alias: {0,13}]
  %s1 = inlined_call_operand.vmem [shape: bf16[32,96], index: 1, kind: input, shape index: {}]
  %s2 = inlined_call_operand.vmem [shape: f32[1,96], index: 2, kind: input, shape index: {}]
  %s3 = inlined_call_operand.vmem [shape: bf16[32,32], index: 3, kind: input, shape index: {}]
  %s4 = inlined_call_operand.vmem [shape: f32[1,32], index: 4, kind: input, shape index: {}, may-alias: {4,6,12}]
  %s5 = inlined_call_operand.vmem [shape: f32[1,32], index: 5, kind: input, shape index: {}, may-alias: {5,11}]
  %s6 = inlined_call_operand.vmem [shape: f32[1,32], index: 6, kind: input, shape index: {}, may-alias: {4,6,12}]
  %s7 = inlined_call_operand.vmem [shape: bf16[32,64], index: 7, kind: input, shape index: {}]
  %s8 = inlined_call_operand.vmem [shape: f32[1,64], index: 8, kind: input, shape index: {}]
  %s9 = inlined_call_operand.vmem [shape: bf16[64,32], index: 9, kind: input, shape index: {}]
  %s10 = inlined_call_operand.vmem [shape: f32[1,32], index: 10, kind: input, shape index: {}]
  %s11 = inlined_call_operand.vmem [shape: f32[1,32], index: 11, kind: input, shape index: {}, may-alias: {5,11}]
  %s12 = inlined_call_operand.vmem [shape: f32[1,32], index: 12, kind: input, shape index: {}, may-alias: {4,6,12}]
  %s13 = inlined_call_operand.vmem [shape: bf16[2,16,32], index: 13, kind: output, shape index: {}, may-alias: {0,13}]
  %s14 = sld [smem:[#allocation0]]
  $region85: #{_lambda_.5} parent=0
    _
  %s16 = ssub.s32 1, %s14
  %s17 = scalar_select 0, %s16, %s14
  loop: start=0, step=1, limit=4
  $region2: #{_lambda_.5} parent=0 // loop_pre_header
    _
  $region3: #{_lambda_.5} parent=0 // loop_header
    %s19 = sphi 0, %s23
    %p20 = scmp.ge.s32.totalorder %s19, 4
    %s29 = sphi 0, %s31
    %s32 = sphi 0, %s29
    %s33 = sphi 0, %s32
    %s49 = sphi 0, %s33
    %s53 = sphi 0, %s53
    %s55 = sphi 0, %s53
    %s56 = sphi 0, %s55
    %s70 = sphi 0, %s56
    %s74 = sphi 0, %s74
    %s76 = sphi 0, %s74
    %s77 = sphi 0, %s76
    %s91 = sphi 0, %s77
    %s95 = sphi 0, %s95
    %s97 = sphi 0, %s95
    %s98 = sphi 0, %s97
    %s112 = sphi 0, %s98
    %s116 = sphi 0, %s116
    %s118 = sphi 0, %s116
    %s119 = sphi 0, %s118
    %s133 = sphi 0, %s119
    %s137 = sphi 0, %s137
    %s139 = sphi 0, %s137
    %s140 = sphi 0, %s139
    %s154 = sphi 0, %s140
    %s158 = sphi 0, %s158
    %s160 = sphi 0, %s158
    %s161 = sphi 0, %s160
    %s175 = sphi 0, %s161
    %s179 = sphi 0, %s179
    %s181 = sphi 0, %s179
    %s182 = sphi 0, %s181
    %s196 = sphi 0, %s182
    %s200 = sphi 0, %s200
    %s202 = sphi 0, %s200
    %s203 = sphi 0, %s202
    %s217 = sphi 0, %s203
    %s221 = sphi 0, %s221
    %s223 = sphi 0, %s221
    %s224 = sphi 0, %s223
    %s238 = sphi 0, %s224
    %s242 = sphi 0, %s242
    %s244 = sphi 0, %s242
    %s245 = sphi 0, %s244
    %s259 = sphi 0, %s245
    %s263 = sphi 0, %s263
    %s265 = sphi 0, %s263
    %s266 = sphi 0, %s265
    %s280 = sphi 0, %s266
    %s284 = sphi 0, %s284
    %s286 = sphi 0, %s284
    %s287 = sphi 0, %s286
    %s301 = sphi 0, %s287
    %s307 = sphi 0, %s309
    %s310 = sphi 0, %s307
    %s311 = sphi 0, %s310
    %s327 = sphi 0, %s311
  $region4: #{_lambda_.5} parent=0 // loop_header_branch
    %22 = sbr.rel (%p20) target = $region8
  $region5: #{_lambda_.5} parent=0 // loop_body
    %s24 = ssub.s32 %s19, 1
    %s25 = ssub.s32 %s19, 2
    %s26 = sadd.s32 %s19, 1
    %s27 = ssub.s32 %s19, %s26
    %p28 = scmp.eq.s32.totalorder %s27, 0
    %s30 = sadd.s32 %s29, 1
    %s31 = scalar_select %p28, %s29, %s30
    %p34 = pneg %p28
    %p35 = scmp.eq.s32.totalorder %s19, 1
    %p36 = por %p34, %p35
    %p37 = scmp.ne.s32.totalorder %s29, %s32
    %p38 = scmp.eq.s32.totalorder %s19, 0
    %p39 = por %p37, %p38
    %p40 = scmp.ne.s32.totalorder %s29, %s32
    %p41 = scmp.eq.s32.totalorder %s24, 1
    %p42 = por %p40, %p41
    %p43 = scmp.ne.s32.totalorder %s32, %s33
    %p44 = scmp.eq.s32.totalorder %s24, 0
    %p45 = por %p43, %p44
    %p46 = scmp.ne.s32.totalorder %s32, %s33
    %p47 = scmp.eq.s32.totalorder %s25, 1
    %p48 = por %p46, %p47
    %p50 = scmp.ne.s32.totalorder %s33, %s49
    %p51 = scmp.eq.s32.totalorder %s25, 0
    %p52 = por %p50, %p51
    %s54 = sadd.s32 %s53, 1
    %p57 = scmp.eq.s32.totalorder %s19, 1
    %p58 = scmp.ne.s32.totalorder %s53, %s55
    %p59 = scmp.eq.s32.totalorder %s19, 0
    %p60 = por %p58, %p59
    %p61 = scmp.ne.s32.totalorder %s53, %s55
    %p62 = scmp.eq.s32.totalorder %s24, 1
    %p63 = por %p61, %p62
    %p64 = scmp.ne.s32.totalorder %s55, %s56
    %p65 = scmp.eq.s32.totalorder %s24, 0
    %p66 = por %p64, %p65
    %p67 = scmp.ne.s32.totalorder %s55, %s56
    %p68 = scmp.eq.s32.totalorder %s25, 1
    %p69 = por %p67, %p68
    %p71 = scmp.ne.s32.totalorder %s56, %s70
    %p72 = scmp.eq.s32.totalorder %s25, 0
    %p73 = por %p71, %p72
    %s75 = sadd.s32 %s74, 1
    %p78 = scmp.eq.s32.totalorder %s19, 1
    %p79 = scmp.ne.s32.totalorder %s74, %s76
    %p80 = scmp.eq.s32.totalorder %s19, 0
    %p81 = por %p79, %p80
    %p82 = scmp.ne.s32.totalorder %s74, %s76
    %p83 = scmp.eq.s32.totalorder %s24, 1
    %p84 = por %p82, %p83
    %p85 = scmp.ne.s32.totalorder %s76, %s77
    %p86 = scmp.eq.s32.totalorder %s24, 0
    %p87 = por %p85, %p86
    %p88 = scmp.ne.s32.totalorder %s76, %s77
    %p89 = scmp.eq.s32.totalorder %s25, 1
    %p90 = por %p88, %p89
    %p92 = scmp.ne.s32.totalorder %s77, %s91
    %p93 = scmp.eq.s32.totalorder %s25, 0
    %p94 = por %p92, %p93
    %s96 = sadd.s32 %s95, 1
    %p99 = scmp.eq.s32.totalorder %s19, 1
    %p100 = scmp.ne.s32.totalorder %s95, %s97
    %p101 = scmp.eq.s32.totalorder %s19, 0
    %p102 = por %p100, %p101
    %p103 = scmp.ne.s32.totalorder %s95, %s97
    %p104 = scmp.eq.s32.totalorder %s24, 1
    %p105 = por %p103, %p104
    %p106 = scmp.ne.s32.totalorder %s97, %s98
    %p107 = scmp.eq.s32.totalorder %s24, 0
    %p108 = por %p106, %p107
    %p109 = scmp.ne.s32.totalorder %s97, %s98
    %p110 = scmp.eq.s32.totalorder %s25, 1
    %p111 = por %p109, %p110
    %p113 = scmp.ne.s32.totalorder %s98, %s112
    %p114 = scmp.eq.s32.totalorder %s25, 0
    %p115 = por %p113, %p114
    %s117 = sadd.s32 %s116, 1
    %p120 = scmp.eq.s32.totalorder %s19, 1
    %p121 = scmp.ne.s32.totalorder %s116, %s118
    %p122 = scmp.eq.s32.totalorder %s19, 0
    %p123 = por %p121, %p122
    %p124 = scmp.ne.s32.totalorder %s116, %s118
    %p125 = scmp.eq.s32.totalorder %s24, 1
    %p126 = por %p124, %p125
    %p127 = scmp.ne.s32.totalorder %s118, %s119
    %p128 = scmp.eq.s32.totalorder %s24, 0
    %p129 = por %p127, %p128
    %p130 = scmp.ne.s32.totalorder %s118, %s119
    %p131 = scmp.eq.s32.totalorder %s25, 1
    %p132 = por %p130, %p131
    %p134 = scmp.ne.s32.totalorder %s119, %s133
    %p135 = scmp.eq.s32.totalorder %s25, 0
    %p136 = por %p134, %p135
    %s138 = sadd.s32 %s137, 1
    %p141 = scmp.eq.s32.totalorder %s19, 1
    %p142 = scmp.ne.s32.totalorder %s137, %s139
    %p143 = scmp.eq.s32.totalorder %s19, 0
    %p144 = por %p142, %p143
    %p145 = scmp.ne.s32.totalorder %s137, %s139
    %p146 = scmp.eq.s32.totalorder %s24, 1
    %p147 = por %p145, %p146
    %p148 = scmp.ne.s32.totalorder %s139, %s140
    %p149 = scmp.eq.s32.totalorder %s24, 0
    %p150 = por %p148, %p149
    %p151 = scmp.ne.s32.totalorder %s139, %s140
    %p152 = scmp.eq.s32.totalorder %s25, 1
    %p153 = por %p151, %p152
    %p155 = scmp.ne.s32.totalorder %s140, %s154
    %p156 = scmp.eq.s32.totalorder %s25, 0
    %p157 = por %p155, %p156
    %s159 = sadd.s32 %s158, 1
    %p162 = scmp.eq.s32.totalorder %s19, 1
    %p163 = scmp.ne.s32.totalorder %s158, %s160
    %p164 = scmp.eq.s32.totalorder %s19, 0
    %p165 = por %p163, %p164
    %p166 = scmp.ne.s32.totalorder %s158, %s160
    %p167 = scmp.eq.s32.totalorder %s24, 1
    %p168 = por %p166, %p167
    %p169 = scmp.ne.s32.totalorder %s160, %s161
    %p170 = scmp.eq.s32.totalorder %s24, 0
    %p171 = por %p169, %p170
    %p172 = scmp.ne.s32.totalorder %s160, %s161
    %p173 = scmp.eq.s32.totalorder %s25, 1
    %p174 = por %p172, %p173
    %p176 = scmp.ne.s32.totalorder %s161, %s175
    %p177 = scmp.eq.s32.totalorder %s25, 0
    %p178 = por %p176, %p177
    %s180 = sadd.s32 %s179, 1
    %p183 = scmp.eq.s32.totalorder %s19, 1
    %p184 = scmp.ne.s32.totalorder %s179, %s181
    %p185 = scmp.eq.s32.totalorder %s19, 0
    %p186 = por %p184, %p185
    %p187 = scmp.ne.s32.totalorder %s179, %s181
    %p188 = scmp.eq.s32.totalorder %s24, 1
    %p189 = por %p187, %p188
    %p190 = scmp.ne.s32.totalorder %s181, %s182
    %p191 = scmp.eq.s32.totalorder %s24, 0
    %p192 = por %p190, %p191
    %p193 = scmp.ne.s32.totalorder %s181, %s182
    %p194 = scmp.eq.s32.totalorder %s25, 1
    %p195 = por %p193, %p194
    %p197 = scmp.ne.s32.totalorder %s182, %s196
    %p198 = scmp.eq.s32.totalorder %s25, 0
    %p199 = por %p197, %p198
    %s201 = sadd.s32 %s200, 1
    %p204 = scmp.eq.s32.totalorder %s19, 1
    %p205 = scmp.ne.s32.totalorder %s200, %s202
    %p206 = scmp.eq.s32.totalorder %s19, 0
    %p207 = por %p205, %p206
    %p208 = scmp.ne.s32.totalorder %s200, %s202
    %p209 = scmp.eq.s32.totalorder %s24, 1
    %p210 = por %p208, %p209
    %p211 = scmp.ne.s32.totalorder %s202, %s203
    %p212 = scmp.eq.s32.totalorder %s24, 0
    %p213 = por %p211, %p212
    %p214 = scmp.ne.s32.totalorder %s202, %s203
    %p215 = scmp.eq.s32.totalorder %s25, 1
    %p216 = por %p214, %p215
    %p218 = scmp.ne.s32.totalorder %s203, %s217
    %p219 = scmp.eq.s32.totalorder %s25, 0
    %p220 = por %p218, %p219
    %s222 = sadd.s32 %s221, 1
    %p225 = scmp.eq.s32.totalorder %s19, 1
    %p226 = scmp.ne.s32.totalorder %s221, %s223
    %p227 = scmp.eq.s32.totalorder %s19, 0
    %p228 = por %p226, %p227
    %p229 = scmp.ne.s32.totalorder %s221, %s223
    %p230 = scmp.eq.s32.totalorder %s24, 1
    %p231 = por %p229, %p230
    %p232 = scmp.ne.s32.totalorder %s223, %s224
    %p233 = scmp.eq.s32.totalorder %s24, 0
    %p234 = por %p232, %p233
    %p235 = scmp.ne.s32.totalorder %s223, %s224
    %p236 = scmp.eq.s32.totalorder %s25, 1
    %p237 = por %p235, %p236
    %p239 = scmp.ne.s32.totalorder %s224, %s238
    %p240 = scmp.eq.s32.totalorder %s25, 0
    %p241 = por %p239, %p240
    %s243 = sadd.s32 %s242, 1
    %p246 = scmp.eq.s32.totalorder %s19, 1
    %p247 = scmp.ne.s32.totalorder %s242, %s244
    %p248 = scmp.eq.s32.totalorder %s19, 0
    %p249 = por %p247, %p248
    %p250 = scmp.ne.s32.totalorder %s242, %s244
    %p251 = scmp.eq.s32.totalorder %s24, 1
    %p252 = por %p250, %p251
    %p253 = scmp.ne.s32.totalorder %s244, %s245
    %p254 = scmp.eq.s32.totalorder %s24, 0
    %p255 = por %p253, %p254
    %p256 = scmp.ne.s32.totalorder %s244, %s245
    %p257 = scmp.eq.s32.totalorder %s25, 1
    %p258 = por %p256, %p257
    %p260 = scmp.ne.s32.totalorder %s245, %s259
    %p261 = scmp.eq.s32.totalorder %s25, 0
    %p262 = por %p260, %p261
    %s264 = sadd.s32 %s263, 1
    %p267 = scmp.eq.s32.totalorder %s19, 1
    %p268 = scmp.ne.s32.totalorder %s263, %s265
    %p269 = scmp.eq.s32.totalorder %s19, 0
    %p270 = por %p268, %p269
    %p271 = scmp.ne.s32.totalorder %s263, %s265
    %p272 = scmp.eq.s32.totalorder %s24, 1
    %p273 = por %p271, %p272
    %p274 = scmp.ne.s32.totalorder %s265, %s266
    %p275 = scmp.eq.s32.totalorder %s24, 0
    %p276 = por %p274, %p275
    %p277 = scmp.ne.s32.totalorder %s265, %s266
    %p278 = scmp.eq.s32.totalorder %s25, 1
    %p279 = por %p277, %p278
    %p281 = scmp.ne.s32.totalorder %s266, %s280
    %p282 = scmp.eq.s32.totalorder %s25, 0
    %p283 = por %p281, %p282
    %s285 = sadd.s32 %s284, 1
    %p288 = scmp.eq.s32.totalorder %s19, 1
    %p289 = scmp.ne.s32.totalorder %s284, %s286
    %p290 = scmp.eq.s32.totalorder %s19, 0
    %p291 = por %p289, %p290
    %p292 = scmp.ne.s32.totalorder %s284, %s286
    %p293 = scmp.eq.s32.totalorder %s24, 1
    %p294 = por %p292, %p293
    %p295 = scmp.ne.s32.totalorder %s286, %s287
    %p296 = scmp.eq.s32.totalorder %s24, 0
    %p297 = por %p295, %p296
    %p298 = scmp.ne.s32.totalorder %s286, %s287
    %p299 = scmp.eq.s32.totalorder %s25, 1
    %p300 = por %p298, %p299
    %p302 = scmp.ne.s32.totalorder %s287, %s301
    %p303 = scmp.eq.s32.totalorder %s25, 0
    %p304 = por %p302, %p303
    %s305 = ssub.s32 %s19, %s26
    %p306 = scmp.eq.s32.totalorder %s305, 0
    %s308 = sadd.s32 %s307, 1
    %s309 = scalar_select %p306, %s307, %s308
    %p312 = pneg %p306
    %p313 = scmp.eq.s32.totalorder %s19, 1
    %p314 = por %p312, %p313
    %p315 = scmp.ne.s32.totalorder %s307, %s310
    %p316 = scmp.eq.s32.totalorder %s19, 0
    %p317 = por %p315, %p316
    %p318 = scmp.ne.s32.totalorder %s307, %s310
    %p319 = scmp.eq.s32.totalorder %s24, 1
    %p320 = por %p318, %p319
    %p321 = scmp.ne.s32.totalorder %s310, %s311
    %p322 = scmp.eq.s32.totalorder %s24, 0
    %p323 = por %p321, %p322
    %p324 = scmp.ne.s32.totalorder %s310, %s311
    %p325 = scmp.eq.s32.totalorder %s25, 1
    %p326 = por %p324, %p325
    %p328 = scmp.ne.s32.totalorder %s311, %s327
    %p329 = scmp.eq.s32.totalorder %s25, 0
    %p330 = por %p328, %p329
    %p331 = scmp.le.s32.totalorder 1, %s19
    %p332 = scmp.lt.s32.totalorder %s19, 3
    %p333 = pnand %p331, %p332
    %p334 = pneg %p333
    // Predicated region
    $region9: #{_lambda_.5} parent=5 // pred_check
      _
    $region10: #{_lambda_.5} parent=5 // pred_check_branch
      %336 = sbr.rel (%p333) target = $region12
    $region11: #{_lambda_.5} parent=5 // pred_region
      %s337 = ssub.s32 %s19, 1
      // Predicated region
      $region13: #{_lambda_.5} parent=11 // pred_check
        %p338 = pneg %p66
      $region14: #{_lambda_.5} parent=11 // pred_check_branch
        %340 = sbr.rel (%p338) target = $region16
      $region15: #{_lambda_.5} parent=11 // pred_region
        _
      $region16: #{_lambda_.5} parent=11 // pred_fallthru
        _
      // Predicated region
      $region17: #{_lambda_.5} parent=11 // pred_check
        %p341 = pneg %p87
      $region18: #{_lambda_.5} parent=11 // pred_check_branch
        %343 = sbr.rel (%p341) target = $region20
      $region19: #{_lambda_.5} parent=11 // pred_region
        _
      $region20: #{_lambda_.5} parent=11 // pred_fallthru
        _
      // Predicated region
      $region21: #{_lambda_.5} parent=11 // pred_check
        %p344 = pneg %p108
      $region22: #{_lambda_.5} parent=11 // pred_check_branch
        %346 = sbr.rel (%p344) target = $region24
      $region23: #{_lambda_.5} parent=11 // pred_region
        _
      $region24: #{_lambda_.5} parent=11 // pred_fallthru
        _
      // Predicated region
      $region25: #{_lambda_.5} parent=11 // pred_check
        %p347 = pneg %p129
      $region26: #{_lambda_.5} parent=11 // pred_check_branch
        %349 = sbr.rel (%p347) target = $region28
      $region27: #{_lambda_.5} parent=11 // pred_region
        _
      $region28: #{_lambda_.5} parent=11 // pred_fallthru
        _
      // Predicated region
      $region29: #{_lambda_.5} parent=11 // pred_check
        %p350 = pneg %p150
      $region30: #{_lambda_.5} parent=11 // pred_check_branch
        %352 = sbr.rel (%p350) target = $region32
      $region31: #{_lambda_.5} parent=11 // pred_region
        _
      $region32: #{_lambda_.5} parent=11 // pred_fallthru
        _
      // Predicated region
      $region33: #{_lambda_.5} parent=11 // pred_check
        %p353 = pneg %p171
      $region34: #{_lambda_.5} parent=11 // pred_check_branch
        %355 = sbr.rel (%p353) target = $region36
      $region35: #{_lambda_.5} parent=11 // pred_region
        _
      $region36: #{_lambda_.5} parent=11 // pred_fallthru
        _
      // Predicated region
      $region37: #{_lambda_.5} parent=11 // pred_check
        %p356 = pneg %p192
      $region38: #{_lambda_.5} parent=11 // pred_check_branch
        %358 = sbr.rel (%p356) target = $region40
      $region39: #{_lambda_.5} parent=11 // pred_region
        _
      $region40: #{_lambda_.5} parent=11 // pred_fallthru
        _
      // Predicated region
      $region41: #{_lambda_.5} parent=11 // pred_check
        %p359 = pneg %p213
      $region42: #{_lambda_.5} parent=11 // pred_check_branch
        %361 = sbr.rel (%p359) target = $region44
      $region43: #{_lambda_.5} parent=11 // pred_region
        _
      $region44: #{_lambda_.5} parent=11 // pred_fallthru
        _
      // Predicated region
      $region45: #{_lambda_.5} parent=11 // pred_check
        %p362 = pneg %p234
      $region46: #{_lambda_.5} parent=11 // pred_check_branch
        %364 = sbr.rel (%p362) target = $region48
      $region47: #{_lambda_.5} parent=11 // pred_region
        _
      $region48: #{_lambda_.5} parent=11 // pred_fallthru
        _
      // Predicated region
      $region49: #{_lambda_.5} parent=11 // pred_check
        %p365 = pneg %p255
      $region50: #{_lambda_.5} parent=11 // pred_check_branch
        %367 = sbr.rel (%p365) target = $region52
      $region51: #{_lambda_.5} parent=11 // pred_region
        _
      $region52: #{_lambda_.5} parent=11 // pred_fallthru
        _
      // Predicated region
      $region53: #{_lambda_.5} parent=11 // pred_check
        %p368 = pneg %p276
      $region54: #{_lambda_.5} parent=11 // pred_check_branch
        %370 = sbr.rel (%p368) target = $region56
      $region55: #{_lambda_.5} parent=11 // pred_region
        _
      $region56: #{_lambda_.5} parent=11 // pred_fallthru
        _
      // Predicated region
      $region57: #{_lambda_.5} parent=11 // pred_check
        %p371 = pneg %p297
      $region58: #{_lambda_.5} parent=11 // pred_check_branch
        %373 = sbr.rel (%p371) target = $region60
      $region59: #{_lambda_.5} parent=11 // pred_region
        _
      $region60: #{_lambda_.5} parent=11 // pred_fallthru
        _
    $region12: #{_lambda_.5} parent=5 // pred_fallthru
      _
    %p374 = scmp.lt.s32.totalorder %s19, 2
    // Predicated region
    $region61: #{_lambda_.5} parent=5 // pred_check
      %p375 = pneg %p374
    $region62: #{_lambda_.5} parent=5 // pred_check_branch
      %377 = sbr.rel (%p375) target = $region64
    $region63: #{_lambda_.5} parent=5 // pred_region
      // Predicated region
      $region65: #{_lambda_.5} parent=63 // pred_check
        %p378 = pneg %p39
      $region66: #{_lambda_.5} parent=63 // pred_check_branch
        %380 = sbr.rel (%p378) target = $region68
      $region67: #{_lambda_.5} parent=63 // pred_region
        %p381 = scmp.lt.s32.totalorder %s19, 1
        %s382 = scalar_select %p381, %s19, 1
        %s383 = smul.addr %s382, 2
        %s384 = smul.addr %s383, 4
        %s385 = scalar_lea.vmem %s0, %s384
      $region68: #{_lambda_.5} parent=63 // pred_fallthru
        _
    $region64: #{_lambda_.5} parent=5 // pred_fallthru
      _
    %p386 = scmp.le.s32.totalorder 1, %s19
    %p387 = scmp.lt.s32.totalorder %s19, 3
    %p388 = pnand %p386, %p387
    %p389 = pneg %p388
    // Predicated region
    $region69: #{_lambda_.5} parent=5 // pred_check
      _
    $region70: #{_lambda_.5} parent=5 // pred_check_branch
      %391 = sbr.rel (%p388) target = $region72
    $region71: #{_lambda_.5} parent=5 // pred_region
      %s392 = ssub.s32 %s19, 1
      %p393 = scmp.lt.s32.totalorder %s24, 1
      %s394 = scalar_select %p393, %s24, 1
      %s395 = smul.addr %s394, 2
      %s396 = smul.addr %s395, 4
      %s397 = scalar_lea.vmem %s0, %s396
      %p398 = pneg %p45
      %p399 = pneg %p42
      %p400 = pneg %p66
      %p401 = pneg %p63
      %p402 = pneg %p87
      %p403 = pneg %p84
      %p404 = pneg %p108
      %p405 = pneg %p105
      %p406 = pneg %p129
      %p407 = pneg %p126
      %p408 = pneg %p150
      %p409 = pneg %p147
      %p410 = pneg %p171
      %p411 = pneg %p168
      %p412 = pneg %p192
      %p413 = pneg %p189
      %p414 = pneg %p213
      %p415 = pneg %p210
      %p416 = pneg %p234
      %p417 = pneg %p231
      %p418 = pneg %p255
      %p419 = pneg %p252
      %p420 = pneg %p276
      %p421 = pneg %p273
      %p422 = pneg %p297
      %p423 = pneg %p294
      %p424 = pneg %p323
      %p425 = pneg %p320
      %p426 = scmp.lt.s32.totalorder %s24, 1
      %s427 = scalar_select %p426, %s24, 1
      %s428 = smul.addr %s427, 2
      %s429 = smul.addr %s428, 4
      %s430 = scalar_lea.vmem %s13, %s429
      %p431 = scmp.lt.s32.totalorder %s24, 1
      %s432 = scalar_select %p431, %s24, 1
      %s433 = smul.addr %s432, 2
      %s434 = smul.addr %s433, 4
      %s435 = scalar_lea.vmem %s0, %s434
      %p436 = scmp.lt.s32.totalorder %s24, 1
      %s437 = scalar_select %p436, %s24, 1
      %s438 = smul.addr %s437, 2
      %s439 = smul.addr %s438, 4
      %s440 = scalar_lea.vmem %s13, %s439
      %v442 = vld [vmem:[%s435] sm:$0xf]
      %v443 = vld [vmem:[%s435 + $0x4] sm:$0xf]
      %v444 = vld [vmem:[%s1] sm:$0xf]
      %v445 = vld [vmem:[%s1 + $0x4] sm:$0xf]
      %v446 = vld [vmem:[%s1 + $0x8] sm:$0xf]
      %v447 = vld [vmem:[%s1 + $0xc] sm:$0xf]
      %v448 = vld [vmem:[%s2] sm:$0x1]
      %v450 = vlaneseq
      %v451 = vshrl.u32 %v450, 7
      %v452 = vsub.s32 0, %v451
      %v453 = vrot.slane %v448, %v452
      %v457 = vunpack.c.l.b16 %v442
      %v458 = vunpack.c.l.b16 %v443
      %v459 = vpack.c.b16 %v458, %v457
      %v464 = vunpack.c.l.b16 %v444
      %v465 = vunpack.c.l.b16 %v445
      %v466 = vunpack.c.l.b16 %v446
      %v467 = vunpack.c.l.b16 %v447
      %v468 = vpack.c.b16 %v465, %v464
      %v469 = vpack.c.b16 %v467, %v466
      %vm472 = vcmask 261120
      %v474 = vsel %vm472, %v459, 0
      %476 = vmatprep.subr.bf16.mxu0 0
      %477 = vmatpush1.bf16.msra.mxu0 0
      %478 = vmatprep.subr.bf16.mxu0 0
      %479 = vmatpush1.bf16.msra.mxu0 0
      %480 = vmatprep.subr.bf16.mxu0 0
      %481 = vmatpush1.bf16.msra.mxu0 0
      %482 = vmatprep.subr.bf16.mxu0 0
      %483 = vmatpush1.bf16.msra.mxu0 0
      %484 = vmatprep.subr.bf16.mxu0 0
      %485 = vmatpush1.bf16.msra.mxu0 0
      %486 = vmatprep.subr.bf16.mxu0 0
      %487 = vmatpush1.bf16.msra.mxu0 0
      %488 = vmatprep.subr.bf16.mxu0 0
      %489 = vmatpush1.bf16.msra.mxu0 %v469
      %490 = vmatprep.subr.bf16.mxu0 0
      %491 = vmatpush1.bf16.msra.mxu0 %v468
      %492 = vmatprep.subr.bf16.mxu0 0
      %493 = vmatpush2.bf16.msra.mxu0 0
      %494 = vmatprep.subr.bf16.mxu0 0
      %495 = vmatpush2.bf16.msra.mxu0 0
      %496 = vmatprep.subr.bf16.mxu0 0
      %497 = vmatpush2.bf16.msra.mxu0 0
      %498 = vmatprep.subr.bf16.mxu0 0
      %499 = vmatpush2.bf16.msra.mxu0 0
      %500 = vmatprep.subr.bf16.mxu0 0
      %501 = vmatpush2.bf16.msra.mxu0 0
      %502 = vmatprep.subr.bf16.mxu0 0
      %503 = vmatpush2.bf16.msra.mxu0 0
      %504 = vmatprep.subr.bf16.mxu0 0
      %505 = vmatpush2.bf16.msra.mxu0 0
      %506 = vmatprep.subr.bf16.mxu0 0
      %507 = vmatpush2.bf16.msra.mxu0 0
      %508 = vmatprep.mubr.bf16.mxu0 0
      %509 = vmatmul.mubr.bf16.gmra.mxu0 %v474
      %v510 = vpop.f32.mrf.mxu0
      %v511 = vadd.f32 %v453, %v510
      %v512 = vpop.f32.mrf.mxu0
      %v513 = vpop.f32.mrf.mxu0
      %v514 = vadd.f32 %v453, %v513
      %v515 = vpop.f32.mrf.mxu0
      %516 = vdwg.mxu0
      %v517 = vpack.c.bf16 %v514, %v511
      %519 = vrot.lane.b32.xlu0 %v517, 120
      %v520 = vpop.permute.xlu0 %519
      %521 = vrot.lane.b32.xlu0 %v517, 112
      %v522 = vpop.permute.xlu0 %521
      %523 = vrot.lane.b32.xlu0 %v517, 104
      %v524 = vpop.permute.xlu0 %523
      %525 = vrot.lane.b32.xlu0 %v517, 96
      %v526 = vpop.permute.xlu0 %525
      %vm527 = vcmask 64512
      %v529 = vsel %vm527, %v517, 0
      %v532 = vsel %vm527, %v526, 0
      %534 = vmatprep.subr.bf16.mxu0 0
      %535 = vmatpush1.bf16.xpose.msra.mxu0 0
      %536 = vmatprep.subr.bf16.mxu0 0
      %537 = vmatpush1.bf16.xpose.msra.mxu0 0
      %538 = vmatprep.subr.bf16.mxu0 0
      %539 = vmatpush1.bf16.xpose.msra.mxu0 0
      %540 = vmatprep.subr.bf16.mxu0 0
      %541 = vmatpush1.bf16.xpose.msra.mxu0 0
      %542 = vmatprep.subr.bf16.mxu0 0
      %543 = vmatpush1.bf16.xpose.msra.mxu0 0
      %544 = vmatprep.subr.bf16.mxu0 0
      %545 = vmatpush1.bf16.xpose.msra.mxu0 0
      %546 = vmatprep.subr.bf16.mxu0 0
      %547 = vmatpush1.bf16.xpose.msra.mxu0 0
      %548 = vmatprep.subr.bf16.mxu0 0
      %549 = vmatpush1.bf16.xpose.msra.mxu0 %v532
      %550 = vmatprep.subr.bf16.mxu0 0
      %551 = vmatpush2.bf16.xpose.msra.mxu0 0
      %552 = vmatprep.subr.bf16.mxu0 0
      %553 = vmatpush2.bf16.xpose.msra.mxu0 0
      %554 = vmatprep.subr.bf16.mxu0 0
      %555 = vmatpush2.bf16.xpose.msra.mxu0 0
      %556 = vmatprep.subr.bf16.mxu0 0
      %557 = vmatpush2.bf16.xpose.msra.mxu0 0
      %558 = vmatprep.subr.bf16.mxu0 0
      %559 = vmatpush2.bf16.xpose.msra.mxu0 0
      %560 = vmatprep.subr.bf16.mxu0 0
      %561 = vmatpush2.bf16.xpose.msra.mxu0 0
      %562 = vmatprep.subr.bf16.mxu0 0
      %563 = vmatpush2.bf16.xpose.msra.mxu0 0
      %564 = vmatprep.subr.bf16.mxu0 0
      %565 = vmatpush2.bf16.xpose.msra.mxu0 0
      %566 = vmatprep.mubr.bf16.mxu0 0
      %567 = vmatmul.mubr.bf16.gmra.mxu0 %v529
      %v568 = vpop.f32.mrf.mxu0
      %v569 = vadd.f32 0.0, %v568
      %v570 = vpop.f32.mrf.mxu0
      %v571 = vpop.f32.mrf.mxu0
      %v572 = vadd.f32 0.0, %v571
      %v573 = vpop.f32.mrf.mxu0
      %574 = vdwg.mxu0
      %575 = vrot.lane.b32.xlu0 %v520, 96
      %v576 = vpop.permute.xlu0 %575
      %v578 = vsel %vm527, %v520, 0
      %v581 = vsel %vm527, %v576, 0
      %583 = vmatprep.subr.bf16.mxu0 0
      %584 = vmatpush1.bf16.xpose.msra.mxu0 0
      %585 = vmatprep.subr.bf16.mxu0 0
      %586 = vmatpush1.bf16.xpose.msra.mxu0 0
      %587 = vmatprep.subr.bf16.mxu0 0
      %588 = vmatpush1.bf16.xpose.msra.mxu0 0
      %589 = vmatprep.subr.bf16.mxu0 0
      %590 = vmatpush1.bf16.xpose.msra.mxu0 0
      %591 = vmatprep.subr.bf16.mxu0 0
      %592 = vmatpush1.bf16.xpose.msra.mxu0 0
      %593 = vmatprep.subr.bf16.mxu0 0
      %594 = vmatpush1.bf16.xpose.msra.mxu0 0
      %595 = vmatprep.subr.bf16.mxu0 0
      %596 = vmatpush1.bf16.xpose.msra.mxu0 0
      %597 = vmatprep.subr.bf16.mxu0 0
      %598 = vmatpush1.bf16.xpose.msra.mxu0 %v581
      %599 = vmatprep.subr.bf16.mxu0 0
      %600 = vmatpush2.bf16.xpose.msra.mxu0 0
      %601 = vmatprep.subr.bf16.mxu0 0
      %602 = vmatpush2.bf16.xpose.msra.mxu0 0
      %603 = vmatprep.subr.bf16.mxu0 0
      %604 = vmatpush2.bf16.xpose.msra.mxu0 0
      %605 = vmatprep.subr.bf16.mxu0 0
      %606 = vmatpush2.bf16.xpose.msra.mxu0 0
      %607 = vmatprep.subr.bf16.mxu0 0
      %608 = vmatpush2.bf16.xpose.msra.mxu0 0
      %609 = vmatprep.subr.bf16.mxu0 0
      %610 = vmatpush2.bf16.xpose.msra.mxu0 0
      %611 = vmatprep.subr.bf16.mxu0 0
      %612 = vmatpush2.bf16.xpose.msra.mxu0 0
      %613 = vmatprep.subr.bf16.mxu0 0
      %614 = vmatpush2.bf16.xpose.msra.mxu0 0
      %615 = vmatprep.mubr.bf16.mxu0 0
      %616 = vmatmul.mubr.bf16.gmra.mxu0 %v578
      %v617 = vpop.f32.mrf.mxu0
      %v618 = vadd.f32 0.0, %v617
      %v619 = vpop.f32.mrf.mxu0
      %v620 = vpop.f32.mrf.mxu0
      %v621 = vadd.f32 0.0, %v620
      %v622 = vpop.f32.mrf.mxu0
      %623 = vdwg.mxu0
      %624 = vrot.lane.b32.xlu0 %v522, 96
      %v625 = vpop.permute.xlu0 %624
      %v627 = vsel %vm527, %v522, 0
      %v630 = vsel %vm527, %v625, 0
      %632 = vmatprep.subr.bf16.mxu0 0
      %633 = vmatpush1.bf16.xpose.msra.mxu0 0
      %634 = vmatprep.subr.bf16.mxu0 0
      %635 = vmatpush1.bf16.xpose.msra.mxu0 0
      %636 = vmatprep.subr.bf16.mxu0 0
      %637 = vmatpush1.bf16.xpose.msra.mxu0 0
      %638 = vmatprep.subr.bf16.mxu0 0
      %639 = vmatpush1.bf16.xpose.msra.mxu0 0
      %640 = vmatprep.subr.bf16.mxu0 0
      %641 = vmatpush1.bf16.xpose.msra.mxu0 0
      %642 = vmatprep.subr.bf16.mxu0 0
      %643 = vmatpush1.bf16.xpose.msra.mxu0 0
      %644 = vmatprep.subr.bf16.mxu0 0
      %645 = vmatpush1.bf16.xpose.msra.mxu0 0
      %646 = vmatprep.subr.bf16.mxu0 0
      %647 = vmatpush1.bf16.xpose.msra.mxu0 %v630
      %648 = vmatprep.subr.bf16.mxu0 0
      %649 = vmatpush2.bf16.xpose.msra.mxu0 0
      %650 = vmatprep.subr.bf16.mxu0 0
      %651 = vmatpush2.bf16.xpose.msra.mxu0 0
      %652 = vmatprep.subr.bf16.mxu0 0
      %653 = vmatpush2.bf16.xpose.msra.mxu0 0
      %654 = vmatprep.subr.bf16.mxu0 0
      %655 = vmatpush2.bf16.xpose.msra.mxu0 0
      %656 = vmatprep.subr.bf16.mxu0 0
      %657 = vmatpush2.bf16.xpose.msra.mxu0 0
      %658 = vmatprep.subr.bf16.mxu0 0
      %659 = vmatpush2.bf16.xpose.msra.mxu0 0
      %660 = vmatprep.subr.bf16.mxu0 0
      %661 = vmatpush2.bf16.xpose.msra.mxu0 0
      %662 = vmatprep.subr.bf16.mxu0 0
      %663 = vmatpush2.bf16.xpose.msra.mxu0 0
      %664 = vmatprep.mubr.bf16.mxu0 0
      %665 = vmatmul.mubr.bf16.gmra.mxu0 %v627
      %v666 = vpop.f32.mrf.mxu0
      %v667 = vadd.f32 0.0, %v666
      %v668 = vpop.f32.mrf.mxu0
      %v669 = vpop.f32.mrf.mxu0
      %v670 = vadd.f32 0.0, %v669
      %v671 = vpop.f32.mrf.mxu0
      %672 = vdwg.mxu0
      %673 = vrot.lane.b32.xlu0 %v524, 96
      %v674 = vpop.permute.xlu0 %673
      %v676 = vsel %vm527, %v524, 0
      %v679 = vsel %vm527, %v674, 0
      %681 = vmatprep.subr.bf16.mxu0 0
      %682 = vmatpush1.bf16.xpose.msra.mxu0 0
      %683 = vmatprep.subr.bf16.mxu0 0
      %684 = vmatpush1.bf16.xpose.msra.mxu0 0
      %685 = vmatprep.subr.bf16.mxu0 0
      %686 = vmatpush1.bf16.xpose.msra.mxu0 0
      %687 = vmatprep.subr.bf16.mxu0 0
      %688 = vmatpush1.bf16.xpose.msra.mxu0 0
      %689 = vmatprep.subr.bf16.mxu0 0
      %690 = vmatpush1.bf16.xpose.msra.mxu0 0
      %691 = vmatprep.subr.bf16.mxu0 0
      %692 = vmatpush1.bf16.xpose.msra.mxu0 0
      %693 = vmatprep.subr.bf16.mxu0 0
      %694 = vmatpush1.bf16.xpose.msra.mxu0 0
      %695 = vmatprep.subr.bf16.mxu0 0
      %696 = vmatpush1.bf16.xpose.msra.mxu0 %v679
      %697 = vmatprep.subr.bf16.mxu0 0
      %698 = vmatpush2.bf16.xpose.msra.mxu0 0
      %699 = vmatprep.subr.bf16.mxu0 0
      %700 = vmatpush2.bf16.xpose.msra.mxu0 0
      %701 = vmatprep.subr.bf16.mxu0 0
      %702 = vmatpush2.bf16.xpose.msra.mxu0 0
      %703 = vmatprep.subr.bf16.mxu0 0
      %704 = vmatpush2.bf16.xpose.msra.mxu0 0
      %705 = vmatprep.subr.bf16.mxu0 0
      %706 = vmatpush2.bf16.xpose.msra.mxu0 0
      %707 = vmatprep.subr.bf16.mxu0 0
      %708 = vmatpush2.bf16.xpose.msra.mxu0 0
      %709 = vmatprep.subr.bf16.mxu0 0
      %710 = vmatpush2.bf16.xpose.msra.mxu0 0
      %711 = vmatprep.subr.bf16.mxu0 0
      %712 = vmatpush2.bf16.xpose.msra.mxu0 0
      %713 = vmatprep.mubr.bf16.mxu0 0
      %714 = vmatmul.mubr.bf16.gmra.mxu0 %v676
      %v715 = vpop.f32.mrf.mxu0
      %v716 = vadd.f32 0.0, %v715
      %v717 = vpop.f32.mrf.mxu0
      %v718 = vpop.f32.mrf.mxu0
      %v719 = vadd.f32 0.0, %v718
      %v720 = vpop.f32.mrf.mxu0
      %721 = vdwg.mxu0
      %v722 = vmul.f32 %v569, 0.35355338
      %v723 = vmul.f32 %v572, 0.35355338
      %v724 = vmul.f32 %v618, 0.35355338
      %v725 = vmul.f32 %v621, 0.35355338
      %v726 = vmul.f32 %v667, 0.35355338
      %v727 = vmul.f32 %v670, 0.35355338
      %v728 = vmul.f32 %v716, 0.35355338
      %v729 = vmul.f32 %v719, 0.35355338
      %v730 = vlaneseq
      %v731 = vand.u32 %v730, 127
      %vm732 = vcmp.lt.s32.totalorder %v731, 9
      %v733 = vsel %vm732, %v722, -1e+30
      %v734 = vsel %vm732, %v723, -1e+30
      %v735 = vsel %vm732, %v724, -1e+30
      %v736 = vsel %vm732, %v725, -1e+30
      %v737 = vsel %vm732, %v726, -1e+30
      %v738 = vsel %vm732, %v727, -1e+30
      %v739 = vsel %vm732, %v728, -1e+30
      %v740 = vsel %vm732, %v729, -1e+30
      %vm741 = vcmask 130048
      %v742 = vsel %vm741, %v733, -inf
      %743 = vmax.xlane.f32.xlu0 %v742
      %v744 = vpop.xlane.xlu0 %743
      %v745 = vsel %vm741, %v734, -inf
      %746 = vmax.xlane.f32.xlu0 %v745
      %v747 = vpop.xlane.xlu0 %746
      %v748 = vsel %vm741, %v735, -inf
      %749 = vmax.xlane.f32.xlu0 %v748
      %v750 = vpop.xlane.xlu0 %749
      %v751 = vsel %vm741, %v736, -inf
      %752 = vmax.xlane.f32.xlu0 %v751
      %v753 = vpop.xlane.xlu0 %752
      %v754 = vsel %vm741, %v737, -inf
      %755 = vmax.xlane.f32.xlu0 %v754
      %v756 = vpop.xlane.xlu0 %755
      %v757 = vsel %vm741, %v738, -inf
      %758 = vmax.xlane.f32.xlu0 %v757
      %v759 = vpop.xlane.xlu0 %758
      %v760 = vsel %vm741, %v739, -inf
      %761 = vmax.xlane.f32.xlu0 %v760
      %v762 = vpop.xlane.xlu0 %761
      %v763 = vsel %vm741, %v740, -inf
      %764 = vmax.xlane.f32.xlu0 %v763
      %v765 = vpop.xlane.xlu0 %764
      %v766 = vsub.f32 %v733, %v744
      %v767 = vsub.f32 %v734, %v747
      %v768 = vsub.f32 %v735, %v750
      %v769 = vsub.f32 %v736, %v753
      %v770 = vsub.f32 %v737, %v756
      %v771 = vsub.f32 %v738, %v759
      %v772 = vsub.f32 %v739, %v762
      %v773 = vsub.f32 %v740, %v765
      %v774 = vmul.f32 %v766, 1.442695
      %v775 = vpow.pop %v774
      %v776 = vmul.f32 %v767, 1.442695
      %v777 = vpow.pop %v776
      %v778 = vmul.f32 %v768, 1.442695
      %v779 = vpow.pop %v778
      %v780 = vmul.f32 %v769, 1.442695
      %v781 = vpow.pop %v780
      %v782 = vmul.f32 %v770, 1.442695
      %v783 = vpow.pop %v782
      %v784 = vmul.f32 %v771, 1.442695
      %v785 = vpow.pop %v784
      %v786 = vmul.f32 %v772, 1.442695
      %v787 = vpow.pop %v786
      %v788 = vmul.f32 %v773, 1.442695
      %v789 = vpow.pop %v788
      %v790 = vsel %vm741, %v775, 0.0
      %791 = vadd.xlane.f32.xlu0 %v790
      %v792 = vpop.xlane.xlu0 %791
      %v793 = vsel %vm741, %v777, 0.0
      %794 = vadd.xlane.f32.xlu0 %v793
      %v795 = vpop.xlane.xlu0 %794
      %v796 = vsel %vm741, %v779, 0.0
      %797 = vadd.xlane.f32.xlu0 %v796
      %v798 = vpop.xlane.xlu0 %797
      %v799 = vsel %vm741, %v781, 0.0
      %800 = vadd.xlane.f32.xlu0 %v799
      %v801 = vpop.xlane.xlu0 %800
      %v802 = vsel %vm741, %v783, 0.0
      %803 = vadd.xlane.f32.xlu0 %v802
      %v804 = vpop.xlane.xlu0 %803
      %v805 = vsel %vm741, %v785, 0.0
      %806 = vadd.xlane.f32.xlu0 %v805
      %v807 = vpop.xlane.xlu0 %806
      %v808 = vsel %vm741, %v787, 0.0
      %809 = vadd.xlane.f32.xlu0 %v808
      %v810 = vpop.xlane.xlu0 %809
      %v811 = vsel %vm741, %v789, 0.0
      %812 = vadd.xlane.f32.xlu0 %v811
      %v813 = vpop.xlane.xlu0 %812
      %v814 = vrcp.pop %v792
      %v815 = vrcp.pop %v795
      %v816 = vrcp.pop %v798
      %v817 = vrcp.pop %v801
      %v818 = vrcp.pop %v804
      %v819 = vrcp.pop %v807
      %v820 = vrcp.pop %v810
      %v821 = vrcp.pop %v813
      %v822 = vmul.f32 %v775, %v814
      %v823 = vmul.f32 %v777, %v815
      %v824 = vmul.f32 %v779, %v816
      %v825 = vmul.f32 %v781, %v817
      %v826 = vmul.f32 %v783, %v818
      %v827 = vmul.f32 %v785, %v819
      %v828 = vmul.f32 %v787, %v820
      %v829 = vmul.f32 %v789, %v821
      %v830 = vpack.c.bf16 %v823, %v822
      %v831 = vpack.c.bf16 %v825, %v824
      %v832 = vpack.c.bf16 %v827, %v826
      %v833 = vpack.c.bf16 %v829, %v828
      %834 = vrot.lane.b32.xlu0 %v517, 64
      %v835 = vpop.permute.xlu0 %834
      %v838 = vsel %vm741, %v830, 0
      %840 = vmatprep.subr.bf16.mxu0 0
      %841 = vmatpush1.bf16.msra.mxu0 0
      %842 = vmatprep.subr.bf16.mxu0 0
      %843 = vmatpush1.bf16.msra.mxu0 0
      %844 = vmatprep.subr.bf16.mxu0 0
      %845 = vmatpush1.bf16.msra.mxu0 0
      %846 = vmatprep.subr.bf16.mxu0 0
      %847 = vmatpush1.bf16.msra.mxu0 0
      %848 = vmatprep.subr.bf16.mxu0 0
      %849 = vmatpush1.bf16.msra.mxu0 0
      %850 = vmatprep.subr.bf16.mxu0 0
      %851 = vmatpush1.bf16.msra.mxu0 0
      %852 = vmatprep.subr.bf16.mxu0 0
      %853 = vmatpush1.bf16.msra.mxu0 0
      %854 = vmatprep.subr.bf16.mxu0 0
      %855 = vmatpush1.bf16.msra.mxu0 %v835
      %856 = vmatprep.subr.bf16.mxu0 0
      %857 = vmatpush2.bf16.msra.mxu0 0
      %858 = vmatprep.subr.bf16.mxu0 0
      %859 = vmatpush2.bf16.msra.mxu0 0
      %860 = vmatprep.subr.bf16.mxu0 0
      %861 = vmatpush2.bf16.msra.mxu0 0
      %862 = vmatprep.subr.bf16.mxu0 0
      %863 = vmatpush2.bf16.msra.mxu0 0
      %864 = vmatprep.subr.bf16.mxu0 0
      %865 = vmatpush2.bf16.msra.mxu0 0
      %866 = vmatprep.subr.bf16.mxu0 0
      %867 = vmatpush2.bf16.msra.mxu0 0
      %868 = vmatprep.subr.bf16.mxu0 0
      %869 = vmatpush2.bf16.msra.mxu0 0
      %870 = vmatprep.subr.bf16.mxu0 0
      %871 = vmatpush2.bf16.msra.mxu0 0
      %872 = vmatprep.mubr.bf16.mxu0 0
      %873 = vmatmul.mubr.bf16.gmra.mxu0 %v838
      %v874 = vpop.f32.mrf.mxu0
      %v875 = vadd.f32 0.0, %v874
      %v876 = vpop.f32.mrf.mxu0
      %v877 = vpop.f32.mrf.mxu0
      %v878 = vadd.f32 0.0, %v877
      %v879 = vpop.f32.mrf.mxu0
      %880 = vdwg.mxu0
      %881 = vrot.lane.b32.xlu0 %v520, 64
      %v882 = vpop.permute.xlu0 %881
      %v885 = vsel %vm741, %v831, 0
      %887 = vmatprep.subr.bf16.mxu0 0
      %888 = vmatpush1.bf16.msra.mxu0 0
      %889 = vmatprep.subr.bf16.mxu0 0
      %890 = vmatpush1.bf16.msra.mxu0 0
      %891 = vmatprep.subr.bf16.mxu0 0
      %892 = vmatpush1.bf16.msra.mxu0 0
      %893 = vmatprep.subr.bf16.mxu0 0
      %894 = vmatpush1.bf16.msra.mxu0 0
      %895 = vmatprep.subr.bf16.mxu0 0
      %896 = vmatpush1.bf16.msra.mxu0 0
      %897 = vmatprep.subr.bf16.mxu0 0
      %898 = vmatpush1.bf16.msra.mxu0 0
      %899 = vmatprep.subr.bf16.mxu0 0
      %900 = vmatpush1.bf16.msra.mxu0 0
      %901 = vmatprep.subr.bf16.mxu0 0
      %902 = vmatpush1.bf16.msra.mxu0 %v882
      %903 = vmatprep.subr.bf16.mxu0 0
      %904 = vmatpush2.bf16.msra.mxu0 0
      %905 = vmatprep.subr.bf16.mxu0 0
      %906 = vmatpush2.bf16.msra.mxu0 0
      %907 = vmatprep.subr.bf16.mxu0 0
      %908 = vmatpush2.bf16.msra.mxu0 0
      %909 = vmatprep.subr.bf16.mxu0 0
      %910 = vmatpush2.bf16.msra.mxu0 0
      %911 = vmatprep.subr.bf16.mxu0 0
      %912 = vmatpush2.bf16.msra.mxu0 0
      %913 = vmatprep.subr.bf16.mxu0 0
      %914 = vmatpush2.bf16.msra.mxu0 0
      %915 = vmatprep.subr.bf16.mxu0 0
      %916 = vmatpush2.bf16.msra.mxu0 0
      %917 = vmatprep.subr.bf16.mxu0 0
      %918 = vmatpush2.bf16.msra.mxu0 0
      %919 = vmatprep.mubr.bf16.mxu0 0
      %920 = vmatmul.mubr.bf16.gmra.mxu0 %v885
      %v921 = vpop.f32.mrf.mxu0
      %v922 = vadd.f32 0.0, %v921
      %v923 = vpop.f32.mrf.mxu0
      %v924 = vpop.f32.mrf.mxu0
      %v925 = vadd.f32 0.0, %v924
      %v926 = vpop.f32.mrf.mxu0
      %927 = vdwg.mxu0
      %928 = vrot.lane.b32.xlu0 %v522, 64
      %v929 = vpop.permute.xlu0 %928
      %v932 = vsel %vm741, %v832, 0
      %934 = vmatprep.subr.bf16.mxu0 0
      %935 = vmatpush1.bf16.msra.mxu0 0
      %936 = vmatprep.subr.bf16.mxu0 0
      %937 = vmatpush1.bf16.msra.mxu0 0
      %938 = vmatprep.subr.bf16.mxu0 0
      %939 = vmatpush1.bf16.msra.mxu0 0
      %940 = vmatprep.subr.bf16.mxu0 0
      %941 = vmatpush1.bf16.msra.mxu0 0
      %942 = vmatprep.subr.bf16.mxu0 0
      %943 = vmatpush1.bf16.msra.mxu0 0
      %944 = vmatprep.subr.bf16.mxu0 0
      %945 = vmatpush1.bf16.msra.mxu0 0
      %946 = vmatprep.subr.bf16.mxu0 0
      %947 = vmatpush1.bf16.msra.mxu0 0
      %948 = vmatprep.subr.bf16.mxu0 0
      %949 = vmatpush1.bf16.msra.mxu0 %v929
      %950 = vmatprep.subr.bf16.mxu0 0
      %951 = vmatpush2.bf16.msra.mxu0 0
      %952 = vmatprep.subr.bf16.mxu0 0
      %953 = vmatpush2.bf16.msra.mxu0 0
      %954 = vmatprep.subr.bf16.mxu0 0
      %955 = vmatpush2.bf16.msra.mxu0 0
      %956 = vmatprep.subr.bf16.mxu0 0
      %957 = vmatpush2.bf16.msra.mxu0 0
      %958 = vmatprep.subr.bf16.mxu0 0
      %959 = vmatpush2.bf16.msra.mxu0 0
      %960 = vmatprep.subr.bf16.mxu0 0
      %961 = vmatpush2.bf16.msra.mxu0 0
      %962 = vmatprep.subr.bf16.mxu0 0
      %963 = vmatpush2.bf16.msra.mxu0 0
      %964 = vmatprep.subr.bf16.mxu0 0
      %965 = vmatpush2.bf16.msra.mxu0 0
      %966 = vmatprep.mubr.bf16.mxu0 0
      %967 = vmatmul.mubr.bf16.gmra.mxu0 %v932
      %v968 = vpop.f32.mrf.mxu0
      %v969 = vadd.f32 0.0, %v968
      %v970 = vpop.f32.mrf.mxu0
      %v971 = vpop.f32.mrf.mxu0
      %v972 = vadd.f32 0.0, %v971
      %v973 = vpop.f32.mrf.mxu0
      %974 = vdwg.mxu0
      %975 = vrot.lane.b32.xlu0 %v524, 64
      %v976 = vpop.permute.xlu0 %975
      %v979 = vsel %vm741, %v833, 0
      %981 = vmatprep.subr.bf16.mxu0 0
      %982 = vmatpush1.bf16.msra.mxu0 0
      %983 = vmatprep.subr.bf16.mxu0 0
      %984 = vmatpush1.bf16.msra.mxu0 0
      %985 = vmatprep.subr.bf16.mxu0 0
      %986 = vmatpush1.bf16.msra.mxu0 0
      %987 = vmatprep.subr.bf16.mxu0 0
      %988 = vmatpush1.bf16.msra.mxu0 0
      %989 = vmatprep.subr.bf16.mxu0 0
      %990 = vmatpush1.bf16.msra.mxu0 0
      %991 = vmatprep.subr.bf16.mxu0 0
      %992 = vmatpush1.bf16.msra.mxu0 0
      %993 = vmatprep.subr.bf16.mxu0 0
      %994 = vmatpush1.bf16.msra.mxu0 0
      %995 = vmatprep.subr.bf16.mxu0 0
      %996 = vmatpush1.bf16.msra.mxu0 %v976
      %997 = vmatprep.subr.bf16.mxu0 0
      %998 = vmatpush2.bf16.msra.mxu0 0
      %999 = vmatprep.subr.bf16.mxu0 0
      %1000 = vmatpush2.bf16.msra.mxu0 0
      %1001 = vmatprep.subr.bf16.mxu0 0
      %1002 = vmatpush2.bf16.msra.mxu0 0
      %1003 = vmatprep.subr.bf16.mxu0 0
      %1004 = vmatpush2.bf16.msra.mxu0 0
      %1005 = vmatprep.subr.bf16.mxu0 0
      %1006 = vmatpush2.bf16.msra.mxu0 0
      %1007 = vmatprep.subr.bf16.mxu0 0
      %1008 = vmatpush2.bf16.msra.mxu0 0
      %1009 = vmatprep.subr.bf16.mxu0 0
      %1010 = vmatpush2.bf16.msra.mxu0 0
      %1011 = vmatprep.subr.bf16.mxu0 0
      %1012 = vmatpush2.bf16.msra.mxu0 0
      %1013 = vmatprep.mubr.bf16.mxu0 0
      %1014 = vmatmul.mubr.bf16.gmra.mxu0 %v979
      %v1015 = vpop.f32.mrf.mxu0
      %v1016 = vadd.f32 0.0, %v1015
      %v1017 = vpop.f32.mrf.mxu0
      %v1018 = vpop.f32.mrf.mxu0
      %v1019 = vadd.f32 0.0, %v1018
      %v1020 = vpop.f32.mrf.mxu0
      %1021 = vdwg.mxu0
      %1024 = vrot.lane.b32.xlu0 %v922, 8
      %v1025 = vpop.permute.xlu0 %1024
      %1026 = vrot.lane.b32.xlu0 %v925, 8
      %v1027 = vpop.permute.xlu0 %1026
      %1032 = vrot.lane.b32.xlu0 %v969, 16
      %v1033 = vpop.permute.xlu0 %1032
      %1034 = vrot.lane.b32.xlu0 %v972, 16
      %v1035 = vpop.permute.xlu0 %1034
      %1040 = vrot.lane.b32.xlu0 %v1016, 24
      %v1041 = vpop.permute.xlu0 %1040
      %1042 = vrot.lane.b32.xlu0 %v1019, 24
      %v1043 = vpop.permute.xlu0 %1042
      %v1046 = vsel %vm527, %v875, %v1025
      %v1047 = vsel %vm527, %v878, %v1027
      %v1048 = vsel %vm741, %v1046, %v1033
      %v1049 = vsel %vm741, %v1047, %v1035
      %vm1050 = vcmask 195584
      %v1051 = vsel %vm1050, %v1048, %v1041
      %v1052 = vsel %vm1050, %v1049, %v1043
      %v1053 = vpack.c.bf16 %v1052, %v1051
      %v1054 = vld [vmem:[%s3] sm:$0xf]
      %v1055 = vld [vmem:[%s3 + $0x4] sm:$0xf]
      %v1056 = vld [vmem:[%s3 + $0x8] sm:$0xf]
      %v1057 = vld [vmem:[%s3 + $0xc] sm:$0xf]
      %v1058 = vld [vmem:[%s4] sm:$0x1]
      %v1060 = vlaneseq
      %v1061 = vshrl.u32 %v1060, 7
      %v1062 = vsub.s32 0, %v1061
      %v1063 = vrot.slane %v1058, %v1062
      %v1069 = vunpack.c.l.b16 %v1054
      %v1070 = vunpack.c.l.b16 %v1055
      %v1071 = vunpack.c.l.b16 %v1056
      %v1072 = vunpack.c.l.b16 %v1057
      %v1073 = vpack.c.b16 %v1070, %v1069
      %v1074 = vpack.c.b16 %v1072, %v1071
      %v1078 = vsel %vm472, %v1053, 0
      %1080 = vmatprep.subr.bf16.mxu0 0
      %1081 = vmatpush1.bf16.msra.mxu0 0
      %1082 = vmatprep.subr.bf16.mxu0 0
      %1083 = vmatpush1.bf16.msra.mxu0 0
      %1084 = vmatprep.subr.bf16.mxu0 0
      %1085 = vmatpush1.bf16.msra.mxu0 0
      %1086 = vmatprep.subr.bf16.mxu0 0
      %1087 = vmatpush1.bf16.msra.mxu0 0
      %1088 = vmatprep.subr.bf16.mxu0 0
      %1089 = vmatpush1.bf16.msra.mxu0 0
      %1090 = vmatprep.subr.bf16.mxu0 0
      %1091 = vmatpush1.bf16.msra.mxu0 0
      %1092 = vmatprep.subr.bf16.mxu0 0
      %1093 = vmatpush1.bf16.msra.mxu0 %v1074
      %1094 = vmatprep.subr.bf16.mxu0 0
      %1095 = vmatpush1.bf16.msra.mxu0 %v1073
      %1096 = vmatprep.subr.bf16.mxu0 0
      %1097 = vmatpush2.bf16.msra.mxu0 0
      %1098 = vmatprep.subr.bf16.mxu0 0
      %1099 = vmatpush2.bf16.msra.mxu0 0
      %1100 = vmatprep.subr.bf16.mxu0 0
      %1101 = vmatpush2.bf16.msra.mxu0 0
      %1102 = vmatprep.subr.bf16.mxu0 0
      %1103 = vmatpush2.bf16.msra.mxu0 0
      %1104 = vmatprep.subr.bf16.mxu0 0
      %1105 = vmatpush2.bf16.msra.mxu0 0
      %1106 = vmatprep.subr.bf16.mxu0 0
      %1107 = vmatpush2.bf16.msra.mxu0 0
      %1108 = vmatprep.subr.bf16.mxu0 0
      %1109 = vmatpush2.bf16.msra.mxu0 0
      %1110 = vmatprep.subr.bf16.mxu0 0
      %1111 = vmatpush2.bf16.msra.mxu0 0
      %1112 = vmatprep.mubr.bf16.mxu0 0
      %1113 = vmatmul.mubr.bf16.gmra.mxu0 %v1078
      %v1114 = vpop.f32.mrf.mxu0
      %v1115 = vadd.f32 %v1063, %v1114
      %v1116 = vpop.f32.mrf.mxu0
      %v1117 = vpop.f32.mrf.mxu0
      %v1118 = vadd.f32 %v1063, %v1117
      %v1119 = vpop.f32.mrf.mxu0
      %1120 = vdwg.mxu0
      %v1121 = vunpack.c.l.bf16 %v442
      %v1122 = vunpack.c.l.bf16 %v443
      %v1123 = vadd.f32 %v1121, %v1115
      %v1124 = vadd.f32 %v1122, %v1118
      %v1125 = vld [vmem:[%s5] sm:$0x1]
      %v1126 = vld [vmem:[%s6] sm:$0x1]
      %v1127 = vsel %vm472, %v1123, 0.0
      %1128 = vadd.xlane.f32.xlu0 %v1127
      %v1129 = vpop.xlane.xlu0 %1128
      %v1130 = vsel %vm472, %v1124, 0.0
      %1131 = vadd.xlane.f32.xlu0 %v1130
      %v1132 = vpop.xlane.xlu0 %1131
      %v1133 = vrcp.pop 32.0
      %v1134 = vmul.f32 %v1129, %v1133
      %v1135 = vmul.f32 %v1132, %v1133
      %v1136 = vsub.f32 %v1123, %v1134
      %v1137 = vsub.f32 %v1124, %v1135
      %v1138 = vmul.f32 %v1136, %v1136
      %v1139 = vmul.f32 %v1137, %v1137
      %v1140 = vsel %vm472, %v1138, 0.0
      %1141 = vadd.xlane.f32.xlu0 %v1140
      %v1142 = vpop.xlane.xlu0 %1141
      %v1143 = vsel %vm472, %v1139, 0.0
      %1144 = vadd.xlane.f32.xlu0 %v1143
      %v1145 = vpop.xlane.xlu0 %1144
      %v1146 = vmul.f32 %v1142, %v1133
      %v1147 = vmul.f32 %v1145, %v1133
      %v1148 = vadd.f32 %v1146, 1e-05
      %v1149 = vadd.f32 %v1147, 1e-05
      %v1150 = vrsqrt.pop %v1148
      %v1151 = vrsqrt.pop %v1149
      %v1152 = vmul.f32 %v1136, %v1150
      %v1153 = vmul.f32 %v1137, %v1151
      %v1155 = vlaneseq
      %v1156 = vshrl.u32 %v1155, 7
      %v1157 = vsub.s32 0, %v1156
      %v1158 = vrot.slane %v1125, %v1157
      %v1160 = vmul.f32 %v1152, %v1158
      %v1161 = vmul.f32 %v1153, %v1158
      %v1163 = vlaneseq
      %v1164 = vshrl.u32 %v1163, 7
      %v1165 = vsub.s32 0, %v1164
      %v1166 = vrot.slane %v1126, %v1165
      %v1168 = vadd.f32 %v1160, %v1166
      %v1169 = vadd.f32 %v1161, %v1166
      %v1170 = vpack.c.bf16 %v1169, %v1168
      %v1171 = vld [vmem:[%s7] sm:$0xf]
      %v1172 = vld [vmem:[%s7 + $0x4] sm:$0xf]
      %v1173 = vld [vmem:[%s7 + $0x8] sm:$0xf]
      %v1174 = vld [vmem:[%s7 + $0xc] sm:$0xf]
      %v1175 = vld [vmem:[%s8] sm:$0x1]
      %v1177 = vlaneseq
      %v1178 = vshrl.u32 %v1177, 7
      %v1179 = vsub.s32 0, %v1178
      %v1180 = vrot.slane %v1175, %v1179
      %v1186 = vunpack.c.l.b16 %v1171
      %v1187 = vunpack.c.l.b16 %v1172
      %v1188 = vunpack.c.l.b16 %v1173
      %v1189 = vunpack.c.l.b16 %v1174
      %v1190 = vpack.c.b16 %v1187, %v1186
      %v1191 = vpack.c.b16 %v1189, %v1188
      %v1195 = vsel %vm472, %v1170, 0
      %1197 = vmatprep.subr.bf16.mxu0 0
      %1198 = vmatpush1.bf16.msra.mxu0 0
      %1199 = vmatprep.subr.bf16.mxu0 0
      %1200 = vmatpush1.bf16.msra.mxu0 0
      %1201 = vmatprep.subr.bf16.mxu0 0
      %1202 = vmatpush1.bf16.msra.mxu0 0
      %1203 = vmatprep.subr.bf16.mxu0 0
      %1204 = vmatpush1.bf16.msra.mxu0 0
      %1205 = vmatprep.subr.bf16.mxu0 0
      %1206 = vmatpush1.bf16.msra.mxu0 0
      %1207 = vmatprep.subr.bf16.mxu0 0
      %1208 = vmatpush1.bf16.msra.mxu0 0
      %1209 = vmatprep.subr.bf16.mxu0 0
      %1210 = vmatpush1.bf16.msra.mxu0 %v1191
      %1211 = vmatprep.subr.bf16.mxu0 0
      %1212 = vmatpush1.bf16.msra.mxu0 %v1190
      %1213 = vmatprep.subr.bf16.mxu0 0
      %1214 = vmatpush2.bf16.msra.mxu0 0
      %1215 = vmatprep.subr.bf16.mxu0 0
      %1216 = vmatpush2.bf16.msra.mxu0 0
      %1217 = vmatprep.subr.bf16.mxu0 0
      %1218 = vmatpush2.bf16.msra.mxu0 0
      %1219 = vmatprep.subr.bf16.mxu0 0
      %1220 = vmatpush2.bf16.msra.mxu0 0
      %1221 = vmatprep.subr.bf16.mxu0 0
      %1222 = vmatpush2.bf16.msra.mxu0 0
      %1223 = vmatprep.subr.bf16.mxu0 0
      %1224 = vmatpush2.bf16.msra.mxu0 0
      %1225 = vmatprep.subr.bf16.mxu0 0
      %1226 = vmatpush2.bf16.msra.mxu0 0
      %1227 = vmatprep.subr.bf16.mxu0 0
      %1228 = vmatpush2.bf16.msra.mxu0 0
      %1229 = vmatprep.mubr.bf16.mxu0 0
      %1230 = vmatmul.mubr.bf16.gmra.mxu0 %v1195
      %v1231 = vpop.f32.mrf.mxu0
      %v1232 = vadd.f32 %v1180, %v1231
      %v1233 = vpop.f32.mrf.mxu0
      %v1234 = vpop.f32.mrf.mxu0
      %v1235 = vadd.f32 %v1180, %v1234
      %v1236 = vpop.f32.mrf.mxu0
      %1237 = vdwg.mxu0
      %v1238 = vmul.f32 %v1232, 0.5
      %v1239 = vmul.f32 %v1235, 0.5
      %v1240 = vmul.f32 %v1232, %v1232
      %v1241 = vmul.f32 %v1235, %v1235
      %v1242 = vmul.f32 %v1240, %v1232
      %v1243 = vmul.f32 %v1241, %v1235
      %v1244 = vmul.f32 %v1242, 0.044715
      %v1245 = vmul.f32 %v1243, 0.044715
      %v1246 = vadd.f32 %v1232, %v1244
      %v1247 = vadd.f32 %v1235, %v1245
      %v1248 = vmul.f32 %v1246, 0.7978846
      %v1249 = vmul.f32 %v1247, 0.7978846
      %v1250 = vtanh.pop %v1248
      %v1251 = vtanh.pop %v1249
      %v1252 = vadd.f32 %v1250, 1.0
      %v1253 = vadd.f32 %v1251, 1.0
      %v1254 = vmul.f32 %v1238, %v1252
      %v1255 = vmul.f32 %v1239, %v1253
      %v1256 = vpack.c.bf16 %v1255, %v1254
      %v1257 = vld [vmem:[%s9] sm:$0xf]
      %v1258 = vld [vmem:[%s9 + $0x4] sm:$0xf]
      %v1259 = vld [vmem:[%s9 + $0x8] sm:$0xf]
      %v1260 = vld [vmem:[%s9 + $0xc] sm:$0xf]
      %v1261 = vld [vmem:[%s9 + $0x10] sm:$0xf]
      %v1262 = vld [vmem:[%s9 + $0x14] sm:$0xf]
      %v1263 = vld [vmem:[%s9 + $0x18] sm:$0xf]
      %v1264 = vld [vmem:[%s9 + $0x1c] sm:$0xf]
      %v1265 = vld [vmem:[%s10] sm:$0x1]
      %v1267 = vlaneseq
      %v1268 = vshrl.u32 %v1267, 7
      %v1269 = vsub.s32 0, %v1268
      %v1270 = vrot.slane %v1265, %v1269
      %v1280 = vunpack.c.l.b16 %v1257
      %v1281 = vunpack.c.l.b16 %v1258
      %v1282 = vunpack.c.l.b16 %v1259
      %v1283 = vunpack.c.l.b16 %v1260
      %v1284 = vunpack.c.l.b16 %v1261
      %v1285 = vunpack.c.l.b16 %v1262
      %v1286 = vunpack.c.l.b16 %v1263
      %v1287 = vunpack.c.l.b16 %v1264
      %v1288 = vpack.c.b16 %v1281, %v1280
      %v1289 = vpack.c.b16 %v1283, %v1282
      %v1290 = vpack.c.b16 %v1285, %v1284
      %v1291 = vpack.c.b16 %v1287, %v1286
      %vm1296 = vcmask 523264
      %v1298 = vsel %vm1296, %v1256, 0
      %1300 = vmatprep.subr.bf16.mxu0 0
      %1301 = vmatpush1.bf16.msra.mxu0 0
      %1302 = vmatprep.subr.bf16.mxu0 0
      %1303 = vmatpush1.bf16.msra.mxu0 0
      %1304 = vmatprep.subr.bf16.mxu0 0
      %1305 = vmatpush1.bf16.msra.mxu0 0
      %1306 = vmatprep.subr.bf16.mxu0 0
      %1307 = vmatpush1.bf16.msra.mxu0 0
      %1308 = vmatprep.subr.bf16.mxu0 0
      %1309 = vmatpush1.bf16.msra.mxu0 %v1291
      %1310 = vmatprep.subr.bf16.mxu0 0
      %1311 = vmatpush1.bf16.msra.mxu0 %v1290
      %1312 = vmatprep.subr.bf16.mxu0 0
      %1313 = vmatpush1.bf16.msra.mxu0 %v1289
      %1314 = vmatprep.subr.bf16.mxu0 0
      %1315 = vmatpush1.bf16.msra.mxu0 %v1288
      %1316 = vmatprep.subr.bf16.mxu0 0
      %1317 = vmatpush2.bf16.msra.mxu0 0
      %1318 = vmatprep.subr.bf16.mxu0 0
      %1319 = vmatpush2.bf16.msra.mxu0 0
      %1320 = vmatprep.subr.bf16.mxu0 0
      %1321 = vmatpush2.bf16.msra.mxu0 0
      %1322 = vmatprep.subr.bf16.mxu0 0
      %1323 = vmatpush2.bf16.msra.mxu0 0
      %1324 = vmatprep.subr.bf16.mxu0 0
      %1325 = vmatpush2.bf16.msra.mxu0 0
      %1326 = vmatprep.subr.bf16.mxu0 0
      %1327 = vmatpush2.bf16.msra.mxu0 0
      %1328 = vmatprep.subr.bf16.mxu0 0
      %1329 = vmatpush2.bf16.msra.mxu0 0
      %1330 = vmatprep.subr.bf16.mxu0 0
      %1331 = vmatpush2.bf16.msra.mxu0 0
      %1332 = vmatprep.mubr.bf16.mxu0 0
      %1333 = vmatmul.mubr.bf16.gmra.mxu0 %v1298
      %v1334 = vpop.f32.mrf.mxu0
      %v1335 = vadd.f32 %v1270, %v1334
      %v1336 = vpop.f32.mrf.mxu0
      %v1337 = vpop.f32.mrf.mxu0
      %v1338 = vadd.f32 %v1270, %v1337
      %v1339 = vpop.f32.mrf.mxu0
      %1340 = vdwg.mxu0
      %v1341 = vadd.f32 %v1168, %v1335
      %v1342 = vadd.f32 %v1169, %v1338
      %v1343 = vld [vmem:[%s11] sm:$0x1]
      %v1344 = vld [vmem:[%s12] sm:$0x1]
      %v1345 = vsel %vm472, %v1341, 0.0
      %1346 = vadd.xlane.f32.xlu0 %v1345
      %v1347 = vpop.xlane.xlu0 %1346
      %v1348 = vsel %vm472, %v1342, 0.0
      %1349 = vadd.xlane.f32.xlu0 %v1348
      %v1350 = vpop.xlane.xlu0 %1349
      %v1351 = vmul.f32 %v1347, %v1133
      %v1352 = vmul.f32 %v1350, %v1133
      %v1353 = vsub.f32 %v1341, %v1351
      %v1354 = vsub.f32 %v1342, %v1352
      %v1355 = vmul.f32 %v1353, %v1353
      %v1356 = vmul.f32 %v1354, %v1354
      %v1357 = vsel %vm472, %v1355, 0.0
      %1358 = vadd.xlane.f32.xlu0 %v1357
      %v1359 = vpop.xlane.xlu0 %1358
      %v1360 = vsel %vm472, %v1356, 0.0
      %1361 = vadd.xlane.f32.xlu0 %v1360
      %v1362 = vpop.xlane.xlu0 %1361
      %v1363 = vmul.f32 %v1359, %v1133
      %v1364 = vmul.f32 %v1362, %v1133
      %v1365 = vadd.f32 %v1363, 1e-05
      %v1366 = vadd.f32 %v1364, 1e-05
      %v1367 = vrsqrt.pop %v1365
      %v1368 = vrsqrt.pop %v1366
      %v1369 = vmul.f32 %v1353, %v1367
      %v1370 = vmul.f32 %v1354, %v1368
      %v1372 = vlaneseq
      %v1373 = vshrl.u32 %v1372, 7
      %v1374 = vsub.s32 0, %v1373
      %v1375 = vrot.slane %v1343, %v1374
      %v1377 = vmul.f32 %v1369, %v1375
      %v1378 = vmul.f32 %v1370, %v1375
      %v1380 = vlaneseq
      %v1381 = vshrl.u32 %v1380, 7
      %v1382 = vsub.s32 0, %v1381
      %v1383 = vrot.slane %v1344, %v1382
      %v1385 = vadd.f32 %v1377, %v1383
      %v1386 = vadd.f32 %v1378, %v1383
      %v1387 = vpack.c.bf16 %v1386, %v1385
      %v1389 = vunpack.c.l.b16 %v1387
      %v1390 = vunpack.c.h.b16 %v1387
      %v1391 = vpack.c.b16 %v1389, %v1389
      %v1392 = vpack.c.b16 %v1390, %v1390
      %vm1395 = vcmask 257024
      %1396 = vst.msk [vmem:[%s440] sm:$0xf] %vm1395, %v1391
      %1397 = vst.msk [vmem:[%s440 + $0x4] sm:$0xf] %vm1395, %v1392
      %p1398 = scmp.lt.s32.totalorder %s24, 1
      %s1399 = scalar_select %p1398, %s24, 1
      %s1400 = smul.addr %s1399, 2
      %s1401 = smul.addr %s1400, 4
      %s1402 = scalar_lea.vmem %s13, %s1401
      // Predicated region
      $region73: #{_lambda_.5} parent=71 // pred_check
        %p1403 = pneg %p320
      $region74: #{_lambda_.5} parent=71 // pred_check_branch
        %1405 = sbr.rel (%p1403) target = $region76
      $region75: #{_lambda_.5} parent=71 // pred_region
        _
      $region76: #{_lambda_.5} parent=71 // pred_fallthru
        _
    $region72: #{_lambda_.5} parent=5 // pred_fallthru
      _
    %p1406 = scmp.le.s32.totalorder 2, %s19
    // Predicated region
    $region77: #{_lambda_.5} parent=5 // pred_check
      %p1407 = pneg %p1406
    $region78: #{_lambda_.5} parent=5 // pred_check_branch
      %1409 = sbr.rel (%p1407) target = $region80
    $region79: #{_lambda_.5} parent=5 // pred_region
      %s1410 = ssub.s32 %s19, 2
      // Predicated region
      $region81: #{_lambda_.5} parent=79 // pred_check
        %p1411 = pneg %p326
      $region82: #{_lambda_.5} parent=79 // pred_check_branch
        %1413 = sbr.rel (%p1411) target = $region84
      $region83: #{_lambda_.5} parent=79 // pred_region
        %p1414 = scmp.lt.s32.totalorder %s25, 1
        %s1415 = scalar_select %p1414, %s25, 1
        %s1416 = smul.addr %s1415, 2
        %s1417 = smul.addr %s1416, 4
        %s1418 = scalar_lea.vmem %s13, %s1417
      $region84: #{_lambda_.5} parent=79 // pred_fallthru
        _
    $region80: #{_lambda_.5} parent=5 // pred_fallthru
      _
  $region6: #{_lambda_.5} parent=0 // loop_footer
    %s23 = sadd.s32 1, %s19
  $region7: #{_lambda_.5} parent=0 // loop_footer_branch
    %18 = sbr.rel target = $region3
  $region8: #{_lambda_.5} parent=0 // loop_exit
    _

// kernel: _lambda_.4
$region0: #{_lambda_.4}
  #allocation0 [shape = 'u32[]', space=smem, size = 0x4, offset = 0x4, fixed_abs, tag = 'smem constant byte address 0x4 - core index']
  #allocation1 [shape = 'u32[144,128]{1,0:T(1,128)}', space=vmem, size = 0x12000, scoped, tag = 'internal scratch']
  %s0 = inlined_call_operand.vmem [shape: bf16[2,16,32], index: 0, kind: input, shape index: {}, may-alias: {0,13}]
  %s1 = inlined_call_operand.vmem [shape: bf16[32,96], index: 1, kind: input, shape index: {}]
  %s2 = inlined_call_operand.vmem [shape: f32[1,96], index: 2, kind: input, shape index: {}]
  %s3 = inlined_call_operand.vmem [shape: bf16[32,32], index: 3, kind: input, shape index: {}]
  %s4 = inlined_call_operand.vmem [shape: f32[1,32], index: 4, kind: input, shape index: {}, may-alias: {4,6,12}]
  %s5 = inlined_call_operand.vmem [shape: f32[1,32], index: 5, kind: input, shape index: {}, may-alias: {5,11}]
  %s6 = inlined_call_operand.vmem [shape: f32[1,32], index: 6, kind: input, shape index: {}, may-alias: {4,6,12}]
  %s7 = inlined_call_operand.vmem [shape: bf16[32,64], index: 7, kind: input, shape index: {}]
  %s8 = inlined_call_operand.hbm [shape: f32[1,64], index: 8, kind: input, shape index: {}]
  %s9 = inlined_call_operand.vmem [shape: bf16[64,32], index: 9, kind: input, shape index: {}]
  %s10 = inlined_call_operand.vmem [shape: f32[1,32], index: 10, kind: input, shape index: {}]
  %s11 = inlined_call_operand.vmem [shape: f32[1,32], index: 11, kind: input, shape index: {}, may-alias: {5,11}]
  %s12 = inlined_call_operand.vmem [shape: f32[1,32], index: 12, kind: input, shape index: {}, may-alias: {4,6,12}]
  %s13 = inlined_call_operand.vmem [shape: bf16[2,16,32], index: 13, kind: output, shape index: {}, may-alias: {0,13}]
  %s14 = sld [smem:[#allocation0]]
  $region89: #{_lambda_.4} parent=0
    _
  %s16 = ssub.s32 1, %s14
  %s17 = scalar_select 0, %s16, %s14
  $region1: #{_lambda_.4} parent=0
    #allocation2 [shape = 'u8[512]{0}', space=vmem, size = 0x400, scoped, tag = 'input window, operand 8, single buffered']
    #allocation3 [shape = 's32[2]{0}', space=sflag, size = 0x8, scoped, tag = 'scoped memory for _lambda_.4']
    %18 = vsyncpa [#allocation3], 0
    loop: start=0, step=1, limit=4
    $region2: #{_lambda_.4} parent=1 // loop_pre_header
      _
    $region3: #{_lambda_.4} parent=1 // loop_header
      %s20 = sphi 0, %s24
      %p21 = scmp.ge.s32.totalorder %s20, 4
      %s30 = sphi 0, %s32
      %s33 = sphi 0, %s30
      %s34 = sphi 0, %s33
      %s50 = sphi 0, %s34
      %s54 = sphi 0, %s54
      %s56 = sphi 0, %s54
      %s57 = sphi 0, %s56
      %s71 = sphi 0, %s57
      %s75 = sphi 0, %s75
      %s77 = sphi 0, %s75
      %s78 = sphi 0, %s77
      %s92 = sphi 0, %s78
      %s96 = sphi 0, %s96
      %s98 = sphi 0, %s96
      %s99 = sphi 0, %s98
      %s113 = sphi 0, %s99
      %s117 = sphi 0, %s117
      %s119 = sphi 0, %s117
      %s120 = sphi 0, %s119
      %s134 = sphi 0, %s120
      %s138 = sphi 0, %s138
      %s140 = sphi 0, %s138
      %s141 = sphi 0, %s140
      %s155 = sphi 0, %s141
      %s159 = sphi 0, %s159
      %s161 = sphi 0, %s159
      %s162 = sphi 0, %s161
      %s176 = sphi 0, %s162
      %s180 = sphi 0, %s180
      %s182 = sphi 0, %s180
      %s183 = sphi 0, %s182
      %s197 = sphi 0, %s183
      %s201 = sphi 0, %s201
      %s203 = sphi 0, %s201
      %s204 = sphi 0, %s203
      %s218 = sphi 0, %s204
      %s222 = sphi 0, %s222
      %s224 = sphi 0, %s222
      %s225 = sphi 0, %s224
      %s239 = sphi 0, %s225
      %s243 = sphi 0, %s243
      %s245 = sphi 0, %s243
      %s246 = sphi 0, %s245
      %s260 = sphi 0, %s246
      %s264 = sphi 0, %s264
      %s266 = sphi 0, %s264
      %s267 = sphi 0, %s266
      %s281 = sphi 0, %s267
      %s285 = sphi 0, %s285
      %s287 = sphi 0, %s285
      %s288 = sphi 0, %s287
      %s302 = sphi 0, %s288
      %s308 = sphi 0, %s310
      %s311 = sphi 0, %s308
      %s312 = sphi 0, %s311
      %s328 = sphi 0, %s312
    $region4: #{_lambda_.4} parent=1 // loop_header_branch
      %23 = sbr.rel (%p21) target = $region8
    $region5: #{_lambda_.4} parent=1 // loop_body
      %s25 = ssub.s32 %s20, 1
      %s26 = ssub.s32 %s20, 2
      %s27 = sadd.s32 %s20, 1
      %s28 = ssub.s32 %s20, %s27
      %p29 = scmp.eq.s32.totalorder %s28, 0
      %s31 = sadd.s32 %s30, 1
      %s32 = scalar_select %p29, %s30, %s31
      %p35 = pneg %p29
      %p36 = scmp.eq.s32.totalorder %s20, 1
      %p37 = por %p35, %p36
      %p38 = scmp.ne.s32.totalorder %s30, %s33
      %p39 = scmp.eq.s32.totalorder %s20, 0
      %p40 = por %p38, %p39
      %p41 = scmp.ne.s32.totalorder %s30, %s33
      %p42 = scmp.eq.s32.totalorder %s25, 1
      %p43 = por %p41, %p42
      %p44 = scmp.ne.s32.totalorder %s33, %s34
      %p45 = scmp.eq.s32.totalorder %s25, 0
      %p46 = por %p44, %p45
      %p47 = scmp.ne.s32.totalorder %s33, %s34
      %p48 = scmp.eq.s32.totalorder %s26, 1
      %p49 = por %p47, %p48
      %p51 = scmp.ne.s32.totalorder %s34, %s50
      %p52 = scmp.eq.s32.totalorder %s26, 0
      %p53 = por %p51, %p52
      %s55 = sadd.s32 %s54, 1
      %p58 = scmp.eq.s32.totalorder %s20, 1
      %p59 = scmp.ne.s32.totalorder %s54, %s56
      %p60 = scmp.eq.s32.totalorder %s20, 0
      %p61 = por %p59, %p60
      %p62 = scmp.ne.s32.totalorder %s54, %s56
      %p63 = scmp.eq.s32.totalorder %s25, 1
      %p64 = por %p62, %p63
      %p65 = scmp.ne.s32.totalorder %s56, %s57
      %p66 = scmp.eq.s32.totalorder %s25, 0
      %p67 = por %p65, %p66
      %p68 = scmp.ne.s32.totalorder %s56, %s57
      %p69 = scmp.eq.s32.totalorder %s26, 1
      %p70 = por %p68, %p69
      %p72 = scmp.ne.s32.totalorder %s57, %s71
      %p73 = scmp.eq.s32.totalorder %s26, 0
      %p74 = por %p72, %p73
      %s76 = sadd.s32 %s75, 1
      %p79 = scmp.eq.s32.totalorder %s20, 1
      %p80 = scmp.ne.s32.totalorder %s75, %s77
      %p81 = scmp.eq.s32.totalorder %s20, 0
      %p82 = por %p80, %p81
      %p83 = scmp.ne.s32.totalorder %s75, %s77
      %p84 = scmp.eq.s32.totalorder %s25, 1
      %p85 = por %p83, %p84
      %p86 = scmp.ne.s32.totalorder %s77, %s78
      %p87 = scmp.eq.s32.totalorder %s25, 0
      %p88 = por %p86, %p87
      %p89 = scmp.ne.s32.totalorder %s77, %s78
      %p90 = scmp.eq.s32.totalorder %s26, 1
      %p91 = por %p89, %p90
      %p93 = scmp.ne.s32.totalorder %s78, %s92
      %p94 = scmp.eq.s32.totalorder %s26, 0
      %p95 = por %p93, %p94
      %s97 = sadd.s32 %s96, 1
      %p100 = scmp.eq.s32.totalorder %s20, 1
      %p101 = scmp.ne.s32.totalorder %s96, %s98
      %p102 = scmp.eq.s32.totalorder %s20, 0
      %p103 = por %p101, %p102
      %p104 = scmp.ne.s32.totalorder %s96, %s98
      %p105 = scmp.eq.s32.totalorder %s25, 1
      %p106 = por %p104, %p105
      %p107 = scmp.ne.s32.totalorder %s98, %s99
      %p108 = scmp.eq.s32.totalorder %s25, 0
      %p109 = por %p107, %p108
      %p110 = scmp.ne.s32.totalorder %s98, %s99
      %p111 = scmp.eq.s32.totalorder %s26, 1
      %p112 = por %p110, %p111
      %p114 = scmp.ne.s32.totalorder %s99, %s113
      %p115 = scmp.eq.s32.totalorder %s26, 0
      %p116 = por %p114, %p115
      %s118 = sadd.s32 %s117, 1
      %p121 = scmp.eq.s32.totalorder %s20, 1
      %p122 = scmp.ne.s32.totalorder %s117, %s119
      %p123 = scmp.eq.s32.totalorder %s20, 0
      %p124 = por %p122, %p123
      %p125 = scmp.ne.s32.totalorder %s117, %s119
      %p126 = scmp.eq.s32.totalorder %s25, 1
      %p127 = por %p125, %p126
      %p128 = scmp.ne.s32.totalorder %s119, %s120
      %p129 = scmp.eq.s32.totalorder %s25, 0
      %p130 = por %p128, %p129
      %p131 = scmp.ne.s32.totalorder %s119, %s120
      %p132 = scmp.eq.s32.totalorder %s26, 1
      %p133 = por %p131, %p132
      %p135 = scmp.ne.s32.totalorder %s120, %s134
      %p136 = scmp.eq.s32.totalorder %s26, 0
      %p137 = por %p135, %p136
      %s139 = sadd.s32 %s138, 1
      %p142 = scmp.eq.s32.totalorder %s20, 1
      %p143 = scmp.ne.s32.totalorder %s138, %s140
      %p144 = scmp.eq.s32.totalorder %s20, 0
      %p145 = por %p143, %p144
      %p146 = scmp.ne.s32.totalorder %s138, %s140
      %p147 = scmp.eq.s32.totalorder %s25, 1
      %p148 = por %p146, %p147
      %p149 = scmp.ne.s32.totalorder %s140, %s141
      %p150 = scmp.eq.s32.totalorder %s25, 0
      %p151 = por %p149, %p150
      %p152 = scmp.ne.s32.totalorder %s140, %s141
      %p153 = scmp.eq.s32.totalorder %s26, 1
      %p154 = por %p152, %p153
      %p156 = scmp.ne.s32.totalorder %s141, %s155
      %p157 = scmp.eq.s32.totalorder %s26, 0
      %p158 = por %p156, %p157
      %s160 = sadd.s32 %s159, 1
      %p163 = scmp.eq.s32.totalorder %s20, 1
      %p164 = scmp.ne.s32.totalorder %s159, %s161
      %p165 = scmp.eq.s32.totalorder %s20, 0
      %p166 = por %p164, %p165
      %p167 = scmp.ne.s32.totalorder %s159, %s161
      %p168 = scmp.eq.s32.totalorder %s25, 1
      %p169 = por %p167, %p168
      %p170 = scmp.ne.s32.totalorder %s161, %s162
      %p171 = scmp.eq.s32.totalorder %s25, 0
      %p172 = por %p170, %p171
      %p173 = scmp.ne.s32.totalorder %s161, %s162
      %p174 = scmp.eq.s32.totalorder %s26, 1
      %p175 = por %p173, %p174
      %p177 = scmp.ne.s32.totalorder %s162, %s176
      %p178 = scmp.eq.s32.totalorder %s26, 0
      %p179 = por %p177, %p178
      %s181 = sadd.s32 %s180, 1
      %p184 = scmp.eq.s32.totalorder %s20, 1
      %p185 = scmp.ne.s32.totalorder %s180, %s182
      %p186 = scmp.eq.s32.totalorder %s20, 0
      %p187 = por %p185, %p186
      %p188 = scmp.ne.s32.totalorder %s180, %s182
      %p189 = scmp.eq.s32.totalorder %s25, 1
      %p190 = por %p188, %p189
      %p191 = scmp.ne.s32.totalorder %s182, %s183
      %p192 = scmp.eq.s32.totalorder %s25, 0
      %p193 = por %p191, %p192
      %p194 = scmp.ne.s32.totalorder %s182, %s183
      %p195 = scmp.eq.s32.totalorder %s26, 1
      %p196 = por %p194, %p195
      %p198 = scmp.ne.s32.totalorder %s183, %s197
      %p199 = scmp.eq.s32.totalorder %s26, 0
      %p200 = por %p198, %p199
      %s202 = sadd.s32 %s201, 1
      %p205 = scmp.eq.s32.totalorder %s20, 1
      %p206 = scmp.ne.s32.totalorder %s201, %s203
      %p207 = scmp.eq.s32.totalorder %s20, 0
      %p208 = por %p206, %p207
      %p209 = scmp.ne.s32.totalorder %s201, %s203
      %p210 = scmp.eq.s32.totalorder %s25, 1
      %p211 = por %p209, %p210
      %p212 = scmp.ne.s32.totalorder %s203, %s204
      %p213 = scmp.eq.s32.totalorder %s25, 0
      %p214 = por %p212, %p213
      %p215 = scmp.ne.s32.totalorder %s203, %s204
      %p216 = scmp.eq.s32.totalorder %s26, 1
      %p217 = por %p215, %p216
      %p219 = scmp.ne.s32.totalorder %s204, %s218
      %p220 = scmp.eq.s32.totalorder %s26, 0
      %p221 = por %p219, %p220
      %s223 = sadd.s32 %s222, 1
      %p226 = scmp.eq.s32.totalorder %s20, 1
      %p227 = scmp.ne.s32.totalorder %s222, %s224
      %p228 = scmp.eq.s32.totalorder %s20, 0
      %p229 = por %p227, %p228
      %p230 = scmp.ne.s32.totalorder %s222, %s224
      %p231 = scmp.eq.s32.totalorder %s25, 1
      %p232 = por %p230, %p231
      %p233 = scmp.ne.s32.totalorder %s224, %s225
      %p234 = scmp.eq.s32.totalorder %s25, 0
      %p235 = por %p233, %p234
      %p236 = scmp.ne.s32.totalorder %s224, %s225
      %p237 = scmp.eq.s32.totalorder %s26, 1
      %p238 = por %p236, %p237
      %p240 = scmp.ne.s32.totalorder %s225, %s239
      %p241 = scmp.eq.s32.totalorder %s26, 0
      %p242 = por %p240, %p241
      %s244 = sadd.s32 %s243, 1
      %p247 = scmp.eq.s32.totalorder %s20, 1
      %p248 = scmp.ne.s32.totalorder %s243, %s245
      %p249 = scmp.eq.s32.totalorder %s20, 0
      %p250 = por %p248, %p249
      %p251 = scmp.ne.s32.totalorder %s243, %s245
      %p252 = scmp.eq.s32.totalorder %s25, 1
      %p253 = por %p251, %p252
      %p254 = scmp.ne.s32.totalorder %s245, %s246
      %p255 = scmp.eq.s32.totalorder %s25, 0
      %p256 = por %p254, %p255
      %p257 = scmp.ne.s32.totalorder %s245, %s246
      %p258 = scmp.eq.s32.totalorder %s26, 1
      %p259 = por %p257, %p258
      %p261 = scmp.ne.s32.totalorder %s246, %s260
      %p262 = scmp.eq.s32.totalorder %s26, 0
      %p263 = por %p261, %p262
      %s265 = sadd.s32 %s264, 1
      %p268 = scmp.eq.s32.totalorder %s20, 1
      %p269 = scmp.ne.s32.totalorder %s264, %s266
      %p270 = scmp.eq.s32.totalorder %s20, 0
      %p271 = por %p269, %p270
      %p272 = scmp.ne.s32.totalorder %s264, %s266
      %p273 = scmp.eq.s32.totalorder %s25, 1
      %p274 = por %p272, %p273
      %p275 = scmp.ne.s32.totalorder %s266, %s267
      %p276 = scmp.eq.s32.totalorder %s25, 0
      %p277 = por %p275, %p276
      %p278 = scmp.ne.s32.totalorder %s266, %s267
      %p279 = scmp.eq.s32.totalorder %s26, 1
      %p280 = por %p278, %p279
      %p282 = scmp.ne.s32.totalorder %s267, %s281
      %p283 = scmp.eq.s32.totalorder %s26, 0
      %p284 = por %p282, %p283
      %s286 = sadd.s32 %s285, 1
      %p289 = scmp.eq.s32.totalorder %s20, 1
      %p290 = scmp.ne.s32.totalorder %s285, %s287
      %p291 = scmp.eq.s32.totalorder %s20, 0
      %p292 = por %p290, %p291
      %p293 = scmp.ne.s32.totalorder %s285, %s287
      %p294 = scmp.eq.s32.totalorder %s25, 1
      %p295 = por %p293, %p294
      %p296 = scmp.ne.s32.totalorder %s287, %s288
      %p297 = scmp.eq.s32.totalorder %s25, 0
      %p298 = por %p296, %p297
      %p299 = scmp.ne.s32.totalorder %s287, %s288
      %p300 = scmp.eq.s32.totalorder %s26, 1
      %p301 = por %p299, %p300
      %p303 = scmp.ne.s32.totalorder %s288, %s302
      %p304 = scmp.eq.s32.totalorder %s26, 0
      %p305 = por %p303, %p304
      %s306 = ssub.s32 %s20, %s27
      %p307 = scmp.eq.s32.totalorder %s306, 0
      %s309 = sadd.s32 %s308, 1
      %s310 = scalar_select %p307, %s308, %s309
      %p313 = pneg %p307
      %p314 = scmp.eq.s32.totalorder %s20, 1
      %p315 = por %p313, %p314
      %p316 = scmp.ne.s32.totalorder %s308, %s311
      %p317 = scmp.eq.s32.totalorder %s20, 0
      %p318 = por %p316, %p317
      %p319 = scmp.ne.s32.totalorder %s308, %s311
      %p320 = scmp.eq.s32.totalorder %s25, 1
      %p321 = por %p319, %p320
      %p322 = scmp.ne.s32.totalorder %s311, %s312
      %p323 = scmp.eq.s32.totalorder %s25, 0
      %p324 = por %p322, %p323
      %p325 = scmp.ne.s32.totalorder %s311, %s312
      %p326 = scmp.eq.s32.totalorder %s26, 1
      %p327 = por %p325, %p326
      %p329 = scmp.ne.s32.totalorder %s312, %s328
      %p330 = scmp.eq.s32.totalorder %s26, 0
      %p331 = por %p329, %p330
      %p332 = scmp.le.s32.totalorder 1, %s20
      %p333 = scmp.lt.s32.totalorder %s20, 3
      %p334 = pnand %p332, %p333
      %p335 = pneg %p334
      // Predicated region
      $region9: #{_lambda_.4} parent=5 // pred_check
        _
      $region10: #{_lambda_.4} parent=5 // pred_check_branch
        %337 = sbr.rel (%p334) target = $region12
      $region11: #{_lambda_.4} parent=5 // pred_region
        %s338 = ssub.s32 %s20, 1
        // Predicated region
        $region13: #{_lambda_.4} parent=11 // pred_check
          %p339 = pneg %p67
        $region14: #{_lambda_.4} parent=11 // pred_check_branch
          %341 = sbr.rel (%p339) target = $region16
        $region15: #{_lambda_.4} parent=11 // pred_region
          _
        $region16: #{_lambda_.4} parent=11 // pred_fallthru
          _
        // Predicated region
        $region17: #{_lambda_.4} parent=11 // pred_check
          %p342 = pneg %p88
        $region18: #{_lambda_.4} parent=11 // pred_check_branch
          %344 = sbr.rel (%p342) target = $region20
        $region19: #{_lambda_.4} parent=11 // pred_region
          _
        $region20: #{_lambda_.4} parent=11 // pred_fallthru
          _
        // Predicated region
        $region21: #{_lambda_.4} parent=11 // pred_check
          %p345 = pneg %p109
        $region22: #{_lambda_.4} parent=11 // pred_check_branch
          %347 = sbr.rel (%p345) target = $region24
        $region23: #{_lambda_.4} parent=11 // pred_region
          _
        $region24: #{_lambda_.4} parent=11 // pred_fallthru
          _
        // Predicated region
        $region25: #{_lambda_.4} parent=11 // pred_check
          %p348 = pneg %p130
        $region26: #{_lambda_.4} parent=11 // pred_check_branch
          %350 = sbr.rel (%p348) target = $region28
        $region27: #{_lambda_.4} parent=11 // pred_region
          _
        $region28: #{_lambda_.4} parent=11 // pred_fallthru
          _
        // Predicated region
        $region29: #{_lambda_.4} parent=11 // pred_check
          %p351 = pneg %p151
        $region30: #{_lambda_.4} parent=11 // pred_check_branch
          %353 = sbr.rel (%p351) target = $region32
        $region31: #{_lambda_.4} parent=11 // pred_region
          _
        $region32: #{_lambda_.4} parent=11 // pred_fallthru
          _
        // Predicated region
        $region33: #{_lambda_.4} parent=11 // pred_check
          %p354 = pneg %p172
        $region34: #{_lambda_.4} parent=11 // pred_check_branch
          %356 = sbr.rel (%p354) target = $region36
        $region35: #{_lambda_.4} parent=11 // pred_region
          _
        $region36: #{_lambda_.4} parent=11 // pred_fallthru
          _
        // Predicated region
        $region37: #{_lambda_.4} parent=11 // pred_check
          %p357 = pneg %p193
        $region38: #{_lambda_.4} parent=11 // pred_check_branch
          %359 = sbr.rel (%p357) target = $region40
        $region39: #{_lambda_.4} parent=11 // pred_region
          _
        $region40: #{_lambda_.4} parent=11 // pred_fallthru
          _
        // Predicated region
        $region41: #{_lambda_.4} parent=11 // pred_check
          %p360 = pneg %p214
        $region42: #{_lambda_.4} parent=11 // pred_check_branch
          %362 = sbr.rel (%p360) target = $region44
        $region43: #{_lambda_.4} parent=11 // pred_region
          %s364 = ssub.s32 16, 16
          %365 = vsyncadd [#allocation3], %s364
          %s367 = sshll.u32 [#allocation2], 4
          %s368 = int_to_ptr.vmem [resolvable:$true] %s367
          %370 = dma.hbm_to_vmem [thread:$0]  %s8, 16, %s368, [#allocation3]
        $region44: #{_lambda_.4} parent=11 // pred_fallthru
          _
        // Predicated region
        $region45: #{_lambda_.4} parent=11 // pred_check
          %p371 = pneg %p235
        $region46: #{_lambda_.4} parent=11 // pred_check_branch
          %373 = sbr.rel (%p371) target = $region48
        $region47: #{_lambda_.4} parent=11 // pred_region
          _
        $region48: #{_lambda_.4} parent=11 // pred_fallthru
          _
        // Predicated region
        $region49: #{_lambda_.4} parent=11 // pred_check
          %p374 = pneg %p256
        $region50: #{_lambda_.4} parent=11 // pred_check_branch
          %376 = sbr.rel (%p374) target = $region52
        $region51: #{_lambda_.4} parent=11 // pred_region
          _
        $region52: #{_lambda_.4} parent=11 // pred_fallthru
          _
        // Predicated region
        $region53: #{_lambda_.4} parent=11 // pred_check
          %p377 = pneg %p277
        $region54: #{_lambda_.4} parent=11 // pred_check_branch
          %379 = sbr.rel (%p377) target = $region56
        $region55: #{_lambda_.4} parent=11 // pred_region
          _
        $region56: #{_lambda_.4} parent=11 // pred_fallthru
          _
        // Predicated region
        $region57: #{_lambda_.4} parent=11 // pred_check
          %p380 = pneg %p298
        $region58: #{_lambda_.4} parent=11 // pred_check_branch
          %382 = sbr.rel (%p380) target = $region60
        $region59: #{_lambda_.4} parent=11 // pred_region
          _
        $region60: #{_lambda_.4} parent=11 // pred_fallthru
          _
      $region12: #{_lambda_.4} parent=5 // pred_fallthru
        _
      %p383 = scmp.lt.s32.totalorder %s20, 2
      // Predicated region
      $region61: #{_lambda_.4} parent=5 // pred_check
        %p384 = pneg %p383
      $region62: #{_lambda_.4} parent=5 // pred_check_branch
        %386 = sbr.rel (%p384) target = $region64
      $region63: #{_lambda_.4} parent=5 // pred_region
        // Predicated region
        $region65: #{_lambda_.4} parent=63 // pred_check
          %p387 = pneg %p40
        $region66: #{_lambda_.4} parent=63 // pred_check_branch
          %389 = sbr.rel (%p387) target = $region68
        $region67: #{_lambda_.4} parent=63 // pred_region
          %p390 = scmp.lt.s32.totalorder %s20, 1
          %s391 = scalar_select %p390, %s20, 1
          %s392 = smul.addr %s391, 2
          %s393 = smul.addr %s392, 4
          %s394 = scalar_lea.vmem %s0, %s393
        $region68: #{_lambda_.4} parent=63 // pred_fallthru
          _
      $region64: #{_lambda_.4} parent=5 // pred_fallthru
        _
      %p395 = scmp.le.s32.totalorder 1, %s20
      %p396 = scmp.lt.s32.totalorder %s20, 3
      %p397 = pnand %p395, %p396
      %p398 = pneg %p397
      // Predicated region
      $region69: #{_lambda_.4} parent=5 // pred_check
        _
      $region70: #{_lambda_.4} parent=5 // pred_check_branch
        %400 = sbr.rel (%p397) target = $region72
      $region71: #{_lambda_.4} parent=5 // pred_region
        %s401 = ssub.s32 %s20, 1
        // Predicated region
        $region73: #{_lambda_.4} parent=71 // pred_check
          %p402 = pneg %p214
        $region74: #{_lambda_.4} parent=71 // pred_check_branch
          %404 = sbr.rel (%p402) target = $region76
        $region75: #{_lambda_.4} parent=71 // pred_region
          %405 = dma.done [#allocation3], 16
        $region76: #{_lambda_.4} parent=71 // pred_fallthru
          _
        %p406 = scmp.lt.s32.totalorder %s25, 1
        %s407 = scalar_select %p406, %s25, 1
        %s408 = smul.addr %s407, 2
        %s409 = smul.addr %s408, 4
        %s410 = scalar_lea.vmem %s0, %s409
        %p411 = pneg %p46
        %p412 = pneg %p43
        %p413 = pneg %p67
        %p414 = pneg %p64
        %p415 = pneg %p88
        %p416 = pneg %p85
        %p417 = pneg %p109
        %p418 = pneg %p106
        %p419 = pneg %p130
        %p420 = pneg %p127
        %p421 = pneg %p151
        %p422 = pneg %p148
        %p423 = pneg %p172
        %p424 = pneg %p169
        %p425 = pneg %p193
        %p426 = pneg %p190
        %p427 = pneg %p214
        %p428 = pneg %p211
        %p429 = pneg %p235
        %p430 = pneg %p232
        %p431 = pneg %p256
        %p432 = pneg %p253
        %p433 = pneg %p277
        %p434 = pneg %p274
        %p435 = pneg %p298
        %p436 = pneg %p295
        %p437 = pneg %p324
        %p438 = pneg %p321
        %p439 = scmp.lt.s32.totalorder %s25, 1
        %s440 = scalar_select %p439, %s25, 1
        %s441 = smul.addr %s440, 2
        %s442 = smul.addr %s441, 4
        %s443 = scalar_lea.vmem %s13, %s442
        %p444 = scmp.lt.s32.totalorder %s25, 1
        %s445 = scalar_select %p444, %s25, 1
        %s446 = smul.addr %s445, 2
        %s447 = smul.addr %s446, 4
        %s448 = scalar_lea.vmem %s0, %s447
        %p449 = scmp.lt.s32.totalorder %s25, 1
        %s450 = scalar_select %p449, %s25, 1
        %s451 = smul.addr %s450, 2
        %s452 = smul.addr %s451, 4
        %s453 = scalar_lea.vmem %s13, %s452
        %v455 = vld [vmem:[%s448] sm:$0xf]
        %v456 = vld [vmem:[%s448 + $0x4] sm:$0xf]
        %v457 = vld [vmem:[%s1] sm:$0xf]
        %v458 = vld [vmem:[%s1 + $0x4] sm:$0xf]
        %v459 = vld [vmem:[%s1 + $0x8] sm:$0xf]
        %v460 = vld [vmem:[%s1 + $0xc] sm:$0xf]
        %v461 = vld [vmem:[%s2] sm:$0x1]
        %v463 = vlaneseq
        %v464 = vshrl.u32 %v463, 7
        %v465 = vsub.s32 0, %v464
        %v466 = vrot.slane %v461, %v465
        %v470 = vunpack.c.l.b16 %v455
        %v471 = vunpack.c.l.b16 %v456
        %v472 = vpack.c.b16 %v471, %v470
        %v477 = vunpack.c.l.b16 %v457
        %v478 = vunpack.c.l.b16 %v458
        %v479 = vunpack.c.l.b16 %v459
        %v480 = vunpack.c.l.b16 %v460
        %v481 = vpack.c.b16 %v478, %v477
        %v482 = vpack.c.b16 %v480, %v479
        %vm485 = vcmask 261120
        %v487 = vsel %vm485, %v472, 0
        %489 = vmatprep.subr.bf16.mxu0 0
        %490 = vmatpush1.bf16.msra.mxu0 0
        %491 = vmatprep.subr.bf16.mxu0 0
        %492 = vmatpush1.bf16.msra.mxu0 0
        %493 = vmatprep.subr.bf16.mxu0 0
        %494 = vmatpush1.bf16.msra.mxu0 0
        %495 = vmatprep.subr.bf16.mxu0 0
        %496 = vmatpush1.bf16.msra.mxu0 0
        %497 = vmatprep.subr.bf16.mxu0 0
        %498 = vmatpush1.bf16.msra.mxu0 0
        %499 = vmatprep.subr.bf16.mxu0 0
        %500 = vmatpush1.bf16.msra.mxu0 0
        %501 = vmatprep.subr.bf16.mxu0 0
        %502 = vmatpush1.bf16.msra.mxu0 %v482
        %503 = vmatprep.subr.bf16.mxu0 0
        %504 = vmatpush1.bf16.msra.mxu0 %v481
        %505 = vmatprep.subr.bf16.mxu0 0
        %506 = vmatpush2.bf16.msra.mxu0 0
        %507 = vmatprep.subr.bf16.mxu0 0
        %508 = vmatpush2.bf16.msra.mxu0 0
        %509 = vmatprep.subr.bf16.mxu0 0
        %510 = vmatpush2.bf16.msra.mxu0 0
        %511 = vmatprep.subr.bf16.mxu0 0
        %512 = vmatpush2.bf16.msra.mxu0 0
        %513 = vmatprep.subr.bf16.mxu0 0
        %514 = vmatpush2.bf16.msra.mxu0 0
        %515 = vmatprep.subr.bf16.mxu0 0
        %516 = vmatpush2.bf16.msra.mxu0 0
        %517 = vmatprep.subr.bf16.mxu0 0
        %518 = vmatpush2.bf16.msra.mxu0 0
        %519 = vmatprep.subr.bf16.mxu0 0
        %520 = vmatpush2.bf16.msra.mxu0 0
        %521 = vmatprep.mubr.bf16.mxu0 0
        %522 = vmatmul.mubr.bf16.gmra.mxu0 %v487
        %v523 = vpop.f32.mrf.mxu0
        %v524 = vadd.f32 %v466, %v523
        %v525 = vpop.f32.mrf.mxu0
        %v526 = vpop.f32.mrf.mxu0
        %v527 = vadd.f32 %v466, %v526
        %v528 = vpop.f32.mrf.mxu0
        %529 = vdwg.mxu0
        %v530 = vpack.c.bf16 %v527, %v524
        %532 = vrot.lane.b32.xlu0 %v530, 120
        %v533 = vpop.permute.xlu0 %532
        %534 = vrot.lane.b32.xlu0 %v530, 112
        %v535 = vpop.permute.xlu0 %534
        %536 = vrot.lane.b32.xlu0 %v530, 104
        %v537 = vpop.permute.xlu0 %536
        %538 = vrot.lane.b32.xlu0 %v530, 96
        %v539 = vpop.permute.xlu0 %538
        %vm540 = vcmask 64512
        %v542 = vsel %vm540, %v530, 0
        %v545 = vsel %vm540, %v539, 0
        %547 = vmatprep.subr.bf16.mxu0 0
        %548 = vmatpush1.bf16.xpose.msra.mxu0 0
        %549 = vmatprep.subr.bf16.mxu0 0
        %550 = vmatpush1.bf16.xpose.msra.mxu0 0
        %551 = vmatprep.subr.bf16.mxu0 0
        %552 = vmatpush1.bf16.xpose.msra.mxu0 0
        %553 = vmatprep.subr.bf16.mxu0 0
        %554 = vmatpush1.bf16.xpose.msra.mxu0 0
        %555 = vmatprep.subr.bf16.mxu0 0
        %556 = vmatpush1.bf16.xpose.msra.mxu0 0
        %557 = vmatprep.subr.bf16.mxu0 0
        %558 = vmatpush1.bf16.xpose.msra.mxu0 0
        %559 = vmatprep.subr.bf16.mxu0 0
        %560 = vmatpush1.bf16.xpose.msra.mxu0 0
        %561 = vmatprep.subr.bf16.mxu0 0
        %562 = vmatpush1.bf16.xpose.msra.mxu0 %v545
        %563 = vmatprep.subr.bf16.mxu0 0
        %564 = vmatpush2.bf16.xpose.msra.mxu0 0
        %565 = vmatprep.subr.bf16.mxu0 0
        %566 = vmatpush2.bf16.xpose.msra.mxu0 0
        %567 = vmatprep.subr.bf16.mxu0 0
        %568 = vmatpush2.bf16.xpose.msra.mxu0 0
        %569 = vmatprep.subr.bf16.mxu0 0
        %570 = vmatpush2.bf16.xpose.msra.mxu0 0
        %571 = vmatprep.subr.bf16.mxu0 0
        %572 = vmatpush2.bf16.xpose.msra.mxu0 0
        %573 = vmatprep.subr.bf16.mxu0 0
        %574 = vmatpush2.bf16.xpose.msra.mxu0 0
        %575 = vmatprep.subr.bf16.mxu0 0
        %576 = vmatpush2.bf16.xpose.msra.mxu0 0
        %577 = vmatprep.subr.bf16.mxu0 0
        %578 = vmatpush2.bf16.xpose.msra.mxu0 0
        %579 = vmatprep.mubr.bf16.mxu0 0
        %580 = vmatmul.mubr.bf16.gmra.mxu0 %v542
        %v581 = vpop.f32.mrf.mxu0
        %v582 = vadd.f32 0.0, %v581
        %v583 = vpop.f32.mrf.mxu0
        %v584 = vpop.f32.mrf.mxu0
        %v585 = vadd.f32 0.0, %v584
        %v586 = vpop.f32.mrf.mxu0
        %587 = vdwg.mxu0
        %588 = vrot.lane.b32.xlu0 %v533, 96
        %v589 = vpop.permute.xlu0 %588
        %v591 = vsel %vm540, %v533, 0
        %v594 = vsel %vm540, %v589, 0
        %596 = vmatprep.subr.bf16.mxu0 0
        %597 = vmatpush1.bf16.xpose.msra.mxu0 0
        %598 = vmatprep.subr.bf16.mxu0 0
        %599 = vmatpush1.bf16.xpose.msra.mxu0 0
        %600 = vmatprep.subr.bf16.mxu0 0
        %601 = vmatpush1.bf16.xpose.msra.mxu0 0
        %602 = vmatprep.subr.bf16.mxu0 0
        %603 = vmatpush1.bf16.xpose.msra.mxu0 0
        %604 = vmatprep.subr.bf16.mxu0 0
        %605 = vmatpush1.bf16.xpose.msra.mxu0 0
        %606 = vmatprep.subr.bf16.mxu0 0
        %607 = vmatpush1.bf16.xpose.msra.mxu0 0
        %608 = vmatprep.subr.bf16.mxu0 0
        %609 = vmatpush1.bf16.xpose.msra.mxu0 0
        %610 = vmatprep.subr.bf16.mxu0 0
        %611 = vmatpush1.bf16.xpose.msra.mxu0 %v594
        %612 = vmatprep.subr.bf16.mxu0 0
        %613 = vmatpush2.bf16.xpose.msra.mxu0 0
        %614 = vmatprep.subr.bf16.mxu0 0
        %615 = vmatpush2.bf16.xpose.msra.mxu0 0
        %616 = vmatprep.subr.bf16.mxu0 0
        %617 = vmatpush2.bf16.xpose.msra.mxu0 0
        %618 = vmatprep.subr.bf16.mxu0 0
        %619 = vmatpush2.bf16.xpose.msra.mxu0 0
        %620 = vmatprep.subr.bf16.mxu0 0
        %621 = vmatpush2.bf16.xpose.msra.mxu0 0
        %622 = vmatprep.subr.bf16.mxu0 0
        %623 = vmatpush2.bf16.xpose.msra.mxu0 0
        %624 = vmatprep.subr.bf16.mxu0 0
        %625 = vmatpush2.bf16.xpose.msra.mxu0 0
        %626 = vmatprep.subr.bf16.mxu0 0
        %627 = vmatpush2.bf16.xpose.msra.mxu0 0
        %628 = vmatprep.mubr.bf16.mxu0 0
        %629 = vmatmul.mubr.bf16.gmra.mxu0 %v591
        %v630 = vpop.f32.mrf.mxu0
        %v631 = vadd.f32 0.0, %v630
        %v632 = vpop.f32.mrf.mxu0
        %v633 = vpop.f32.mrf.mxu0
        %v634 = vadd.f32 0.0, %v633
        %v635 = vpop.f32.mrf.mxu0
        %636 = vdwg.mxu0
        %637 = vrot.lane.b32.xlu0 %v535, 96
        %v638 = vpop.permute.xlu0 %637
        %v640 = vsel %vm540, %v535, 0
        %v643 = vsel %vm540, %v638, 0
        %645 = vmatprep.subr.bf16.mxu0 0
        %646 = vmatpush1.bf16.xpose.msra.mxu0 0
        %647 = vmatprep.subr.bf16.mxu0 0
        %648 = vmatpush1.bf16.xpose.msra.mxu0 0
        %649 = vmatprep.subr.bf16.mxu0 0
        %650 = vmatpush1.bf16.xpose.msra.mxu0 0
        %651 = vmatprep.subr.bf16.mxu0 0
        %652 = vmatpush1.bf16.xpose.msra.mxu0 0
        %653 = vmatprep.subr.bf16.mxu0 0
        %654 = vmatpush1.bf16.xpose.msra.mxu0 0
        %655 = vmatprep.subr.bf16.mxu0 0
        %656 = vmatpush1.bf16.xpose.msra.mxu0 0
        %657 = vmatprep.subr.bf16.mxu0 0
        %658 = vmatpush1.bf16.xpose.msra.mxu0 0
        %659 = vmatprep.subr.bf16.mxu0 0
        %660 = vmatpush1.bf16.xpose.msra.mxu0 %v643
        %661 = vmatprep.subr.bf16.mxu0 0
        %662 = vmatpush2.bf16.xpose.msra.mxu0 0
        %663 = vmatprep.subr.bf16.mxu0 0
        %664 = vmatpush2.bf16.xpose.msra.mxu0 0
        %665 = vmatprep.subr.bf16.mxu0 0
        %666 = vmatpush2.bf16.xpose.msra.mxu0 0
        %667 = vmatprep.subr.bf16.mxu0 0
        %668 = vmatpush2.bf16.xpose.msra.mxu0 0
        %669 = vmatprep.subr.bf16.mxu0 0
        %670 = vmatpush2.bf16.xpose.msra.mxu0 0
        %671 = vmatprep.subr.bf16.mxu0 0
        %672 = vmatpush2.bf16.xpose.msra.mxu0 0
        %673 = vmatprep.subr.bf16.mxu0 0
        %674 = vmatpush2.bf16.xpose.msra.mxu0 0
        %675 = vmatprep.subr.bf16.mxu0 0
        %676 = vmatpush2.bf16.xpose.msra.mxu0 0
        %677 = vmatprep.mubr.bf16.mxu0 0
        %678 = vmatmul.mubr.bf16.gmra.mxu0 %v640
        %v679 = vpop.f32.mrf.mxu0
        %v680 = vadd.f32 0.0, %v679
        %v681 = vpop.f32.mrf.mxu0
        %v682 = vpop.f32.mrf.mxu0
        %v683 = vadd.f32 0.0, %v682
        %v684 = vpop.f32.mrf.mxu0
        %685 = vdwg.mxu0
        %686 = vrot.lane.b32.xlu0 %v537, 96
        %v687 = vpop.permute.xlu0 %686
        %v689 = vsel %vm540, %v537, 0
        %v692 = vsel %vm540, %v687, 0
        %694 = vmatprep.subr.bf16.mxu0 0
        %695 = vmatpush1.bf16.xpose.msra.mxu0 0
        %696 = vmatprep.subr.bf16.mxu0 0
        %697 = vmatpush1.bf16.xpose.msra.mxu0 0
        %698 = vmatprep.subr.bf16.mxu0 0
        %699 = vmatpush1.bf16.xpose.msra.mxu0 0
        %700 = vmatprep.subr.bf16.mxu0 0
        %701 = vmatpush1.bf16.xpose.msra.mxu0 0
        %702 = vmatprep.subr.bf16.mxu0 0
        %703 = vmatpush1.bf16.xpose.msra.mxu0 0
        %704 = vmatprep.subr.bf16.mxu0 0
        %705 = vmatpush1.bf16.xpose.msra.mxu0 0
        %706 = vmatprep.subr.bf16.mxu0 0
        %707 = vmatpush1.bf16.xpose.msra.mxu0 0
        %708 = vmatprep.subr.bf16.mxu0 0
        %709 = vmatpush1.bf16.xpose.msra.mxu0 %v692
        %710 = vmatprep.subr.bf16.mxu0 0
        %711 = vmatpush2.bf16.xpose.msra.mxu0 0
        %712 = vmatprep.subr.bf16.mxu0 0
        %713 = vmatpush2.bf16.xpose.msra.mxu0 0
        %714 = vmatprep.subr.bf16.mxu0 0
        %715 = vmatpush2.bf16.xpose.msra.mxu0 0
        %716 = vmatprep.subr.bf16.mxu0 0
        %717 = vmatpush2.bf16.xpose.msra.mxu0 0
        %718 = vmatprep.subr.bf16.mxu0 0
        %719 = vmatpush2.bf16.xpose.msra.mxu0 0
        %720 = vmatprep.subr.bf16.mxu0 0
        %721 = vmatpush2.bf16.xpose.msra.mxu0 0
        %722 = vmatprep.subr.bf16.mxu0 0
        %723 = vmatpush2.bf16.xpose.msra.mxu0 0
        %724 = vmatprep.subr.bf16.mxu0 0
        %725 = vmatpush2.bf16.xpose.msra.mxu0 0
        %726 = vmatprep.mubr.bf16.mxu0 0
        %727 = vmatmul.mubr.bf16.gmra.mxu0 %v689
        %v728 = vpop.f32.mrf.mxu0
        %v729 = vadd.f32 0.0, %v728
        %v730 = vpop.f32.mrf.mxu0
        %v731 = vpop.f32.mrf.mxu0
        %v732 = vadd.f32 0.0, %v731
        %v733 = vpop.f32.mrf.mxu0
        %734 = vdwg.mxu0
        %v735 = vmul.f32 %v582, 0.35355338
        %v736 = vmul.f32 %v585, 0.35355338
        %v737 = vmul.f32 %v631, 0.35355338
        %v738 = vmul.f32 %v634, 0.35355338
        %v739 = vmul.f32 %v680, 0.35355338
        %v740 = vmul.f32 %v683, 0.35355338
        %v741 = vmul.f32 %v729, 0.35355338
        %v742 = vmul.f32 %v732, 0.35355338
        %v743 = vlaneseq
        %v744 = vand.u32 %v743, 127
        %vm745 = vcmp.lt.s32.totalorder %v744, 9
        %v746 = vsel %vm745, %v735, -1e+30
        %v747 = vsel %vm745, %v736, -1e+30
        %v748 = vsel %vm745, %v737, -1e+30
        %v749 = vsel %vm745, %v738, -1e+30
        %v750 = vsel %vm745, %v739, -1e+30
        %v751 = vsel %vm745, %v740, -1e+30
        %v752 = vsel %vm745, %v741, -1e+30
        %v753 = vsel %vm745, %v742, -1e+30
        %vm754 = vcmask 130048
        %v755 = vsel %vm754, %v746, -inf
        %756 = vmax.xlane.f32.xlu0 %v755
        %v757 = vpop.xlane.xlu0 %756
        %v758 = vsel %vm754, %v747, -inf
        %759 = vmax.xlane.f32.xlu0 %v758
        %v760 = vpop.xlane.xlu0 %759
        %v761 = vsel %vm754, %v748, -inf
        %762 = vmax.xlane.f32.xlu0 %v761
        %v763 = vpop.xlane.xlu0 %762
        %v764 = vsel %vm754, %v749, -inf
        %765 = vmax.xlane.f32.xlu0 %v764
        %v766 = vpop.xlane.xlu0 %765
        %v767 = vsel %vm754, %v750, -inf
        %768 = vmax.xlane.f32.xlu0 %v767
        %v769 = vpop.xlane.xlu0 %768
        %v770 = vsel %vm754, %v751, -inf
        %771 = vmax.xlane.f32.xlu0 %v770
        %v772 = vpop.xlane.xlu0 %771
        %v773 = vsel %vm754, %v752, -inf
        %774 = vmax.xlane.f32.xlu0 %v773
        %v775 = vpop.xlane.xlu0 %774
        %v776 = vsel %vm754, %v753, -inf
        %777 = vmax.xlane.f32.xlu0 %v776
        %v778 = vpop.xlane.xlu0 %777
        %v779 = vsub.f32 %v746, %v757
        %v780 = vsub.f32 %v747, %v760
        %v781 = vsub.f32 %v748, %v763
        %v782 = vsub.f32 %v749, %v766
        %v783 = vsub.f32 %v750, %v769
        %v784 = vsub.f32 %v751, %v772
        %v785 = vsub.f32 %v752, %v775
        %v786 = vsub.f32 %v753, %v778
        %v787 = vmul.f32 %v779, 1.442695
        %v788 = vpow.pop %v787
        %v789 = vmul.f32 %v780, 1.442695
        %v790 = vpow.pop %v789
        %v791 = vmul.f32 %v781, 1.442695
        %v792 = vpow.pop %v791
        %v793 = vmul.f32 %v782, 1.442695
        %v794 = vpow.pop %v793
        %v795 = vmul.f32 %v783, 1.442695
        %v796 = vpow.pop %v795
        %v797 = vmul.f32 %v784, 1.442695
        %v798 = vpow.pop %v797
        %v799 = vmul.f32 %v785, 1.442695
        %v800 = vpow.pop %v799
        %v801 = vmul.f32 %v786, 1.442695
        %v802 = vpow.pop %v801
        %v803 = vsel %vm754, %v788, 0.0
        %804 = vadd.xlane.f32.xlu0 %v803
        %v805 = vpop.xlane.xlu0 %804
        %v806 = vsel %vm754, %v790, 0.0
        %807 = vadd.xlane.f32.xlu0 %v806
        %v808 = vpop.xlane.xlu0 %807
        %v809 = vsel %vm754, %v792, 0.0
        %810 = vadd.xlane.f32.xlu0 %v809
        %v811 = vpop.xlane.xlu0 %810
        %v812 = vsel %vm754, %v794, 0.0
        %813 = vadd.xlane.f32.xlu0 %v812
        %v814 = vpop.xlane.xlu0 %813
        %v815 = vsel %vm754, %v796, 0.0
        %816 = vadd.xlane.f32.xlu0 %v815
        %v817 = vpop.xlane.xlu0 %816
        %v818 = vsel %vm754, %v798, 0.0
        %819 = vadd.xlane.f32.xlu0 %v818
        %v820 = vpop.xlane.xlu0 %819
        %v821 = vsel %vm754, %v800, 0.0
        %822 = vadd.xlane.f32.xlu0 %v821
        %v823 = vpop.xlane.xlu0 %822
        %v824 = vsel %vm754, %v802, 0.0
        %825 = vadd.xlane.f32.xlu0 %v824
        %v826 = vpop.xlane.xlu0 %825
        %v827 = vrcp.pop %v805
        %v828 = vrcp.pop %v808
        %v829 = vrcp.pop %v811
        %v830 = vrcp.pop %v814
        %v831 = vrcp.pop %v817
        %v832 = vrcp.pop %v820
        %v833 = vrcp.pop %v823
        %v834 = vrcp.pop %v826
        %v835 = vmul.f32 %v788, %v827
        %v836 = vmul.f32 %v790, %v828
        %v837 = vmul.f32 %v792, %v829
        %v838 = vmul.f32 %v794, %v830
        %v839 = vmul.f32 %v796, %v831
        %v840 = vmul.f32 %v798, %v832
        %v841 = vmul.f32 %v800, %v833
        %v842 = vmul.f32 %v802, %v834
        %v843 = vpack.c.bf16 %v836, %v835
        %v844 = vpack.c.bf16 %v838, %v837
        %v845 = vpack.c.bf16 %v840, %v839
        %v846 = vpack.c.bf16 %v842, %v841
        %847 = vrot.lane.b32.xlu0 %v530, 64
        %v848 = vpop.permute.xlu0 %847
        %v851 = vsel %vm754, %v843, 0
        %853 = vmatprep.subr.bf16.mxu0 0
        %854 = vmatpush1.bf16.msra.mxu0 0
        %855 = vmatprep.subr.bf16.mxu0 0
        %856 = vmatpush1.bf16.msra.mxu0 0
        %857 = vmatprep.subr.bf16.mxu0 0
        %858 = vmatpush1.bf16.msra.mxu0 0
        %859 = vmatprep.subr.bf16.mxu0 0
        %860 = vmatpush1.bf16.msra.mxu0 0
        %861 = vmatprep.subr.bf16.mxu0 0
        %862 = vmatpush1.bf16.msra.mxu0 0
        %863 = vmatprep.subr.bf16.mxu0 0
        %864 = vmatpush1.bf16.msra.mxu0 0
        %865 = vmatprep.subr.bf16.mxu0 0
        %866 = vmatpush1.bf16.msra.mxu0 0
        %867 = vmatprep.subr.bf16.mxu0 0
        %868 = vmatpush1.bf16.msra.mxu0 %v848
        %869 = vmatprep.subr.bf16.mxu0 0
        %870 = vmatpush2.bf16.msra.mxu0 0
        %871 = vmatprep.subr.bf16.mxu0 0
        %872 = vmatpush2.bf16.msra.mxu0 0
        %873 = vmatprep.subr.bf16.mxu0 0
        %874 = vmatpush2.bf16.msra.mxu0 0
        %875 = vmatprep.subr.bf16.mxu0 0
        %876 = vmatpush2.bf16.msra.mxu0 0
        %877 = vmatprep.subr.bf16.mxu0 0
        %878 = vmatpush2.bf16.msra.mxu0 0
        %879 = vmatprep.subr.bf16.mxu0 0
        %880 = vmatpush2.bf16.msra.mxu0 0
        %881 = vmatprep.subr.bf16.mxu0 0
        %882 = vmatpush2.bf16.msra.mxu0 0
        %883 = vmatprep.subr.bf16.mxu0 0
        %884 = vmatpush2.bf16.msra.mxu0 0
        %885 = vmatprep.mubr.bf16.mxu0 0
        %886 = vmatmul.mubr.bf16.gmra.mxu0 %v851
        %v887 = vpop.f32.mrf.mxu0
        %v888 = vadd.f32 0.0, %v887
        %v889 = vpop.f32.mrf.mxu0
        %v890 = vpop.f32.mrf.mxu0
        %v891 = vadd.f32 0.0, %v890
        %v892 = vpop.f32.mrf.mxu0
        %893 = vdwg.mxu0
        %894 = vrot.lane.b32.xlu0 %v533, 64
        %v895 = vpop.permute.xlu0 %894
        %v898 = vsel %vm754, %v844, 0
        %900 = vmatprep.subr.bf16.mxu0 0
        %901 = vmatpush1.bf16.msra.mxu0 0
        %902 = vmatprep.subr.bf16.mxu0 0
        %903 = vmatpush1.bf16.msra.mxu0 0
        %904 = vmatprep.subr.bf16.mxu0 0
        %905 = vmatpush1.bf16.msra.mxu0 0
        %906 = vmatprep.subr.bf16.mxu0 0
        %907 = vmatpush1.bf16.msra.mxu0 0
        %908 = vmatprep.subr.bf16.mxu0 0
        %909 = vmatpush1.bf16.msra.mxu0 0
        %910 = vmatprep.subr.bf16.mxu0 0
        %911 = vmatpush1.bf16.msra.mxu0 0
        %912 = vmatprep.subr.bf16.mxu0 0
        %913 = vmatpush1.bf16.msra.mxu0 0
        %914 = vmatprep.subr.bf16.mxu0 0
        %915 = vmatpush1.bf16.msra.mxu0 %v895
        %916 = vmatprep.subr.bf16.mxu0 0
        %917 = vmatpush2.bf16.msra.mxu0 0
        %918 = vmatprep.subr.bf16.mxu0 0
        %919 = vmatpush2.bf16.msra.mxu0 0
        %920 = vmatprep.subr.bf16.mxu0 0
        %921 = vmatpush2.bf16.msra.mxu0 0
        %922 = vmatprep.subr.bf16.mxu0 0
        %923 = vmatpush2.bf16.msra.mxu0 0
        %924 = vmatprep.subr.bf16.mxu0 0
        %925 = vmatpush2.bf16.msra.mxu0 0
        %926 = vmatprep.subr.bf16.mxu0 0
        %927 = vmatpush2.bf16.msra.mxu0 0
        %928 = vmatprep.subr.bf16.mxu0 0
        %929 = vmatpush2.bf16.msra.mxu0 0
        %930 = vmatprep.subr.bf16.mxu0 0
        %931 = vmatpush2.bf16.msra.mxu0 0
        %932 = vmatprep.mubr.bf16.mxu0 0
        %933 = vmatmul.mubr.bf16.gmra.mxu0 %v898
        %v934 = vpop.f32.mrf.mxu0
        %v935 = vadd.f32 0.0, %v934
        %v936 = vpop.f32.mrf.mxu0
        %v937 = vpop.f32.mrf.mxu0
        %v938 = vadd.f32 0.0, %v937
        %v939 = vpop.f32.mrf.mxu0
        %940 = vdwg.mxu0
        %941 = vrot.lane.b32.xlu0 %v535, 64
        %v942 = vpop.permute.xlu0 %941
        %v945 = vsel %vm754, %v845, 0
        %947 = vmatprep.subr.bf16.mxu0 0
        %948 = vmatpush1.bf16.msra.mxu0 0
        %949 = vmatprep.subr.bf16.mxu0 0
        %950 = vmatpush1.bf16.msra.mxu0 0
        %951 = vmatprep.subr.bf16.mxu0 0
        %952 = vmatpush1.bf16.msra.mxu0 0
        %953 = vmatprep.subr.bf16.mxu0 0
        %954 = vmatpush1.bf16.msra.mxu0 0
        %955 = vmatprep.subr.bf16.mxu0 0
        %956 = vmatpush1.bf16.msra.mxu0 0
        %957 = vmatprep.subr.bf16.mxu0 0
        %958 = vmatpush1.bf16.msra.mxu0 0
        %959 = vmatprep.subr.bf16.mxu0 0
        %960 = vmatpush1.bf16.msra.mxu0 0
        %961 = vmatprep.subr.bf16.mxu0 0
        %962 = vmatpush1.bf16.msra.mxu0 %v942
        %963 = vmatprep.subr.bf16.mxu0 0
        %964 = vmatpush2.bf16.msra.mxu0 0
        %965 = vmatprep.subr.bf16.mxu0 0
        %966 = vmatpush2.bf16.msra.mxu0 0
        %967 = vmatprep.subr.bf16.mxu0 0
        %968 = vmatpush2.bf16.msra.mxu0 0
        %969 = vmatprep.subr.bf16.mxu0 0
        %970 = vmatpush2.bf16.msra.mxu0 0
        %971 = vmatprep.subr.bf16.mxu0 0
        %972 = vmatpush2.bf16.msra.mxu0 0
        %973 = vmatprep.subr.bf16.mxu0 0
        %974 = vmatpush2.bf16.msra.mxu0 0
        %975 = vmatprep.subr.bf16.mxu0 0
        %976 = vmatpush2.bf16.msra.mxu0 0
        %977 = vmatprep.subr.bf16.mxu0 0
        %978 = vmatpush2.bf16.msra.mxu0 0
        %979 = vmatprep.mubr.bf16.mxu0 0
        %980 = vmatmul.mubr.bf16.gmra.mxu0 %v945
        %v981 = vpop.f32.mrf.mxu0
        %v982 = vadd.f32 0.0, %v981
        %v983 = vpop.f32.mrf.mxu0
        %v984 = vpop.f32.mrf.mxu0
        %v985 = vadd.f32 0.0, %v984
        %v986 = vpop.f32.mrf.mxu0
        %987 = vdwg.mxu0
        %988 = vrot.lane.b32.xlu0 %v537, 64
        %v989 = vpop.permute.xlu0 %988
        %v992 = vsel %vm754, %v846, 0
        %994 = vmatprep.subr.bf16.mxu0 0
        %995 = vmatpush1.bf16.msra.mxu0 0
        %996 = vmatprep.subr.bf16.mxu0 0
        %997 = vmatpush1.bf16.msra.mxu0 0
        %998 = vmatprep.subr.bf16.mxu0 0
        %999 = vmatpush1.bf16.msra.mxu0 0
        %1000 = vmatprep.subr.bf16.mxu0 0
        %1001 = vmatpush1.bf16.msra.mxu0 0
        %1002 = vmatprep.subr.bf16.mxu0 0
        %1003 = vmatpush1.bf16.msra.mxu0 0
        %1004 = vmatprep.subr.bf16.mxu0 0
        %1005 = vmatpush1.bf16.msra.mxu0 0
        %1006 = vmatprep.subr.bf16.mxu0 0
        %1007 = vmatpush1.bf16.msra.mxu0 0
        %1008 = vmatprep.subr.bf16.mxu0 0
        %1009 = vmatpush1.bf16.msra.mxu0 %v989
        %1010 = vmatprep.subr.bf16.mxu0 0
        %1011 = vmatpush2.bf16.msra.mxu0 0
        %1012 = vmatprep.subr.bf16.mxu0 0
        %1013 = vmatpush2.bf16.msra.mxu0 0
        %1014 = vmatprep.subr.bf16.mxu0 0
        %1015 = vmatpush2.bf16.msra.mxu0 0
        %1016 = vmatprep.subr.bf16.mxu0 0
        %1017 = vmatpush2.bf16.msra.mxu0 0
        %1018 = vmatprep.subr.bf16.mxu0 0
        %1019 = vmatpush2.bf16.msra.mxu0 0
        %1020 = vmatprep.subr.bf16.mxu0 0
        %1021 = vmatpush2.bf16.msra.mxu0 0
        %1022 = vmatprep.subr.bf16.mxu0 0
        %1023 = vmatpush2.bf16.msra.mxu0 0
        %1024 = vmatprep.subr.bf16.mxu0 0
        %1025 = vmatpush2.bf16.msra.mxu0 0
        %1026 = vmatprep.mubr.bf16.mxu0 0
        %1027 = vmatmul.mubr.bf16.gmra.mxu0 %v992
        %v1028 = vpop.f32.mrf.mxu0
        %v1029 = vadd.f32 0.0, %v1028
        %v1030 = vpop.f32.mrf.mxu0
        %v1031 = vpop.f32.mrf.mxu0
        %v1032 = vadd.f32 0.0, %v1031
        %v1033 = vpop.f32.mrf.mxu0
        %1034 = vdwg.mxu0
        %1037 = vrot.lane.b32.xlu0 %v935, 8
        %v1038 = vpop.permute.xlu0 %1037
        %1039 = vrot.lane.b32.xlu0 %v938, 8
        %v1040 = vpop.permute.xlu0 %1039
        %1045 = vrot.lane.b32.xlu0 %v982, 16
        %v1046 = vpop.permute.xlu0 %1045
        %1047 = vrot.lane.b32.xlu0 %v985, 16
        %v1048 = vpop.permute.xlu0 %1047
        %1053 = vrot.lane.b32.xlu0 %v1029, 24
        %v1054 = vpop.permute.xlu0 %1053
        %1055 = vrot.lane.b32.xlu0 %v1032, 24
        %v1056 = vpop.permute.xlu0 %1055
        %v1059 = vsel %vm540, %v888, %v1038
        %v1060 = vsel %vm540, %v891, %v1040
        %v1061 = vsel %vm754, %v1059, %v1046
        %v1062 = vsel %vm754, %v1060, %v1048
        %vm1063 = vcmask 195584
        %v1064 = vsel %vm1063, %v1061, %v1054
        %v1065 = vsel %vm1063, %v1062, %v1056
        %v1066 = vpack.c.bf16 %v1065, %v1064
        %v1067 = vld [vmem:[%s3] sm:$0xf]
        %v1068 = vld [vmem:[%s3 + $0x4] sm:$0xf]
        %v1069 = vld [vmem:[%s3 + $0x8] sm:$0xf]
        %v1070 = vld [vmem:[%s3 + $0xc] sm:$0xf]
        %v1071 = vld [vmem:[%s4] sm:$0x1]
        %v1073 = vlaneseq
        %v1074 = vshrl.u32 %v1073, 7
        %v1075 = vsub.s32 0, %v1074
        %v1076 = vrot.slane %v1071, %v1075
        %v1082 = vunpack.c.l.b16 %v1067
        %v1083 = vunpack.c.l.b16 %v1068
        %v1084 = vunpack.c.l.b16 %v1069
        %v1085 = vunpack.c.l.b16 %v1070
        %v1086 = vpack.c.b16 %v1083, %v1082
        %v1087 = vpack.c.b16 %v1085, %v1084
        %v1091 = vsel %vm485, %v1066, 0
        %1093 = vmatprep.subr.bf16.mxu0 0
        %1094 = vmatpush1.bf16.msra.mxu0 0
        %1095 = vmatprep.subr.bf16.mxu0 0
        %1096 = vmatpush1.bf16.msra.mxu0 0
        %1097 = vmatprep.subr.bf16.mxu0 0
        %1098 = vmatpush1.bf16.msra.mxu0 0
        %1099 = vmatprep.subr.bf16.mxu0 0
        %1100 = vmatpush1.bf16.msra.mxu0 0
        %1101 = vmatprep.subr.bf16.mxu0 0
        %1102 = vmatpush1.bf16.msra.mxu0 0
        %1103 = vmatprep.subr.bf16.mxu0 0
        %1104 = vmatpush1.bf16.msra.mxu0 0
        %1105 = vmatprep.subr.bf16.mxu0 0
        %1106 = vmatpush1.bf16.msra.mxu0 %v1087
        %1107 = vmatprep.subr.bf16.mxu0 0
        %1108 = vmatpush1.bf16.msra.mxu0 %v1086
        %1109 = vmatprep.subr.bf16.mxu0 0
        %1110 = vmatpush2.bf16.msra.mxu0 0
        %1111 = vmatprep.subr.bf16.mxu0 0
        %1112 = vmatpush2.bf16.msra.mxu0 0
        %1113 = vmatprep.subr.bf16.mxu0 0
        %1114 = vmatpush2.bf16.msra.mxu0 0
        %1115 = vmatprep.subr.bf16.mxu0 0
        %1116 = vmatpush2.bf16.msra.mxu0 0
        %1117 = vmatprep.subr.bf16.mxu0 0
        %1118 = vmatpush2.bf16.msra.mxu0 0
        %1119 = vmatprep.subr.bf16.mxu0 0
        %1120 = vmatpush2.bf16.msra.mxu0 0
        %1121 = vmatprep.subr.bf16.mxu0 0
        %1122 = vmatpush2.bf16.msra.mxu0 0
        %1123 = vmatprep.subr.bf16.mxu0 0
        %1124 = vmatpush2.bf16.msra.mxu0 0
        %1125 = vmatprep.mubr.bf16.mxu0 0
        %1126 = vmatmul.mubr.bf16.gmra.mxu0 %v1091
        %v1127 = vpop.f32.mrf.mxu0
        %v1128 = vadd.f32 %v1076, %v1127
        %v1129 = vpop.f32.mrf.mxu0
        %v1130 = vpop.f32.mrf.mxu0
        %v1131 = vadd.f32 %v1076, %v1130
        %v1132 = vpop.f32.mrf.mxu0
        %1133 = vdwg.mxu0
        %v1134 = vunpack.c.l.bf16 %v455
        %v1135 = vunpack.c.l.bf16 %v456
        %v1136 = vadd.f32 %v1134, %v1128
        %v1137 = vadd.f32 %v1135, %v1131
        %v1138 = vld [vmem:[%s5] sm:$0x1]
        %v1139 = vld [vmem:[%s6] sm:$0x1]
        %v1140 = vsel %vm485, %v1136, 0.0
        %1141 = vadd.xlane.f32.xlu0 %v1140
        %v1142 = vpop.xlane.xlu0 %1141
        %v1143 = vsel %vm485, %v1137, 0.0
        %1144 = vadd.xlane.f32.xlu0 %v1143
        %v1145 = vpop.xlane.xlu0 %1144
        %v1146 = vrcp.pop 32.0
        %v1147 = vmul.f32 %v1142, %v1146
        %v1148 = vmul.f32 %v1145, %v1146
        %v1149 = vsub.f32 %v1136, %v1147
        %v1150 = vsub.f32 %v1137, %v1148
        %v1151 = vmul.f32 %v1149, %v1149
        %v1152 = vmul.f32 %v1150, %v1150
        %v1153 = vsel %vm485, %v1151, 0.0
        %1154 = vadd.xlane.f32.xlu0 %v1153
        %v1155 = vpop.xlane.xlu0 %1154
        %v1156 = vsel %vm485, %v1152, 0.0
        %1157 = vadd.xlane.f32.xlu0 %v1156
        %v1158 = vpop.xlane.xlu0 %1157
        %v1159 = vmul.f32 %v1155, %v1146
        %v1160 = vmul.f32 %v1158, %v1146
        %v1161 = vadd.f32 %v1159, 1e-05
        %v1162 = vadd.f32 %v1160, 1e-05
        %v1163 = vrsqrt.pop %v1161
        %v1164 = vrsqrt.pop %v1162
        %v1165 = vmul.f32 %v1149, %v1163
        %v1166 = vmul.f32 %v1150, %v1164
        %v1168 = vlaneseq
        %v1169 = vshrl.u32 %v1168, 7
        %v1170 = vsub.s32 0, %v1169
        %v1171 = vrot.slane %v1138, %v1170
        %v1173 = vmul.f32 %v1165, %v1171
        %v1174 = vmul.f32 %v1166, %v1171
        %v1176 = vlaneseq
        %v1177 = vshrl.u32 %v1176, 7
        %v1178 = vsub.s32 0, %v1177
        %v1179 = vrot.slane %v1139, %v1178
        %v1181 = vadd.f32 %v1173, %v1179
        %v1182 = vadd.f32 %v1174, %v1179
        %v1183 = vpack.c.bf16 %v1182, %v1181
        %v1184 = vld [vmem:[%s7] sm:$0xf]
        %v1185 = vld [vmem:[%s7 + $0x4] sm:$0xf]
        %v1186 = vld [vmem:[%s7 + $0x8] sm:$0xf]
        %v1187 = vld [vmem:[%s7 + $0xc] sm:$0xf]
        %v1188 = vld [vmem:[#allocation2] sm:$0x1]
        %v1190 = vlaneseq
        %v1191 = vshrl.u32 %v1190, 7
        %v1192 = vsub.s32 0, %v1191
        %v1193 = vrot.slane %v1188, %v1192
        %v1199 = vunpack.c.l.b16 %v1184
        %v1200 = vunpack.c.l.b16 %v1185
        %v1201 = vunpack.c.l.b16 %v1186
        %v1202 = vunpack.c.l.b16 %v1187
        %v1203 = vpack.c.b16 %v1200, %v1199
        %v1204 = vpack.c.b16 %v1202, %v1201
        %v1208 = vsel %vm485, %v1183, 0
        %1210 = vmatprep.subr.bf16.mxu0 0
        %1211 = vmatpush1.bf16.msra.mxu0 0
        %1212 = vmatprep.subr.bf16.mxu0 0
        %1213 = vmatpush1.bf16.msra.mxu0 0
        %1214 = vmatprep.subr.bf16.mxu0 0
        %1215 = vmatpush1.bf16.msra.mxu0 0
        %1216 = vmatprep.subr.bf16.mxu0 0
        %1217 = vmatpush1.bf16.msra.mxu0 0
        %1218 = vmatprep.subr.bf16.mxu0 0
        %1219 = vmatpush1.bf16.msra.mxu0 0
        %1220 = vmatprep.subr.bf16.mxu0 0
        %1221 = vmatpush1.bf16.msra.mxu0 0
        %1222 = vmatprep.subr.bf16.mxu0 0
        %1223 = vmatpush1.bf16.msra.mxu0 %v1204
        %1224 = vmatprep.subr.bf16.mxu0 0
        %1225 = vmatpush1.bf16.msra.mxu0 %v1203
        %1226 = vmatprep.subr.bf16.mxu0 0
        %1227 = vmatpush2.bf16.msra.mxu0 0
        %1228 = vmatprep.subr.bf16.mxu0 0
        %1229 = vmatpush2.bf16.msra.mxu0 0
        %1230 = vmatprep.subr.bf16.mxu0 0
        %1231 = vmatpush2.bf16.msra.mxu0 0
        %1232 = vmatprep.subr.bf16.mxu0 0
        %1233 = vmatpush2.bf16.msra.mxu0 0
        %1234 = vmatprep.subr.bf16.mxu0 0
        %1235 = vmatpush2.bf16.msra.mxu0 0
        %1236 = vmatprep.subr.bf16.mxu0 0
        %1237 = vmatpush2.bf16.msra.mxu0 0
        %1238 = vmatprep.subr.bf16.mxu0 0
        %1239 = vmatpush2.bf16.msra.mxu0 0
        %1240 = vmatprep.subr.bf16.mxu0 0
        %1241 = vmatpush2.bf16.msra.mxu0 0
        %1242 = vmatprep.mubr.bf16.mxu0 0
        %1243 = vmatmul.mubr.bf16.gmra.mxu0 %v1208
        %v1244 = vpop.f32.mrf.mxu0
        %v1245 = vadd.f32 %v1193, %v1244
        %v1246 = vpop.f32.mrf.mxu0
        %v1247 = vpop.f32.mrf.mxu0
        %v1248 = vadd.f32 %v1193, %v1247
        %v1249 = vpop.f32.mrf.mxu0
        %1250 = vdwg.mxu0
        %v1251 = vmul.f32 %v1245, 0.5
        %v1252 = vmul.f32 %v1248, 0.5
        %v1253 = vmul.f32 %v1245, %v1245
        %v1254 = vmul.f32 %v1248, %v1248
        %v1255 = vmul.f32 %v1253, %v1245
        %v1256 = vmul.f32 %v1254, %v1248
        %v1257 = vmul.f32 %v1255, 0.044715
        %v1258 = vmul.f32 %v1256, 0.044715
        %v1259 = vadd.f32 %v1245, %v1257
        %v1260 = vadd.f32 %v1248, %v1258
        %v1261 = vmul.f32 %v1259, 0.7978846
        %v1262 = vmul.f32 %v1260, 0.7978846
        %v1263 = vtanh.pop %v1261
        %v1264 = vtanh.pop %v1262
        %v1265 = vadd.f32 %v1263, 1.0
        %v1266 = vadd.f32 %v1264, 1.0
        %v1267 = vmul.f32 %v1251, %v1265
        %v1268 = vmul.f32 %v1252, %v1266
        %v1269 = vpack.c.bf16 %v1268, %v1267
        %v1270 = vld [vmem:[%s9] sm:$0xf]
        %v1271 = vld [vmem:[%s9 + $0x4] sm:$0xf]
        %v1272 = vld [vmem:[%s9 + $0x8] sm:$0xf]
        %v1273 = vld [vmem:[%s9 + $0xc] sm:$0xf]
        %v1274 = vld [vmem:[%s9 + $0x10] sm:$0xf]
        %v1275 = vld [vmem:[%s9 + $0x14] sm:$0xf]
        %v1276 = vld [vmem:[%s9 + $0x18] sm:$0xf]
        %v1277 = vld [vmem:[%s9 + $0x1c] sm:$0xf]
        %v1278 = vld [vmem:[%s10] sm:$0x1]
        %v1280 = vlaneseq
        %v1281 = vshrl.u32 %v1280, 7
        %v1282 = vsub.s32 0, %v1281
        %v1283 = vrot.slane %v1278, %v1282
        %v1293 = vunpack.c.l.b16 %v1270
        %v1294 = vunpack.c.l.b16 %v1271
        %v1295 = vunpack.c.l.b16 %v1272
        %v1296 = vunpack.c.l.b16 %v1273
        %v1297 = vunpack.c.l.b16 %v1274
        %v1298 = vunpack.c.l.b16 %v1275
        %v1299 = vunpack.c.l.b16 %v1276
        %v1300 = vunpack.c.l.b16 %v1277
        %v1301 = vpack.c.b16 %v1294, %v1293
        %v1302 = vpack.c.b16 %v1296, %v1295
        %v1303 = vpack.c.b16 %v1298, %v1297
        %v1304 = vpack.c.b16 %v1300, %v1299
        %vm1309 = vcmask 523264
        %v1311 = vsel %vm1309, %v1269, 0
        %1313 = vmatprep.subr.bf16.mxu0 0
        %1314 = vmatpush1.bf16.msra.mxu0 0
        %1315 = vmatprep.subr.bf16.mxu0 0
        %1316 = vmatpush1.bf16.msra.mxu0 0
        %1317 = vmatprep.subr.bf16.mxu0 0
        %1318 = vmatpush1.bf16.msra.mxu0 0
        %1319 = vmatprep.subr.bf16.mxu0 0
        %1320 = vmatpush1.bf16.msra.mxu0 0
        %1321 = vmatprep.subr.bf16.mxu0 0
        %1322 = vmatpush1.bf16.msra.mxu0 %v1304
        %1323 = vmatprep.subr.bf16.mxu0 0
        %1324 = vmatpush1.bf16.msra.mxu0 %v1303
        %1325 = vmatprep.subr.bf16.mxu0 0
        %1326 = vmatpush1.bf16.msra.mxu0 %v1302
        %1327 = vmatprep.subr.bf16.mxu0 0
        %1328 = vmatpush1.bf16.msra.mxu0 %v1301
        %1329 = vmatprep.subr.bf16.mxu0 0
        %1330 = vmatpush2.bf16.msra.mxu0 0
        %1331 = vmatprep.subr.bf16.mxu0 0
        %1332 = vmatpush2.bf16.msra.mxu0 0
        %1333 = vmatprep.subr.bf16.mxu0 0
        %1334 = vmatpush2.bf16.msra.mxu0 0
        %1335 = vmatprep.subr.bf16.mxu0 0
        %1336 = vmatpush2.bf16.msra.mxu0 0
        %1337 = vmatprep.subr.bf16.mxu0 0
        %1338 = vmatpush2.bf16.msra.mxu0 0
        %1339 = vmatprep.subr.bf16.mxu0 0
        %1340 = vmatpush2.bf16.msra.mxu0 0
        %1341 = vmatprep.subr.bf16.mxu0 0
        %1342 = vmatpush2.bf16.msra.mxu0 0
        %1343 = vmatprep.subr.bf16.mxu0 0
        %1344 = vmatpush2.bf16.msra.mxu0 0
        %1345 = vmatprep.mubr.bf16.mxu0 0
        %1346 = vmatmul.mubr.bf16.gmra.mxu0 %v1311
        %v1347 = vpop.f32.mrf.mxu0
        %v1348 = vadd.f32 %v1283, %v1347
        %v1349 = vpop.f32.mrf.mxu0
        %v1350 = vpop.f32.mrf.mxu0
        %v1351 = vadd.f32 %v1283, %v1350
        %v1352 = vpop.f32.mrf.mxu0
        %1353 = vdwg.mxu0
        %v1354 = vadd.f32 %v1181, %v1348
        %v1355 = vadd.f32 %v1182, %v1351
        %v1356 = vld [vmem:[%s11] sm:$0x1]
        %v1357 = vld [vmem:[%s12] sm:$0x1]
        %v1358 = vsel %vm485, %v1354, 0.0
        %1359 = vadd.xlane.f32.xlu0 %v1358
        %v1360 = vpop.xlane.xlu0 %1359
        %v1361 = vsel %vm485, %v1355, 0.0
        %1362 = vadd.xlane.f32.xlu0 %v1361
        %v1363 = vpop.xlane.xlu0 %1362
        %v1364 = vmul.f32 %v1360, %v1146
        %v1365 = vmul.f32 %v1363, %v1146
        %v1366 = vsub.f32 %v1354, %v1364
        %v1367 = vsub.f32 %v1355, %v1365
        %v1368 = vmul.f32 %v1366, %v1366
        %v1369 = vmul.f32 %v1367, %v1367
        %v1370 = vsel %vm485, %v1368, 0.0
        %1371 = vadd.xlane.f32.xlu0 %v1370
        %v1372 = vpop.xlane.xlu0 %1371
        %v1373 = vsel %vm485, %v1369, 0.0
        %1374 = vadd.xlane.f32.xlu0 %v1373
        %v1375 = vpop.xlane.xlu0 %1374
        %v1376 = vmul.f32 %v1372, %v1146
        %v1377 = vmul.f32 %v1375, %v1146
        %v1378 = vadd.f32 %v1376, 1e-05
        %v1379 = vadd.f32 %v1377, 1e-05
        %v1380 = vrsqrt.pop %v1378
        %v1381 = vrsqrt.pop %v1379
        %v1382 = vmul.f32 %v1366, %v1380
        %v1383 = vmul.f32 %v1367, %v1381
        %v1385 = vlaneseq
        %v1386 = vshrl.u32 %v1385, 7
        %v1387 = vsub.s32 0, %v1386
        %v1388 = vrot.slane %v1356, %v1387
        %v1390 = vmul.f32 %v1382, %v1388
        %v1391 = vmul.f32 %v1383, %v1388
        %v1393 = vlaneseq
        %v1394 = vshrl.u32 %v1393, 7
        %v1395 = vsub.s32 0, %v1394
        %v1396 = vrot.slane %v1357, %v1395
        %v1398 = vadd.f32 %v1390, %v1396
        %v1399 = vadd.f32 %v1391, %v1396
        %v1400 = vpack.c.bf16 %v1399, %v1398
        %v1402 = vunpack.c.l.b16 %v1400
        %v1403 = vunpack.c.h.b16 %v1400
        %v1404 = vpack.c.b16 %v1402, %v1402
        %v1405 = vpack.c.b16 %v1403, %v1403
        %vm1408 = vcmask 257024
        %1409 = vst.msk [vmem:[%s453] sm:$0xf] %vm1408, %v1404
        %1410 = vst.msk [vmem:[%s453 + $0x4] sm:$0xf] %vm1408, %v1405
        %p1411 = scmp.lt.s32.totalorder %s25, 1
        %s1412 = scalar_select %p1411, %s25, 1
        %s1413 = smul.addr %s1412, 2
        %s1414 = smul.addr %s1413, 4
        %s1415 = scalar_lea.vmem %s13, %s1414
        // Predicated region
        $region77: #{_lambda_.4} parent=71 // pred_check
          %p1416 = pneg %p321
        $region78: #{_lambda_.4} parent=71 // pred_check_branch
          %1418 = sbr.rel (%p1416) target = $region80
        $region79: #{_lambda_.4} parent=71 // pred_region
          _
        $region80: #{_lambda_.4} parent=71 // pred_fallthru
          _
      $region72: #{_lambda_.4} parent=5 // pred_fallthru
        _
      %p1419 = scmp.le.s32.totalorder 2, %s20
      // Predicated region
      $region81: #{_lambda_.4} parent=5 // pred_check
        %p1420 = pneg %p1419
      $region82: #{_lambda_.4} parent=5 // pred_check_branch
        %1422 = sbr.rel (%p1420) target = $region84
      $region83: #{_lambda_.4} parent=5 // pred_region
        %s1423 = ssub.s32 %s20, 2
        // Predicated region
        $region85: #{_lambda_.4} parent=83 // pred_check
          %p1424 = pneg %p327
        $region86: #{_lambda_.4} parent=83 // pred_check_branch
          %1426 = sbr.rel (%p1424) target = $region88
        $region87: #{_lambda_.4} parent=83 // pred_region
          %p1427 = scmp.lt.s32.totalorder %s26, 1
          %s1428 = scalar_select %p1427, %s26, 1
          %s1429 = smul.addr %s1428, 2
          %s1430 = smul.addr %s1429, 4
          %s1431 = scalar_lea.vmem %s13, %s1430
        $region88: #{_lambda_.4} parent=83 // pred_fallthru
          _
      $region84: #{_lambda_.4} parent=5 // pred_fallthru
        _
    $region6: #{_lambda_.4} parent=1 // loop_footer
      %s24 = sadd.s32 1, %s20
    $region7: #{_lambda_.4} parent=1 // loop_footer_branch
      %19 = sbr.rel target = $region3
    $region8: #{_lambda_.4} parent=1 // loop_exit
      _
    %1432 = vsyncpa [#allocation3], 1
    %s1433 = scalar_lea.sflag [#allocation3], 1
    %1434 = vsyncpa %s1433, 1

</llo_original>
